<compile_context>
chip_gen: v7x
topology: tpu7x:2x2x1
jax: 0.10.0
libtpu: 0.0.40
codegen_flags: <defaults>
</compile_context>

<pallas_src>
import jax
import jax.numpy as jnp
from jax.experimental import pallas as pl
from jax.experimental.pallas import tpu as pltpu


def _round_up(n, m):
    return ((n + m - 1) // m) * m


def _critic_kernel(x_ref, u_ref, w1_ref, w2_ref, w3_ref, b_ref, qt_ref):
    # In-kernel lane concat (no HBM concat buffer).
    xu = jnp.concatenate([x_ref[...], u_ref[...]], axis=1)          # [tb, in_dim]
    # HIGHEST precision only for f32 inputs (exact parity); bf16 path uses the
    # native single-pass MXU matmul with f32 accumulation.
    prec = (jax.lax.Precision.HIGHEST
            if xu.dtype == jnp.float32 else jax.lax.Precision.DEFAULT)

    b = b_ref[...]                                                   # [3, 2h] (f32)

    # Fused layer 1 of both towers.
    h = jnp.dot(xu, w1_ref[...], preferred_element_type=jnp.float32,
                precision=prec)
    h = jnp.maximum(h + b[0:1, :], 0.0)

    # Fused layer 2 (block-diagonal [2h, 2h]: towers stay independent).
    h = h.astype(w2_ref.dtype)
    h = jnp.dot(h, w2_ref[...], preferred_element_type=jnp.float32,
                precision=prec)
    h = jnp.maximum(h + b[1:2, :], 0.0)

    # Fused heads -> [tb, 2]; store transposed, lane-dense, as [2, tb].
    h = h.astype(w3_ref.dtype)
    q = jnp.dot(h, w3_ref[...], preferred_element_type=jnp.float32,
                precision=prec)
    q = q + b[2:3, : q.shape[1]]
    qt_ref[...] = q.T.astype(qt_ref.dtype)                          # [2, tb]


def fuse_critic_params(params, *, weight_dtype=jnp.float32):
    """Fuse the two towers into one 3-layer net (one-time preprocessing).

    weight_dtype=jnp.bfloat16 halves HBM traffic for the streamed operands;
    biases stay float32 (in-kernel bias/ReLU/accumulation are f32 either way).
    """
    h = params["w1"].shape[1]

    w1 = jnp.concatenate([params["w1"], params["w4"]], axis=1)       # [in_dim, 2h]
    z_hh = jnp.zeros((h, h), jnp.float32)
    w2 = jnp.block([[params["w2"], z_hh], [z_hh, params["w5"]]])     # [2h, 2h]
    z_h1 = jnp.zeros((h, 1), jnp.float32)
    w3 = jnp.block([[params["w3"], z_h1], [z_h1, params["w6"]]])     # [2h, 2]

    b1 = jnp.concatenate([params["b1"], params["b4"]], axis=1)       # [1, 2h]
    b2 = jnp.concatenate([params["b2"], params["b5"]], axis=1)       # [1, 2h]
    b3 = jnp.concatenate([params["b3"], params["b6"]], axis=1)       # [1, 2]
    b3p = jnp.pad(b3, ((0, 0), (0, 2 * h - b3.shape[1])))            # pad to 2h
    bias = jnp.concatenate([b1, b2, b3p], axis=0).astype(jnp.float32)  # [3, 2h]

    return {
        "w1": w1.astype(weight_dtype),
        "w2": w2.astype(weight_dtype),
        "w3": w3.astype(weight_dtype),
        "bias": bias,
    }


def _critic_fused_jnp(x, u, fused):
    """Plain-XLA fallback on the fused weights (used for tiny batches)."""
    dt = fused["w1"].dtype
    b = fused["bias"]
    out_w = fused["w3"].shape[1]
    xu = jnp.concatenate([x.astype(dt), u.astype(dt)], axis=1)
    h = jax.nn.relu(jnp.dot(xu, fused["w1"],
                            preferred_element_type=jnp.float32) + b[0:1, :])
    h = jax.nn.relu(jnp.dot(h.astype(dt), fused["w2"],
                            preferred_element_type=jnp.float32) + b[1:2, :])
    q = jnp.dot(h.astype(dt), fused["w3"],
                preferred_element_type=jnp.float32) + b[2:3, :out_w]
    return q[:, 0:1], q[:, 1:2]


def critic_forward(x, u, fused, *, block_b=2048, use_pallas=None):
    """Pallas equivalent of Critic.forward(x, u) -> (q1, q2)."""
    B, state_dim = x.shape
    action_dim = u.shape[1]
    in_dim = state_dim + action_dim
    H2 = fused["w2"].shape[0]          # 2 * h_dim
    out_w = fused["w3"].shape[1]       # 2 (q1, q2)
    wdt = fused["w1"].dtype

    if use_pallas is None:
        # Below ~one tile of work the launch + single grid step is pure fixed
        # overhead; XLA's fused path matches or beats it.
        use_pallas = B >= 512
    if not use_pallas:
        return _critic_fused_jnp(x, u, fused)

    # Stream activations in the weights' dtype (bf16 halves the HBM bytes).
    x = x.astype(wdt)
    u = u.astype(wdt)

    # Batch tile: multiple of 128 (lane-dense transposed output store).  On
    # large batches cap at ceil(B/2) so there are >= 2 parallel grid blocks
    # (feeds both v7x TensorCores); harmless on single-TC v5e/v6e.
    if B >= 256:
        tb_cap = _round_up(-(-B // 2), 128)
    else:
        tb_cap = _round_up(B, 128)
    tb = max(128, min(_round_up(block_b, 128), tb_cap))
    grid = (pl.cdiv(B, tb),)

    act_bytes = jnp.dtype(wdt).itemsize
    weight_bytes = sum(
        int(fused[k].size) * jnp.dtype(fused[k].dtype).itemsize
        for k in ("w1", "w2", "w3", "bias")
    )
    cost = pl.CostEstimate(
        flops=2 * B * (in_dim * H2 + H2 * H2 + H2 * out_w),
        transcendentals=0,
        bytes_accessed=B * (in_dim * act_bytes + out_w * 4) + weight_bytes,
    )

    q_t = pl.pallas_call(
        _critic_kernel,
        grid=grid,
        in_specs=[
            pl.BlockSpec((tb, state_dim), lambda i: (i, 0)),    # x tile (streamed)
            pl.BlockSpec((tb, action_dim), lambda i: (i, 0)),   # u tile (streamed)
            pl.BlockSpec(fused["w1"].shape, lambda i: (0, 0)),  # weights resident
            pl.BlockSpec(fused["w2"].shape, lambda i: (0, 0)),
            pl.BlockSpec(fused["w3"].shape, lambda i: (0, 0)),
            pl.BlockSpec(fused["bias"].shape, lambda i: (0, 0)),
        ],
        # Lane-dense transposed output: [2, B], block [2, tb].
        out_specs=pl.BlockSpec((out_w, tb), lambda i: (0, i)),
        out_shape=jax.ShapeDtypeStruct((out_w, B), jnp.float32),
        compiler_params=pltpu.CompilerParams(
            dimension_semantics=("parallel",),
        ),
        cost_estimate=cost,
    )(x, u, fused["w1"], fused["w2"], fused["w3"], fused["bias"])

    q1 = q_t[0][:, None]
    q2 = q_t[1][:, None]
    return q1, q2


def init_critic_params(key, state_dim, action_dim, h_dim=32):
    """Synthetic init mirroring nn.Linear shapes.

    Weights stored as [in_features, out_features]; biases as [1, out_features].
    """
    in_dim = state_dim + action_dim
    dims = [
        (in_dim, h_dim),  # l1
        (h_dim, h_dim),   # l2
        (h_dim, 1),       # l3
        (in_dim, h_dim),  # l4
        (h_dim, h_dim),   # l5
        (h_dim, 1),       # l6
    ]
    params = {}
    keys = jax.random.split(key, len(dims) * 2)
    for i, (din, dout) in enumerate(dims):
        bound = 1.0 / jnp.sqrt(din)
        w = jax.random.uniform(keys[2 * i], (din, dout), jnp.float32, -bound, bound)
        b = jax.random.uniform(keys[2 * i + 1], (1, dout), jnp.float32, -bound, bound)
        params[f"w{i + 1}"] = w
        params[f"b{i + 1}"] = b
    return params


def _critic_reference(x, u, params):
    """Pure-JAX reference (mirrors the PyTorch forward)."""
    xu = jnp.concatenate([x, u], axis=1)
    h1 = jax.nn.relu(xu @ params["w1"] + params["b1"])
    h1 = jax.nn.relu(h1 @ params["w2"] + params["b2"])
    q1 = h1 @ params["w3"] + params["b3"]
    h2 = jax.nn.relu(xu @ params["w4"] + params["b4"])
    h2 = jax.nn.relu(h2 @ params["w5"] + params["b5"])
    q2 = h2 @ params["w6"] + params["b6"]
    return q1, q2


if __name__ == "__main__":
    # HIGHEST matmul precision so the f32 reference matches the kernel's
    # explicit-HIGHEST dots bit-for-bit-ish (tight tolerance below).
    jax.config.update("jax_default_matmul_precision", "highest")

    state_dim, action_dim, h_dim = 16, 4, 32
    batch = 8

    key = jax.random.PRNGKey(0)
    k_params, k_x, k_u = jax.random.split(key, 3)

    params = init_critic_params(k_params, state_dim, action_dim, h_dim)
    x = jax.random.normal(k_x, (batch, state_dim), jnp.float32)
    u = jax.random.normal(k_u, (batch, action_dim), jnp.float32)

    q1_ref, q2_ref = _critic_reference(x, u, params)

    # --- f32 Pallas path (exact parity with the reference) -------------------
    fused = fuse_critic_params(params)
    q1, q2 = critic_forward(x, u, fused, use_pallas=True)
    jax.block_until_ready((q1, q2))
    assert q1.shape == (batch, 1) and q2.shape == (batch, 1)
    assert jnp.allclose(q1, q1_ref, atol=1e-5, rtol=1e-5)
    assert jnp.allclose(q2, q2_ref, atol=1e-5, rtol=1e-5)

    # --- bf16 streamed-operand path (perf config, f32 accumulation) ----------
    fused_bf16 = fuse_critic_params(params, weight_dtype=jnp.bfloat16)
    q1b, q2b = critic_forward(x, u, fused_bf16, use_pallas=True)
    jax.block_until_ready((q1b, q2b))
    assert jnp.allclose(q1b, q1_ref, atol=1e-1, rtol=1e-1)
    assert jnp.allclose(q2b, q2_ref, atol=1e-1, rtol=1e-1)

    print("KERNEL_OK")
</pallas_src>

<mosaic_0001>
module attributes {stable_mosaic.version = 11 : i64} {
  func.func @_critic_kernel(%arg0: i32, %arg1: memref<128x16xf32, #tpu.memory_space<vmem>>, %arg2: memref<128x4xf32, #tpu.memory_space<vmem>>, %arg3: memref<20x64xf32, #tpu.memory_space<vmem>>, %arg4: memref<64x64xf32, #tpu.memory_space<vmem>>, %arg5: memref<64x2xf32, #tpu.memory_space<vmem>>, %arg6: memref<3x64xf32, #tpu.memory_space<vmem>>, %arg7: memref<2x128xf32, #tpu.memory_space<vmem>>) attributes {dimension_semantics = [#tpu.dimension_semantics<parallel>], iteration_bounds = array<i64: 1>, scalar_prefetch = 0 : i64, scratch_operands = 0 : i64, tpu.core_type = #tpu.core_type<tc>, window_params = [{transform_indices = @transform_0, window_bounds = array<i64: 128, 16>}, {transform_indices = @transform_1, window_bounds = array<i64: 128, 4>}, {pipeline_mode = #tpu.pipeline_mode<synchronous>, transform_indices = @transform_2, window_bounds = array<i64: 20, 64>}, {pipeline_mode = #tpu.pipeline_mode<synchronous>, transform_indices = @transform_3, window_bounds = array<i64: 64, 64>}, {pipeline_mode = #tpu.pipeline_mode<synchronous>, transform_indices = @transform_4, window_bounds = array<i64: 64, 2>}, {pipeline_mode = #tpu.pipeline_mode<synchronous>, transform_indices = @transform_5, window_bounds = array<i64: 3, 64>}, {transform_indices = @transform_6, window_bounds = array<i64: 2, 128>}]} {
    %c0 = arith.constant 0 : index
    %c0_0 = arith.constant 0 : index
    %0 = vector.load %arg1[%c0, %c0_0] : memref<128x16xf32, #tpu.memory_space<vmem>>, vector<128x16xf32>
    %c0_1 = arith.constant 0 : index
    %c0_2 = arith.constant 0 : index
    %1 = vector.load %arg2[%c0_1, %c0_2] : memref<128x4xf32, #tpu.memory_space<vmem>>, vector<128x4xf32>
    %2 = tpu.concatenate %0, %1 in 1 : vector<128x16xf32>, vector<128x4xf32> -> vector<128x20xf32>
    %c0_3 = arith.constant 0 : index
    %c0_4 = arith.constant 0 : index
    %3 = vector.load %arg6[%c0_3, %c0_4] : memref<3x64xf32, #tpu.memory_space<vmem>>, vector<3x64xf32>
    %c0_5 = arith.constant 0 : index
    %c0_6 = arith.constant 0 : index
    %4 = vector.load %arg3[%c0_5, %c0_6] : memref<20x64xf32, #tpu.memory_space<vmem>>, vector<20x64xf32>
    %cst = arith.constant dense<0.000000e+00> : vector<128x64xf32>
    %5 = tpu.matmul %2, %4, %cst {dimension_numbers = #tpu.dot_dimension_numbers<[1], [0], [0], [1], [0, 0, 1, 1], [], []>, precision = #tpu.contract_precision<fp32>} : vector<128x20xf32>, vector<20x64xf32>, vector<128x64xf32> -> vector<128x64xf32>
    %6 = vector.extract_strided_slice %3 {offsets = [0, 0], sizes = [1, 64], strides = [1, 1]} : vector<3x64xf32> to vector<1x64xf32>
    %7 = vector.broadcast %6 : vector<1x64xf32> to vector<128x64xf32>
    %8 = arith.addf %5, %7 : vector<128x64xf32>
    %cst_7 = arith.constant 0.000000e+00 : f32
    %9 = vector.broadcast %cst_7 : f32 to vector<128x64xf32>
    %10 = arith.maximumf %8, %9 : vector<128x64xf32>
    %c0_8 = arith.constant 0 : index
    %c0_9 = arith.constant 0 : index
    %11 = vector.load %arg4[%c0_8, %c0_9] : memref<64x64xf32, #tpu.memory_space<vmem>>, vector<64x64xf32>
    %cst_10 = arith.constant dense<0.000000e+00> : vector<128x64xf32>
    %12 = tpu.matmul %10, %11, %cst_10 {dimension_numbers = #tpu.dot_dimension_numbers<[1], [0], [0], [1], [0, 0, 1, 1], [], []>, precision = #tpu.contract_precision<fp32>} : vector<128x64xf32>, vector<64x64xf32>, vector<128x64xf32> -> vector<128x64xf32>
    %13 = vector.extract_strided_slice %3 {offsets = [1, 0], sizes = [1, 64], strides = [1, 1]} : vector<3x64xf32> to vector<1x64xf32>
    %14 = vector.broadcast %13 : vector<1x64xf32> to vector<128x64xf32>
    %15 = arith.addf %12, %14 : vector<128x64xf32>
    %cst_11 = arith.constant 0.000000e+00 : f32
    %16 = vector.broadcast %cst_11 : f32 to vector<128x64xf32>
    %17 = arith.maximumf %15, %16 : vector<128x64xf32>
    %c0_12 = arith.constant 0 : index
    %c0_13 = arith.constant 0 : index
    %18 = vector.load %arg5[%c0_12, %c0_13] : memref<64x2xf32, #tpu.memory_space<vmem>>, vector<64x2xf32>
    %cst_14 = arith.constant dense<0.000000e+00> : vector<128x2xf32>
    %19 = tpu.matmul %17, %18, %cst_14 {dimension_numbers = #tpu.dot_dimension_numbers<[1], [0], [0], [1], [0, 0, 1, 1], [], []>, precision = #tpu.contract_precision<fp32>} : vector<128x64xf32>, vector<64x2xf32>, vector<128x2xf32> -> vector<128x2xf32>
    %20 = vector.extract_strided_slice %3 {offsets = [2, 0], sizes = [1, 2], strides = [1, 1]} : vector<3x64xf32> to vector<1x2xf32>
    %21 = vector.broadcast %20 : vector<1x2xf32> to vector<128x2xf32>
    %22 = arith.addf %19, %21 : vector<128x2xf32>
    %23 = tpu.transpose %22, [1, 0] : vector<128x2xf32> -> vector<2x128xf32>
    %c0_15 = arith.constant 0 : index
    %c0_16 = arith.constant 0 : index
    %24 = vector.load %arg7[%c0_15, %c0_16] : memref<2x128xf32, #tpu.memory_space<vmem>>, vector<2x128xf32>
    tpu.vector_store %arg7[%c0_15, %c0_16], %23 {strides = array<i32>} : memref<2x128xf32, #tpu.memory_space<vmem>>, vector<2x128xf32>,
    return
  }
  func.func @transform_0(%arg0: i32) -> (i32, i32) {
    %c0_i32 = arith.constant 0 : i32
    %c0_i32_0 = arith.constant 0 : i32
    return %arg0, %c0_i32 : i32, i32
  }
  func.func @transform_1(%arg0: i32) -> (i32, i32) {
    %c0_i32 = arith.constant 0 : i32
    %c0_i32_0 = arith.constant 0 : i32
    return %arg0, %c0_i32 : i32, i32
  }
  func.func @transform_2(%arg0: i32) -> (i32, i32) {
    %c0_i32 = arith.constant 0 : i32
    %c0_i32_0 = arith.constant 0 : i32
    %c0_i32_1 = arith.constant 0 : i32
    return %c0_i32, %c0_i32_0 : i32, i32
  }
  func.func @transform_3(%arg0: i32) -> (i32, i32) {
    %c0_i32 = arith.constant 0 : i32
    %c0_i32_0 = arith.constant 0 : i32
    %c0_i32_1 = arith.constant 0 : i32
    return %c0_i32, %c0_i32_0 : i32, i32
  }
  func.func @transform_4(%arg0: i32) -> (i32, i32) {
    %c0_i32 = arith.constant 0 : i32
    %c0_i32_0 = arith.constant 0 : i32
    %c0_i32_1 = arith.constant 0 : i32
    return %c0_i32, %c0_i32_0 : i32, i32
  }
  func.func @transform_5(%arg0: i32) -> (i32, i32) {
    %c0_i32 = arith.constant 0 : i32
    %c0_i32_0 = arith.constant 0 : i32
    %c0_i32_1 = arith.constant 0 : i32
    return %c0_i32, %c0_i32_0 : i32, i32
  }
  func.func @transform_6(%arg0: i32) -> (i32, i32) {
    %c0_i32 = arith.constant 0 : i32
    %c0_i32_0 = arith.constant 0 : i32
    return %c0_i32, %arg0 : i32, i32
  }
}

</mosaic_0001>

<llo_original>
// kernel: tpu_custom_call.1
$region0: #{tpu_custom_call.1}
  #allocation0 [shape = 'u32[]', space=smem, size = 0x4, offset = 0x4, fixed_abs, tag = 'smem constant byte address 0x4 - core index']
  #allocation1 [shape = 'u32[144,128]{1,0:T(1,128)}', space=vmem, size = 0x12000, scoped, tag = 'internal scratch']
  %s0 = inlined_call_operand.hbm [shape: f32[8,16], index: 0, kind: input, shape index: {}]
  %s1 = inlined_call_operand.vmem [shape: f32[8,4], index: 1, kind: input, shape index: {}]
  %s2 = inlined_call_operand.vmem [shape: f32[20,64], index: 2, kind: input, shape index: {}]
  %s3 = inlined_call_operand.vmem [shape: f32[64,64], index: 3, kind: input, shape index: {}]
  %s4 = inlined_call_operand.vmem [shape: f32[64,2], index: 4, kind: input, shape index: {}]
  %s5 = inlined_call_operand.vmem [shape: f32[3,64], index: 5, kind: input, shape index: {}]
  %s6 = inlined_call_operand.hbm [shape: f32[2,8], index: 6, kind: output, shape index: {}]
  %s7 = sld [smem:[#allocation0]]
  $region38: #{tpu_custom_call.1} parent=0
    _
  %s9 = ssub.s32 1, %s7
  %s10 = scalar_select 0, %s9, %s7
  $region1: #{tpu_custom_call.1} parent=0
    #allocation2 [shape = 'u8[65536]{0}', space=vmem, size = 0x10000, scoped, tag = 'input window, operand 0, single buffered']
    #allocation3 [shape = 's32[1]{0}', space=sflag, size = 0x4, scoped, tag = 'scoped memory for tpu_custom_call.1']
    #allocation4 [shape = 's32[1]{0}', space=sflag, size = 0x4, scoped, tag = 'scoped memory for tpu_custom_call.1']
    #allocation5 [shape = 'u8[1024]{0}', space=vmem, size = 0x400, scoped, tag = 'output window, operand 0, single buffered']
    %11 = vsyncpa [#allocation3], 0
    %12 = vsyncpa [#allocation4], 0
    // Predicated region
    $region2: #{tpu_custom_call.1} parent=1 // pred_check
      _
    $region3: #{tpu_custom_call.1} parent=1 // pred_check_branch
      %14 = sbr.rel (0) target = $region5
    $region4: #{tpu_custom_call.1} parent=1 // pred_region
      %s16 = ssub.s32 2048, 128
      %17 = vsyncadd [#allocation3], %s16
      %s18 = sshll.u32 [#allocation2], 4
      %s19 = int_to_ptr.vmem [resolvable:$true] %s18
      %24 = dma.hbm_to_vmem [thread:$0]  %s0, 128, %s19, [#allocation3], 128, 128, 8
    $region5: #{tpu_custom_call.1} parent=1 // pred_fallthru
      _
    // Predicated region
    $region6: #{tpu_custom_call.1} parent=1 // pred_check
      _
    $region7: #{tpu_custom_call.1} parent=1 // pred_check_branch
      %26 = sbr.rel (0) target = $region9
    $region8: #{tpu_custom_call.1} parent=1 // pred_region
      _
    $region9: #{tpu_custom_call.1} parent=1 // pred_fallthru
      _
    // Predicated region
    $region10: #{tpu_custom_call.1} parent=1 // pred_check
      _
    $region11: #{tpu_custom_call.1} parent=1 // pred_check_branch
      %28 = sbr.rel (0) target = $region13
    $region12: #{tpu_custom_call.1} parent=1 // pred_region
      _
    $region13: #{tpu_custom_call.1} parent=1 // pred_fallthru
      _
    // Predicated region
    $region14: #{tpu_custom_call.1} parent=1 // pred_check
      _
    $region15: #{tpu_custom_call.1} parent=1 // pred_check_branch
      %30 = sbr.rel (0) target = $region17
    $region16: #{tpu_custom_call.1} parent=1 // pred_region
      _
    $region17: #{tpu_custom_call.1} parent=1 // pred_fallthru
      _
    // Predicated region
    $region18: #{tpu_custom_call.1} parent=1 // pred_check
      _
    $region19: #{tpu_custom_call.1} parent=1 // pred_check_branch
      %32 = sbr.rel (0) target = $region21
    $region20: #{tpu_custom_call.1} parent=1 // pred_region
      _
    $region21: #{tpu_custom_call.1} parent=1 // pred_fallthru
      _
    // Predicated region
    $region22: #{tpu_custom_call.1} parent=1 // pred_check
      _
    $region23: #{tpu_custom_call.1} parent=1 // pred_check_branch
      %34 = sbr.rel (0) target = $region25
    $region24: #{tpu_custom_call.1} parent=1 // pred_region
      _
    $region25: #{tpu_custom_call.1} parent=1 // pred_fallthru
      _
    // Predicated region
    $region26: #{tpu_custom_call.1} parent=1 // pred_check
      _
    $region27: #{tpu_custom_call.1} parent=1 // pred_check_branch
      %36 = sbr.rel (0) target = $region29
    $region28: #{tpu_custom_call.1} parent=1 // pred_region
      %37 = dma.done [#allocation3], 2048
    $region29: #{tpu_custom_call.1} parent=1 // pred_fallthru
      _
    %v38 = vld [vmem:[#allocation2] sm:$0xff]
    %v39 = vld [vmem:[#allocation2 + $0x8] sm:$0xff]
    %v40 = vld [vmem:[#allocation2 + $0x10] sm:$0xff]
    %v41 = vld [vmem:[#allocation2 + $0x18] sm:$0xff]
    %v42 = vld [vmem:[#allocation2 + $0x20] sm:$0xff]
    %v43 = vld [vmem:[#allocation2 + $0x28] sm:$0xff]
    %v44 = vld [vmem:[#allocation2 + $0x30] sm:$0xff]
    %v45 = vld [vmem:[#allocation2 + $0x38] sm:$0xff]
    %v46 = vld [vmem:[#allocation2 + $0x40] sm:$0xff]
    %v47 = vld [vmem:[#allocation2 + $0x48] sm:$0xff]
    %v48 = vld [vmem:[#allocation2 + $0x50] sm:$0xff]
    %v49 = vld [vmem:[#allocation2 + $0x58] sm:$0xff]
    %v50 = vld [vmem:[#allocation2 + $0x60] sm:$0xff]
    %v51 = vld [vmem:[#allocation2 + $0x68] sm:$0xff]
    %v52 = vld [vmem:[#allocation2 + $0x70] sm:$0xff]
    %v53 = vld [vmem:[#allocation2 + $0x78] sm:$0xff]
    %v54 = vld [vmem:[%s1] sm:$0xff]
    %v55 = vld [vmem:[%s1 + $0x8] sm:$0xff]
    %v56 = vld [vmem:[%s1 + $0x10] sm:$0xff]
    %v57 = vld [vmem:[%s1 + $0x18] sm:$0xff]
    %v58 = vld [vmem:[%s1 + $0x20] sm:$0xff]
    %v59 = vld [vmem:[%s1 + $0x28] sm:$0xff]
    %v60 = vld [vmem:[%s1 + $0x30] sm:$0xff]
    %v61 = vld [vmem:[%s1 + $0x38] sm:$0xff]
    %v62 = vld [vmem:[%s1 + $0x40] sm:$0xff]
    %v63 = vld [vmem:[%s1 + $0x48] sm:$0xff]
    %v64 = vld [vmem:[%s1 + $0x50] sm:$0xff]
    %v65 = vld [vmem:[%s1 + $0x58] sm:$0xff]
    %v66 = vld [vmem:[%s1 + $0x60] sm:$0xff]
    %v67 = vld [vmem:[%s1 + $0x68] sm:$0xff]
    %v68 = vld [vmem:[%s1 + $0x70] sm:$0xff]
    %v69 = vld [vmem:[%s1 + $0x78] sm:$0xff]
    %86 = vrot.lane.b32.xlu0 %v54, 16
    %v87 = vpop.permute.xlu0 %86
    %88 = vrot.lane.b32.xlu0 %v55, 16
    %v89 = vpop.permute.xlu0 %88
    %90 = vrot.lane.b32.xlu0 %v56, 16
    %v91 = vpop.permute.xlu0 %90
    %92 = vrot.lane.b32.xlu0 %v57, 16
    %v93 = vpop.permute.xlu0 %92
    %94 = vrot.lane.b32.xlu0 %v58, 16
    %v95 = vpop.permute.xlu0 %94
    %96 = vrot.lane.b32.xlu0 %v59, 16
    %v97 = vpop.permute.xlu0 %96
    %98 = vrot.lane.b32.xlu0 %v60, 16
    %v99 = vpop.permute.xlu0 %98
    %100 = vrot.lane.b32.xlu0 %v61, 16
    %v101 = vpop.permute.xlu0 %100
    %102 = vrot.lane.b32.xlu0 %v62, 16
    %v103 = vpop.permute.xlu0 %102
    %104 = vrot.lane.b32.xlu0 %v63, 16
    %v105 = vpop.permute.xlu0 %104
    %106 = vrot.lane.b32.xlu0 %v64, 16
    %v107 = vpop.permute.xlu0 %106
    %108 = vrot.lane.b32.xlu0 %v65, 16
    %v109 = vpop.permute.xlu0 %108
    %110 = vrot.lane.b32.xlu0 %v66, 16
    %v111 = vpop.permute.xlu0 %110
    %112 = vrot.lane.b32.xlu0 %v67, 16
    %v113 = vpop.permute.xlu0 %112
    %114 = vrot.lane.b32.xlu0 %v68, 16
    %v115 = vpop.permute.xlu0 %114
    %116 = vrot.lane.b32.xlu0 %v69, 16
    %v117 = vpop.permute.xlu0 %116
    %vm134 = vcmask 130048
    %v135 = vsel %vm134, %v38, %v87
    %v136 = vsel %vm134, %v39, %v89
    %v137 = vsel %vm134, %v40, %v91
    %v138 = vsel %vm134, %v41, %v93
    %v139 = vsel %vm134, %v42, %v95
    %v140 = vsel %vm134, %v43, %v97
    %v141 = vsel %vm134, %v44, %v99
    %v142 = vsel %vm134, %v45, %v101
    %v143 = vsel %vm134, %v46, %v103
    %v144 = vsel %vm134, %v47, %v105
    %v145 = vsel %vm134, %v48, %v107
    %v146 = vsel %vm134, %v49, %v109
    %v147 = vsel %vm134, %v50, %v111
    %v148 = vsel %vm134, %v51, %v113
    %v149 = vsel %vm134, %v52, %v115
    %v150 = vsel %vm134, %v53, %v117
    %v151 = vld [vmem:[%s5] sm:$0x7]
    %v152 = vld [vmem:[%s2] sm:$0xff]
    %v153 = vld [vmem:[%s2 + $0x8] sm:$0xff]
    %v154 = vld [vmem:[%s2 + $0x10] sm:$0xf]
    %v155 = vlaneseq
    %v156 = vshrl.u32 %v155, 7
    %v157 = vsub.s32 0, %v156
    %v158 = vrot.slane %v151, %v157
    %vm159 = vcmask 162816
    %v161 = vsel %vm159, %v135, 0
    %v164 = vsel %vm159, %v136, 0
    %v167 = vsel %vm159, %v137, 0
    %v170 = vsel %vm159, %v138, 0
    %v173 = vsel %vm159, %v139, 0
    %v176 = vsel %vm159, %v140, 0
    %v179 = vsel %vm159, %v141, 0
    %v182 = vsel %vm159, %v142, 0
    %v185 = vsel %vm159, %v143, 0
    %v188 = vsel %vm159, %v144, 0
    %v191 = vsel %vm159, %v145, 0
    %v194 = vsel %vm159, %v146, 0
    %v197 = vsel %vm159, %v147, 0
    %v200 = vsel %vm159, %v148, 0
    %v203 = vsel %vm159, %v149, 0
    %v206 = vsel %vm159, %v150, 0
    %vm208 = vcmask 1043456
    %v210 = vsel %vm208, %v154, 0
    %212 = vmatprep.subr.mxu0 0.0
    %v213 = vand.u32 %v152, 4294901760
    %214 = vmatpush1.msra.mxu0 %v213
    %215 = vmatprep.subr.mxu0 0.0
    %v216 = vand.u32 %v153, 4294901760
    %217 = vmatpush1.msra.mxu0 %v216
    %218 = vmatprep.subr.mxu0 0.0
    %v219 = vand.u32 %v210, 4294901760
    %220 = vmatpush1.msra.mxu0 %v219
    %221 = vmatprep.subr.mxu0 0.0
    %222 = vmatpush1.msra.mxu0 0.0
    %223 = vmatprep.subr.mxu0 0.0
    %224 = vmatpush1.msra.mxu0 0.0
    %225 = vmatprep.subr.mxu0 0.0
    %226 = vmatpush1.msra.mxu0 0.0
    %227 = vmatprep.subr.mxu0 0.0
    %228 = vmatpush1.msra.mxu0 0.0
    %229 = vmatprep.subr.mxu0 0.0
    %230 = vmatpush1.msra.mxu0 0.0
    %231 = vmatprep.subr.mxu0 0.0
    %232 = vmatpush1.msra.mxu0 0.0
    %233 = vmatprep.subr.mxu0 0.0
    %234 = vmatpush1.msra.mxu0 0.0
    %235 = vmatprep.subr.mxu0 0.0
    %236 = vmatpush1.msra.mxu0 0.0
    %237 = vmatprep.subr.mxu0 0.0
    %238 = vmatpush1.msra.mxu0 0.0
    %239 = vmatprep.subr.mxu0 0.0
    %240 = vmatpush1.msra.mxu0 0.0
    %241 = vmatprep.subr.mxu0 0.0
    %242 = vmatpush1.msra.mxu0 0.0
    %243 = vmatprep.subr.mxu0 0.0
    %244 = vmatpush1.msra.mxu0 0.0
    %245 = vmatprep.subr.mxu0 0.0
    %246 = vmatpush1.msra.mxu0 0.0
    %247 = vmatprep.subr.mxu0 0.0
    %248 = vmatpush1.msra.mxu0 0.0
    %249 = vmatprep.subr.mxu0 0.0
    %250 = vmatpush1.msra.mxu0 0.0
    %251 = vmatprep.subr.mxu0 0.0
    %252 = vmatpush1.msra.mxu0 0.0
    %253 = vmatprep.subr.mxu0 0.0
    %254 = vmatpush1.msra.mxu0 0.0
    %255 = vmatprep.subr.mxu0 0.0
    %256 = vmatpush1.msra.mxu0 0.0
    %257 = vmatprep.subr.mxu0 0.0
    %258 = vmatpush1.msra.mxu0 0.0
    %259 = vmatprep.subr.mxu0 0.0
    %260 = vmatpush1.msra.mxu0 0.0
    %261 = vmatprep.subr.mxu0 0.0
    %262 = vmatpush1.msra.mxu0 0.0
    %263 = vmatprep.subr.mxu0 0.0
    %264 = vmatpush1.msra.mxu0 0.0
    %265 = vmatprep.subr.mxu0 0.0
    %266 = vmatpush1.msra.mxu0 0.0
    %267 = vmatprep.subr.mxu0 0.0
    %268 = vmatpush1.msra.mxu0 0.0
    %269 = vmatprep.subr.mxu0 0.0
    %270 = vmatpush1.msra.mxu0 0.0
    %271 = vmatprep.subr.mxu0 0.0
    %272 = vmatpush1.msra.mxu0 0.0
    %273 = vmatprep.subr.mxu0 0.0
    %274 = vmatpush1.msra.mxu0 0.0
    %275 = vmatprep.subr.mxu0 0.0
    %276 = vmatpush1.msra.mxu0 0.0
    %277 = vmatprep.subr.mxu0 0.0
    %278 = vmatpush1.msra.mxu0 0.0
    %279 = vmatprep.mubr.f32.mxu0 0.0
    %v280 = vand.u32 %v161, 4294901760
    %v281 = vsub.f32 %v161, %v280
    %v282 = vand.u32 %v281, 4294901760
    %v283 = vsub.f32 %v281, %v282
    %v284 = vand.u32 %v283, 4294901760
    %285 = vmatmul.mubr.f32.gmra.mrb[0].mxu0 %v284
    %v286 = vpop.f32.mrb[0].mxu0
    %v287 = vadd.f32 %v158, %v286
    %v288 = vpop.f32.mrb[0].mxu0
    %289 = vmatprep.mubr.f32.mxu0 0.0
    %v290 = vand.u32 %v164, 4294901760
    %v291 = vsub.f32 %v164, %v290
    %v292 = vand.u32 %v291, 4294901760
    %v293 = vsub.f32 %v291, %v292
    %v294 = vand.u32 %v293, 4294901760
    %295 = vmatmul.mubr.f32.gmra.mrb[0].mxu0 %v294
    %v296 = vpop.f32.mrb[0].mxu0
    %v297 = vadd.f32 %v158, %v296
    %v298 = vpop.f32.mrb[0].mxu0
    %299 = vmatprep.mubr.f32.mxu0 0.0
    %v300 = vand.u32 %v167, 4294901760
    %v301 = vsub.f32 %v167, %v300
    %v302 = vand.u32 %v301, 4294901760
    %v303 = vsub.f32 %v301, %v302
    %v304 = vand.u32 %v303, 4294901760
    %305 = vmatmul.mubr.f32.gmra.mrb[0].mxu0 %v304
    %v306 = vpop.f32.mrb[0].mxu0
    %v307 = vadd.f32 %v158, %v306
    %v308 = vpop.f32.mrb[0].mxu0
    %309 = vmatprep.mubr.f32.mxu0 0.0
    %v310 = vand.u32 %v170, 4294901760
    %v311 = vsub.f32 %v170, %v310
    %v312 = vand.u32 %v311, 4294901760
    %v313 = vsub.f32 %v311, %v312
    %v314 = vand.u32 %v313, 4294901760
    %315 = vmatmul.mubr.f32.gmra.mrb[0].mxu0 %v314
    %v316 = vpop.f32.mrb[0].mxu0
    %v317 = vadd.f32 %v158, %v316
    %v318 = vpop.f32.mrb[0].mxu0
    %319 = vmatprep.mubr.f32.mxu0 0.0
    %v320 = vand.u32 %v173, 4294901760
    %v321 = vsub.f32 %v173, %v320
    %v322 = vand.u32 %v321, 4294901760
    %v323 = vsub.f32 %v321, %v322
    %v324 = vand.u32 %v323, 4294901760
    %325 = vmatmul.mubr.f32.gmra.mrb[0].mxu0 %v324
    %v326 = vpop.f32.mrb[0].mxu0
    %v327 = vadd.f32 %v158, %v326
    %v328 = vpop.f32.mrb[0].mxu0
    %329 = vmatprep.mubr.f32.mxu0 0.0
    %v330 = vand.u32 %v176, 4294901760
    %v331 = vsub.f32 %v176, %v330
    %v332 = vand.u32 %v331, 4294901760
    %v333 = vsub.f32 %v331, %v332
    %v334 = vand.u32 %v333, 4294901760
    %335 = vmatmul.mubr.f32.gmra.mrb[0].mxu0 %v334
    %v336 = vpop.f32.mrb[0].mxu0
    %v337 = vadd.f32 %v158, %v336
    %v338 = vpop.f32.mrb[0].mxu0
    %339 = vmatprep.mubr.f32.mxu0 0.0
    %v340 = vand.u32 %v179, 4294901760
    %v341 = vsub.f32 %v179, %v340
    %v342 = vand.u32 %v341, 4294901760
    %v343 = vsub.f32 %v341, %v342
    %v344 = vand.u32 %v343, 4294901760
    %345 = vmatmul.mubr.f32.gmra.mrb[0].mxu0 %v344
    %v346 = vpop.f32.mrb[0].mxu0
    %v347 = vadd.f32 %v158, %v346
    %v348 = vpop.f32.mrb[0].mxu0
    %349 = vmatprep.mubr.f32.mxu0 0.0
    %v350 = vand.u32 %v182, 4294901760
    %v351 = vsub.f32 %v182, %v350
    %v352 = vand.u32 %v351, 4294901760
    %v353 = vsub.f32 %v351, %v352
    %v354 = vand.u32 %v353, 4294901760
    %355 = vmatmul.mubr.f32.gmra.mrb[0].mxu0 %v354
    %v356 = vpop.f32.mrb[0].mxu0
    %v357 = vadd.f32 %v158, %v356
    %v358 = vpop.f32.mrb[0].mxu0
    %359 = vmatprep.mubr.f32.mxu0 0.0
    %v360 = vand.u32 %v185, 4294901760
    %v361 = vsub.f32 %v185, %v360
    %v362 = vand.u32 %v361, 4294901760
    %v363 = vsub.f32 %v361, %v362
    %v364 = vand.u32 %v363, 4294901760
    %365 = vmatmul.mubr.f32.gmra.mrb[0].mxu0 %v364
    %v366 = vpop.f32.mrb[0].mxu0
    %v367 = vadd.f32 %v158, %v366
    %v368 = vpop.f32.mrb[0].mxu0
    %369 = vmatprep.mubr.f32.mxu0 0.0
    %v370 = vand.u32 %v188, 4294901760
    %v371 = vsub.f32 %v188, %v370
    %v372 = vand.u32 %v371, 4294901760
    %v373 = vsub.f32 %v371, %v372
    %v374 = vand.u32 %v373, 4294901760
    %375 = vmatmul.mubr.f32.gmra.mrb[0].mxu0 %v374
    %v376 = vpop.f32.mrb[0].mxu0
    %v377 = vadd.f32 %v158, %v376
    %v378 = vpop.f32.mrb[0].mxu0
    %379 = vmatprep.mubr.f32.mxu0 0.0
    %v380 = vand.u32 %v191, 4294901760
    %v381 = vsub.f32 %v191, %v380
    %v382 = vand.u32 %v381, 4294901760
    %v383 = vsub.f32 %v381, %v382
    %v384 = vand.u32 %v383, 4294901760
    %385 = vmatmul.mubr.f32.gmra.mrb[0].mxu0 %v384
    %v386 = vpop.f32.mrb[0].mxu0
    %v387 = vadd.f32 %v158, %v386
    %v388 = vpop.f32.mrb[0].mxu0
    %389 = vmatprep.mubr.f32.mxu0 0.0
    %v390 = vand.u32 %v194, 4294901760
    %v391 = vsub.f32 %v194, %v390
    %v392 = vand.u32 %v391, 4294901760
    %v393 = vsub.f32 %v391, %v392
    %v394 = vand.u32 %v393, 4294901760
    %395 = vmatmul.mubr.f32.gmra.mrb[0].mxu0 %v394
    %v396 = vpop.f32.mrb[0].mxu0
    %v397 = vadd.f32 %v158, %v396
    %v398 = vpop.f32.mrb[0].mxu0
    %399 = vmatprep.mubr.f32.mxu0 0.0
    %v400 = vand.u32 %v197, 4294901760
    %v401 = vsub.f32 %v197, %v400
    %v402 = vand.u32 %v401, 4294901760
    %v403 = vsub.f32 %v401, %v402
    %v404 = vand.u32 %v403, 4294901760
    %405 = vmatmul.mubr.f32.gmra.mrb[0].mxu0 %v404
    %v406 = vpop.f32.mrb[0].mxu0
    %v407 = vadd.f32 %v158, %v406
    %v408 = vpop.f32.mrb[0].mxu0
    %409 = vmatprep.mubr.f32.mxu0 0.0
    %v410 = vand.u32 %v200, 4294901760
    %v411 = vsub.f32 %v200, %v410
    %v412 = vand.u32 %v411, 4294901760
    %v413 = vsub.f32 %v411, %v412
    %v414 = vand.u32 %v413, 4294901760
    %415 = vmatmul.mubr.f32.gmra.mrb[0].mxu0 %v414
    %v416 = vpop.f32.mrb[0].mxu0
    %v417 = vadd.f32 %v158, %v416
    %v418 = vpop.f32.mrb[0].mxu0
    %419 = vmatprep.mubr.f32.mxu0 0.0
    %v420 = vand.u32 %v203, 4294901760
    %v421 = vsub.f32 %v203, %v420
    %v422 = vand.u32 %v421, 4294901760
    %v423 = vsub.f32 %v421, %v422
    %v424 = vand.u32 %v423, 4294901760
    %425 = vmatmul.mubr.f32.gmra.mrb[0].mxu0 %v424
    %v426 = vpop.f32.mrb[0].mxu0
    %v427 = vadd.f32 %v158, %v426
    %v428 = vpop.f32.mrb[0].mxu0
    %429 = vmatprep.mubr.f32.mxu0 0.0
    %v430 = vand.u32 %v206, 4294901760
    %v431 = vsub.f32 %v206, %v430
    %v432 = vand.u32 %v431, 4294901760
    %v433 = vsub.f32 %v431, %v432
    %v434 = vand.u32 %v433, 4294901760
    %435 = vmatmul.mubr.f32.gmra.mrb[0].mxu0 %v434
    %v436 = vpop.f32.mrb[0].mxu0
    %v437 = vadd.f32 %v158, %v436
    %v438 = vpop.f32.mrb[0].mxu0
    %439 = vdwg.mxu0
    %440 = vmatprep.subr.mxu0 0.0
    %v441 = vand.u32 %v152, 4294901760
    %v442 = vsub.f32 %v152, %v441
    %v443 = vand.u32 %v442, 4294901760
    %v444 = vsub.f32 %v442, %v443
    %v445 = vand.u32 %v444, 4294901760
    %446 = vmatpush1.msra.mxu0 %v445
    %447 = vmatprep.subr.mxu0 0.0
    %v448 = vand.u32 %v153, 4294901760
    %v449 = vsub.f32 %v153, %v448
    %v450 = vand.u32 %v449, 4294901760
    %v451 = vsub.f32 %v449, %v450
    %v452 = vand.u32 %v451, 4294901760
    %453 = vmatpush1.msra.mxu0 %v452
    %454 = vmatprep.subr.mxu0 0.0
    %v455 = vand.u32 %v210, 4294901760
    %v456 = vsub.f32 %v210, %v455
    %v457 = vand.u32 %v456, 4294901760
    %v458 = vsub.f32 %v456, %v457
    %v459 = vand.u32 %v458, 4294901760
    %460 = vmatpush1.msra.mxu0 %v459
    %461 = vmatprep.subr.mxu0 0.0
    %462 = vmatpush1.msra.mxu0 0.0
    %463 = vmatprep.subr.mxu0 0.0
    %464 = vmatpush1.msra.mxu0 0.0
    %465 = vmatprep.subr.mxu0 0.0
    %466 = vmatpush1.msra.mxu0 0.0
    %467 = vmatprep.subr.mxu0 0.0
    %468 = vmatpush1.msra.mxu0 0.0
    %469 = vmatprep.subr.mxu0 0.0
    %470 = vmatpush1.msra.mxu0 0.0
    %471 = vmatprep.subr.mxu0 0.0
    %472 = vmatpush1.msra.mxu0 0.0
    %473 = vmatprep.subr.mxu0 0.0
    %474 = vmatpush1.msra.mxu0 0.0
    %475 = vmatprep.subr.mxu0 0.0
    %476 = vmatpush1.msra.mxu0 0.0
    %477 = vmatprep.subr.mxu0 0.0
    %478 = vmatpush1.msra.mxu0 0.0
    %479 = vmatprep.subr.mxu0 0.0
    %480 = vmatpush1.msra.mxu0 0.0
    %481 = vmatprep.subr.mxu0 0.0
    %482 = vmatpush1.msra.mxu0 0.0
    %483 = vmatprep.subr.mxu0 0.0
    %484 = vmatpush1.msra.mxu0 0.0
    %485 = vmatprep.subr.mxu0 0.0
    %486 = vmatpush1.msra.mxu0 0.0
    %487 = vmatprep.subr.mxu0 0.0
    %488 = vmatpush1.msra.mxu0 0.0
    %489 = vmatprep.subr.mxu0 0.0
    %490 = vmatpush1.msra.mxu0 0.0
    %491 = vmatprep.subr.mxu0 0.0
    %492 = vmatpush1.msra.mxu0 0.0
    %493 = vmatprep.subr.mxu0 0.0
    %494 = vmatpush1.msra.mxu0 0.0
    %495 = vmatprep.subr.mxu0 0.0
    %496 = vmatpush1.msra.mxu0 0.0
    %497 = vmatprep.subr.mxu0 0.0
    %498 = vmatpush1.msra.mxu0 0.0
    %499 = vmatprep.subr.mxu0 0.0
    %500 = vmatpush1.msra.mxu0 0.0
    %501 = vmatprep.subr.mxu0 0.0
    %502 = vmatpush1.msra.mxu0 0.0
    %503 = vmatprep.subr.mxu0 0.0
    %504 = vmatpush1.msra.mxu0 0.0
    %505 = vmatprep.subr.mxu0 0.0
    %506 = vmatpush1.msra.mxu0 0.0
    %507 = vmatprep.subr.mxu0 0.0
    %508 = vmatpush1.msra.mxu0 0.0
    %509 = vmatprep.subr.mxu0 0.0
    %510 = vmatpush1.msra.mxu0 0.0
    %511 = vmatprep.subr.mxu0 0.0
    %512 = vmatpush1.msra.mxu0 0.0
    %513 = vmatprep.subr.mxu0 0.0
    %514 = vmatpush1.msra.mxu0 0.0
    %515 = vmatprep.subr.mxu0 0.0
    %516 = vmatpush1.msra.mxu0 0.0
    %517 = vmatprep.subr.mxu0 0.0
    %518 = vmatpush1.msra.mxu0 0.0
    %519 = vmatprep.mubr.f32.mxu0 0.0
    %v520 = vand.u32 %v161, 4294901760
    %521 = vmatmul.mubr.f32.gmra.mrb[0].mxu0 %v520
    %v522 = vpop.f32.mrb[0].mxu0
    %v523 = vadd.f32 %v287, %v522
    %v524 = vpop.f32.mrb[0].mxu0
    %525 = vmatprep.mubr.f32.mxu0 0.0
    %v526 = vand.u32 %v164, 4294901760
    %527 = vmatmul.mubr.f32.gmra.mrb[0].mxu0 %v526
    %v528 = vpop.f32.mrb[0].mxu0
    %v529 = vadd.f32 %v297, %v528
    %v530 = vpop.f32.mrb[0].mxu0
    %531 = vmatprep.mubr.f32.mxu0 0.0
    %v532 = vand.u32 %v167, 4294901760
    %533 = vmatmul.mubr.f32.gmra.mrb[0].mxu0 %v532
    %v534 = vpop.f32.mrb[0].mxu0
    %v535 = vadd.f32 %v307, %v534
    %v536 = vpop.f32.mrb[0].mxu0
    %537 = vmatprep.mubr.f32.mxu0 0.0
    %v538 = vand.u32 %v170, 4294901760
    %539 = vmatmul.mubr.f32.gmra.mrb[0].mxu0 %v538
    %v540 = vpop.f32.mrb[0].mxu0
    %v541 = vadd.f32 %v317, %v540
    %v542 = vpop.f32.mrb[0].mxu0
    %543 = vmatprep.mubr.f32.mxu0 0.0
    %v544 = vand.u32 %v173, 4294901760
    %545 = vmatmul.mubr.f32.gmra.mrb[0].mxu0 %v544
    %v546 = vpop.f32.mrb[0].mxu0
    %v547 = vadd.f32 %v327, %v546
    %v548 = vpop.f32.mrb[0].mxu0
    %549 = vmatprep.mubr.f32.mxu0 0.0
    %v550 = vand.u32 %v176, 4294901760
    %551 = vmatmul.mubr.f32.gmra.mrb[0].mxu0 %v550
    %v552 = vpop.f32.mrb[0].mxu0
    %v553 = vadd.f32 %v337, %v552
    %v554 = vpop.f32.mrb[0].mxu0
    %555 = vmatprep.mubr.f32.mxu0 0.0
    %v556 = vand.u32 %v179, 4294901760
    %557 = vmatmul.mubr.f32.gmra.mrb[0].mxu0 %v556
    %v558 = vpop.f32.mrb[0].mxu0
    %v559 = vadd.f32 %v347, %v558
    %v560 = vpop.f32.mrb[0].mxu0
    %561 = vmatprep.mubr.f32.mxu0 0.0
    %v562 = vand.u32 %v182, 4294901760
    %563 = vmatmul.mubr.f32.gmra.mrb[0].mxu0 %v562
    %v564 = vpop.f32.mrb[0].mxu0
    %v565 = vadd.f32 %v357, %v564
    %v566 = vpop.f32.mrb[0].mxu0
    %567 = vmatprep.mubr.f32.mxu0 0.0
    %v568 = vand.u32 %v185, 4294901760
    %569 = vmatmul.mubr.f32.gmra.mrb[0].mxu0 %v568
    %v570 = vpop.f32.mrb[0].mxu0
    %v571 = vadd.f32 %v367, %v570
    %v572 = vpop.f32.mrb[0].mxu0
    %573 = vmatprep.mubr.f32.mxu0 0.0
    %v574 = vand.u32 %v188, 4294901760
    %575 = vmatmul.mubr.f32.gmra.mrb[0].mxu0 %v574
    %v576 = vpop.f32.mrb[0].mxu0
    %v577 = vadd.f32 %v377, %v576
    %v578 = vpop.f32.mrb[0].mxu0
    %579 = vmatprep.mubr.f32.mxu0 0.0
    %v580 = vand.u32 %v191, 4294901760
    %581 = vmatmul.mubr.f32.gmra.mrb[0].mxu0 %v580
    %v582 = vpop.f32.mrb[0].mxu0
    %v583 = vadd.f32 %v387, %v582
    %v584 = vpop.f32.mrb[0].mxu0
    %585 = vmatprep.mubr.f32.mxu0 0.0
    %v586 = vand.u32 %v194, 4294901760
    %587 = vmatmul.mubr.f32.gmra.mrb[0].mxu0 %v586
    %v588 = vpop.f32.mrb[0].mxu0
    %v589 = vadd.f32 %v397, %v588
    %v590 = vpop.f32.mrb[0].mxu0
    %591 = vmatprep.mubr.f32.mxu0 0.0
    %v592 = vand.u32 %v197, 4294901760
    %593 = vmatmul.mubr.f32.gmra.mrb[0].mxu0 %v592
    %v594 = vpop.f32.mrb[0].mxu0
    %v595 = vadd.f32 %v407, %v594
    %v596 = vpop.f32.mrb[0].mxu0
    %597 = vmatprep.mubr.f32.mxu0 0.0
    %v598 = vand.u32 %v200, 4294901760
    %599 = vmatmul.mubr.f32.gmra.mrb[0].mxu0 %v598
    %v600 = vpop.f32.mrb[0].mxu0
    %v601 = vadd.f32 %v417, %v600
    %v602 = vpop.f32.mrb[0].mxu0
    %603 = vmatprep.mubr.f32.mxu0 0.0
    %v604 = vand.u32 %v203, 4294901760
    %605 = vmatmul.mubr.f32.gmra.mrb[0].mxu0 %v604
    %v606 = vpop.f32.mrb[0].mxu0
    %v607 = vadd.f32 %v427, %v606
    %v608 = vpop.f32.mrb[0].mxu0
    %609 = vmatprep.mubr.f32.mxu0 0.0
    %v610 = vand.u32 %v206, 4294901760
    %611 = vmatmul.mubr.f32.gmra.mrb[0].mxu0 %v610
    %v612 = vpop.f32.mrb[0].mxu0
    %v613 = vadd.f32 %v437, %v612
    %v614 = vpop.f32.mrb[0].mxu0
    %615 = vdwg.mxu0
    %616 = vmatprep.subr.mxu0 0.0
    %v617 = vand.u32 %v152, 4294901760
    %v618 = vsub.f32 %v152, %v617
    %619 = vmatpush1.msra.mxu0 %v618
    %620 = vmatprep.subr.mxu0 0.0
    %v621 = vand.u32 %v153, 4294901760
    %v622 = vsub.f32 %v153, %v621
    %623 = vmatpush1.msra.mxu0 %v622
    %624 = vmatprep.subr.mxu0 0.0
    %v625 = vand.u32 %v210, 4294901760
    %v626 = vsub.f32 %v210, %v625
    %627 = vmatpush1.msra.mxu0 %v626
    %628 = vmatprep.subr.mxu0 0.0
    %629 = vmatpush1.msra.mxu0 0.0
    %630 = vmatprep.subr.mxu0 0.0
    %631 = vmatpush1.msra.mxu0 0.0
    %632 = vmatprep.subr.mxu0 0.0
    %633 = vmatpush1.msra.mxu0 0.0
    %634 = vmatprep.subr.mxu0 0.0
    %635 = vmatpush1.msra.mxu0 0.0
    %636 = vmatprep.subr.mxu0 0.0
    %637 = vmatpush1.msra.mxu0 0.0
    %638 = vmatprep.subr.mxu0 0.0
    %639 = vmatpush1.msra.mxu0 0.0
    %640 = vmatprep.subr.mxu0 0.0
    %641 = vmatpush1.msra.mxu0 0.0
    %642 = vmatprep.subr.mxu0 0.0
    %643 = vmatpush1.msra.mxu0 0.0
    %644 = vmatprep.subr.mxu0 0.0
    %645 = vmatpush1.msra.mxu0 0.0
    %646 = vmatprep.subr.mxu0 0.0
    %647 = vmatpush1.msra.mxu0 0.0
    %648 = vmatprep.subr.mxu0 0.0
    %649 = vmatpush1.msra.mxu0 0.0
    %650 = vmatprep.subr.mxu0 0.0
    %651 = vmatpush1.msra.mxu0 0.0
    %652 = vmatprep.subr.mxu0 0.0
    %653 = vmatpush1.msra.mxu0 0.0
    %654 = vmatprep.subr.mxu0 0.0
    %655 = vmatpush1.msra.mxu0 0.0
    %656 = vmatprep.subr.mxu0 0.0
    %657 = vmatpush1.msra.mxu0 0.0
    %658 = vmatprep.subr.mxu0 0.0
    %659 = vmatpush1.msra.mxu0 0.0
    %660 = vmatprep.subr.mxu0 0.0
    %661 = vmatpush1.msra.mxu0 0.0
    %662 = vmatprep.subr.mxu0 0.0
    %663 = vmatpush1.msra.mxu0 0.0
    %664 = vmatprep.subr.mxu0 0.0
    %665 = vmatpush1.msra.mxu0 0.0
    %666 = vmatprep.subr.mxu0 0.0
    %667 = vmatpush1.msra.mxu0 0.0
    %668 = vmatprep.subr.mxu0 0.0
    %669 = vmatpush1.msra.mxu0 0.0
    %670 = vmatprep.subr.mxu0 0.0
    %671 = vmatpush1.msra.mxu0 0.0
    %672 = vmatprep.subr.mxu0 0.0
    %673 = vmatpush1.msra.mxu0 0.0
    %674 = vmatprep.subr.mxu0 0.0
    %675 = vmatpush1.msra.mxu0 0.0
    %676 = vmatprep.subr.mxu0 0.0
    %677 = vmatpush1.msra.mxu0 0.0
    %678 = vmatprep.subr.mxu0 0.0
    %679 = vmatpush1.msra.mxu0 0.0
    %680 = vmatprep.subr.mxu0 0.0
    %681 = vmatpush1.msra.mxu0 0.0
    %682 = vmatprep.subr.mxu0 0.0
    %683 = vmatpush1.msra.mxu0 0.0
    %684 = vmatprep.subr.mxu0 0.0
    %685 = vmatpush1.msra.mxu0 0.0
    %686 = vmatprep.mubr.f32.mxu0 0.0
    %v687 = vand.u32 %v161, 4294901760
    %v688 = vsub.f32 %v161, %v687
    %689 = vmatmul.mubr.f32.gmra.mrb[0].mxu0 %v688
    %v690 = vpop.f32.mrb[0].mxu0
    %v691 = vadd.f32 %v523, %v690
    %v692 = vpop.f32.mrb[0].mxu0
    %693 = vmatprep.mubr.f32.mxu0 0.0
    %v694 = vand.u32 %v164, 4294901760
    %v695 = vsub.f32 %v164, %v694
    %696 = vmatmul.mubr.f32.gmra.mrb[0].mxu0 %v695
    %v697 = vpop.f32.mrb[0].mxu0
    %v698 = vadd.f32 %v529, %v697
    %v699 = vpop.f32.mrb[0].mxu0
    %700 = vmatprep.mubr.f32.mxu0 0.0
    %v701 = vand.u32 %v167, 4294901760
    %v702 = vsub.f32 %v167, %v701
    %703 = vmatmul.mubr.f32.gmra.mrb[0].mxu0 %v702
    %v704 = vpop.f32.mrb[0].mxu0
    %v705 = vadd.f32 %v535, %v704
    %v706 = vpop.f32.mrb[0].mxu0
    %707 = vmatprep.mubr.f32.mxu0 0.0
    %v708 = vand.u32 %v170, 4294901760
    %v709 = vsub.f32 %v170, %v708
    %710 = vmatmul.mubr.f32.gmra.mrb[0].mxu0 %v709
    %v711 = vpop.f32.mrb[0].mxu0
    %v712 = vadd.f32 %v541, %v711
    %v713 = vpop.f32.mrb[0].mxu0
    %714 = vmatprep.mubr.f32.mxu0 0.0
    %v715 = vand.u32 %v173, 4294901760
    %v716 = vsub.f32 %v173, %v715
    %717 = vmatmul.mubr.f32.gmra.mrb[0].mxu0 %v716
    %v718 = vpop.f32.mrb[0].mxu0
    %v719 = vadd.f32 %v547, %v718
    %v720 = vpop.f32.mrb[0].mxu0
    %721 = vmatprep.mubr.f32.mxu0 0.0
    %v722 = vand.u32 %v176, 4294901760
    %v723 = vsub.f32 %v176, %v722
    %724 = vmatmul.mubr.f32.gmra.mrb[0].mxu0 %v723
    %v725 = vpop.f32.mrb[0].mxu0
    %v726 = vadd.f32 %v553, %v725
    %v727 = vpop.f32.mrb[0].mxu0
    %728 = vmatprep.mubr.f32.mxu0 0.0
    %v729 = vand.u32 %v179, 4294901760
    %v730 = vsub.f32 %v179, %v729
    %731 = vmatmul.mubr.f32.gmra.mrb[0].mxu0 %v730
    %v732 = vpop.f32.mrb[0].mxu0
    %v733 = vadd.f32 %v559, %v732
    %v734 = vpop.f32.mrb[0].mxu0
    %735 = vmatprep.mubr.f32.mxu0 0.0
    %v736 = vand.u32 %v182, 4294901760
    %v737 = vsub.f32 %v182, %v736
    %738 = vmatmul.mubr.f32.gmra.mrb[0].mxu0 %v737
    %v739 = vpop.f32.mrb[0].mxu0
    %v740 = vadd.f32 %v565, %v739
    %v741 = vpop.f32.mrb[0].mxu0
    %742 = vmatprep.mubr.f32.mxu0 0.0
    %v743 = vand.u32 %v185, 4294901760
    %v744 = vsub.f32 %v185, %v743
    %745 = vmatmul.mubr.f32.gmra.mrb[0].mxu0 %v744
    %v746 = vpop.f32.mrb[0].mxu0
    %v747 = vadd.f32 %v571, %v746
    %v748 = vpop.f32.mrb[0].mxu0
    %749 = vmatprep.mubr.f32.mxu0 0.0
    %v750 = vand.u32 %v188, 4294901760
    %v751 = vsub.f32 %v188, %v750
    %752 = vmatmul.mubr.f32.gmra.mrb[0].mxu0 %v751
    %v753 = vpop.f32.mrb[0].mxu0
    %v754 = vadd.f32 %v577, %v753
    %v755 = vpop.f32.mrb[0].mxu0
    %756 = vmatprep.mubr.f32.mxu0 0.0
    %v757 = vand.u32 %v191, 4294901760
    %v758 = vsub.f32 %v191, %v757
    %759 = vmatmul.mubr.f32.gmra.mrb[0].mxu0 %v758
    %v760 = vpop.f32.mrb[0].mxu0
    %v761 = vadd.f32 %v583, %v760
    %v762 = vpop.f32.mrb[0].mxu0
    %763 = vmatprep.mubr.f32.mxu0 0.0
    %v764 = vand.u32 %v194, 4294901760
    %v765 = vsub.f32 %v194, %v764
    %766 = vmatmul.mubr.f32.gmra.mrb[0].mxu0 %v765
    %v767 = vpop.f32.mrb[0].mxu0
    %v768 = vadd.f32 %v589, %v767
    %v769 = vpop.f32.mrb[0].mxu0
    %770 = vmatprep.mubr.f32.mxu0 0.0
    %v771 = vand.u32 %v197, 4294901760
    %v772 = vsub.f32 %v197, %v771
    %773 = vmatmul.mubr.f32.gmra.mrb[0].mxu0 %v772
    %v774 = vpop.f32.mrb[0].mxu0
    %v775 = vadd.f32 %v595, %v774
    %v776 = vpop.f32.mrb[0].mxu0
    %777 = vmatprep.mubr.f32.mxu0 0.0
    %v778 = vand.u32 %v200, 4294901760
    %v779 = vsub.f32 %v200, %v778
    %780 = vmatmul.mubr.f32.gmra.mrb[0].mxu0 %v779
    %v781 = vpop.f32.mrb[0].mxu0
    %v782 = vadd.f32 %v601, %v781
    %v783 = vpop.f32.mrb[0].mxu0
    %784 = vmatprep.mubr.f32.mxu0 0.0
    %v785 = vand.u32 %v203, 4294901760
    %v786 = vsub.f32 %v203, %v785
    %787 = vmatmul.mubr.f32.gmra.mrb[0].mxu0 %v786
    %v788 = vpop.f32.mrb[0].mxu0
    %v789 = vadd.f32 %v607, %v788
    %v790 = vpop.f32.mrb[0].mxu0
    %791 = vmatprep.mubr.f32.mxu0 0.0
    %v792 = vand.u32 %v206, 4294901760
    %v793 = vsub.f32 %v206, %v792
    %794 = vmatmul.mubr.f32.gmra.mrb[0].mxu0 %v793
    %v795 = vpop.f32.mrb[0].mxu0
    %v796 = vadd.f32 %v613, %v795
    %v797 = vpop.f32.mrb[0].mxu0
    %798 = vdwg.mxu0
    %799 = vmatprep.subr.mxu0 0.0
    %v800 = vand.u32 %v152, 4294901760
    %801 = vmatpush1.msra.mxu0 %v800
    %802 = vmatprep.subr.mxu0 0.0
    %v803 = vand.u32 %v153, 4294901760
    %804 = vmatpush1.msra.mxu0 %v803
    %805 = vmatprep.subr.mxu0 0.0
    %v806 = vand.u32 %v210, 4294901760
    %807 = vmatpush1.msra.mxu0 %v806
    %808 = vmatprep.subr.mxu0 0.0
    %809 = vmatpush1.msra.mxu0 0.0
    %810 = vmatprep.subr.mxu0 0.0
    %811 = vmatpush1.msra.mxu0 0.0
    %812 = vmatprep.subr.mxu0 0.0
    %813 = vmatpush1.msra.mxu0 0.0
    %814 = vmatprep.subr.mxu0 0.0
    %815 = vmatpush1.msra.mxu0 0.0
    %816 = vmatprep.subr.mxu0 0.0
    %817 = vmatpush1.msra.mxu0 0.0
    %818 = vmatprep.subr.mxu0 0.0
    %819 = vmatpush1.msra.mxu0 0.0
    %820 = vmatprep.subr.mxu0 0.0
    %821 = vmatpush1.msra.mxu0 0.0
    %822 = vmatprep.subr.mxu0 0.0
    %823 = vmatpush1.msra.mxu0 0.0
    %824 = vmatprep.subr.mxu0 0.0
    %825 = vmatpush1.msra.mxu0 0.0
    %826 = vmatprep.subr.mxu0 0.0
    %827 = vmatpush1.msra.mxu0 0.0
    %828 = vmatprep.subr.mxu0 0.0
    %829 = vmatpush1.msra.mxu0 0.0
    %830 = vmatprep.subr.mxu0 0.0
    %831 = vmatpush1.msra.mxu0 0.0
    %832 = vmatprep.subr.mxu0 0.0
    %833 = vmatpush1.msra.mxu0 0.0
    %834 = vmatprep.subr.mxu0 0.0
    %835 = vmatpush1.msra.mxu0 0.0
    %836 = vmatprep.subr.mxu0 0.0
    %837 = vmatpush1.msra.mxu0 0.0
    %838 = vmatprep.subr.mxu0 0.0
    %839 = vmatpush1.msra.mxu0 0.0
    %840 = vmatprep.subr.mxu0 0.0
    %841 = vmatpush1.msra.mxu0 0.0
    %842 = vmatprep.subr.mxu0 0.0
    %843 = vmatpush1.msra.mxu0 0.0
    %844 = vmatprep.subr.mxu0 0.0
    %845 = vmatpush1.msra.mxu0 0.0
    %846 = vmatprep.subr.mxu0 0.0
    %847 = vmatpush1.msra.mxu0 0.0
    %848 = vmatprep.subr.mxu0 0.0
    %849 = vmatpush1.msra.mxu0 0.0
    %850 = vmatprep.subr.mxu0 0.0
    %851 = vmatpush1.msra.mxu0 0.0
    %852 = vmatprep.subr.mxu0 0.0
    %853 = vmatpush1.msra.mxu0 0.0
    %854 = vmatprep.subr.mxu0 0.0
    %855 = vmatpush1.msra.mxu0 0.0
    %856 = vmatprep.subr.mxu0 0.0
    %857 = vmatpush1.msra.mxu0 0.0
    %858 = vmatprep.subr.mxu0 0.0
    %859 = vmatpush1.msra.mxu0 0.0
    %860 = vmatprep.subr.mxu0 0.0
    %861 = vmatpush1.msra.mxu0 0.0
    %862 = vmatprep.subr.mxu0 0.0
    %863 = vmatpush1.msra.mxu0 0.0
    %864 = vmatprep.subr.mxu0 0.0
    %865 = vmatpush1.msra.mxu0 0.0
    %866 = vmatprep.mubr.f32.mxu0 0.0
    %v867 = vand.u32 %v161, 4294901760
    %v868 = vsub.f32 %v161, %v867
    %v869 = vand.u32 %v868, 4294901760
    %870 = vmatmul.mubr.f32.gmra.mrb[0].mxu0 %v869
    %v871 = vpop.f32.mrb[0].mxu0
    %v872 = vadd.f32 %v691, %v871
    %v873 = vpop.f32.mrb[0].mxu0
    %874 = vmatprep.mubr.f32.mxu0 0.0
    %v875 = vand.u32 %v164, 4294901760
    %v876 = vsub.f32 %v164, %v875
    %v877 = vand.u32 %v876, 4294901760
    %878 = vmatmul.mubr.f32.gmra.mrb[0].mxu0 %v877
    %v879 = vpop.f32.mrb[0].mxu0
    %v880 = vadd.f32 %v698, %v879
    %v881 = vpop.f32.mrb[0].mxu0
    %882 = vmatprep.mubr.f32.mxu0 0.0
    %v883 = vand.u32 %v167, 4294901760
    %v884 = vsub.f32 %v167, %v883
    %v885 = vand.u32 %v884, 4294901760
    %886 = vmatmul.mubr.f32.gmra.mrb[0].mxu0 %v885
    %v887 = vpop.f32.mrb[0].mxu0
    %v888 = vadd.f32 %v705, %v887
    %v889 = vpop.f32.mrb[0].mxu0
    %890 = vmatprep.mubr.f32.mxu0 0.0
    %v891 = vand.u32 %v170, 4294901760
    %v892 = vsub.f32 %v170, %v891
    %v893 = vand.u32 %v892, 4294901760
    %894 = vmatmul.mubr.f32.gmra.mrb[0].mxu0 %v893
    %v895 = vpop.f32.mrb[0].mxu0
    %v896 = vadd.f32 %v712, %v895
    %v897 = vpop.f32.mrb[0].mxu0
    %898 = vmatprep.mubr.f32.mxu0 0.0
    %v899 = vand.u32 %v173, 4294901760
    %v900 = vsub.f32 %v173, %v899
    %v901 = vand.u32 %v900, 4294901760
    %902 = vmatmul.mubr.f32.gmra.mrb[0].mxu0 %v901
    %v903 = vpop.f32.mrb[0].mxu0
    %v904 = vadd.f32 %v719, %v903
    %v905 = vpop.f32.mrb[0].mxu0
    %906 = vmatprep.mubr.f32.mxu0 0.0
    %v907 = vand.u32 %v176, 4294901760
    %v908 = vsub.f32 %v176, %v907
    %v909 = vand.u32 %v908, 4294901760
    %910 = vmatmul.mubr.f32.gmra.mrb[0].mxu0 %v909
    %v911 = vpop.f32.mrb[0].mxu0
    %v912 = vadd.f32 %v726, %v911
    %v913 = vpop.f32.mrb[0].mxu0
    %914 = vmatprep.mubr.f32.mxu0 0.0
    %v915 = vand.u32 %v179, 4294901760
    %v916 = vsub.f32 %v179, %v915
    %v917 = vand.u32 %v916, 4294901760
    %918 = vmatmul.mubr.f32.gmra.mrb[0].mxu0 %v917
    %v919 = vpop.f32.mrb[0].mxu0
    %v920 = vadd.f32 %v733, %v919
    %v921 = vpop.f32.mrb[0].mxu0
    %922 = vmatprep.mubr.f32.mxu0 0.0
    %v923 = vand.u32 %v182, 4294901760
    %v924 = vsub.f32 %v182, %v923
    %v925 = vand.u32 %v924, 4294901760
    %926 = vmatmul.mubr.f32.gmra.mrb[0].mxu0 %v925
    %v927 = vpop.f32.mrb[0].mxu0
    %v928 = vadd.f32 %v740, %v927
    %v929 = vpop.f32.mrb[0].mxu0
    %930 = vmatprep.mubr.f32.mxu0 0.0
    %v931 = vand.u32 %v185, 4294901760
    %v932 = vsub.f32 %v185, %v931
    %v933 = vand.u32 %v932, 4294901760
    %934 = vmatmul.mubr.f32.gmra.mrb[0].mxu0 %v933
    %v935 = vpop.f32.mrb[0].mxu0
    %v936 = vadd.f32 %v747, %v935
    %v937 = vpop.f32.mrb[0].mxu0
    %938 = vmatprep.mubr.f32.mxu0 0.0
    %v939 = vand.u32 %v188, 4294901760
    %v940 = vsub.f32 %v188, %v939
    %v941 = vand.u32 %v940, 4294901760
    %942 = vmatmul.mubr.f32.gmra.mrb[0].mxu0 %v941
    %v943 = vpop.f32.mrb[0].mxu0
    %v944 = vadd.f32 %v754, %v943
    %v945 = vpop.f32.mrb[0].mxu0
    %946 = vmatprep.mubr.f32.mxu0 0.0
    %v947 = vand.u32 %v191, 4294901760
    %v948 = vsub.f32 %v191, %v947
    %v949 = vand.u32 %v948, 4294901760
    %950 = vmatmul.mubr.f32.gmra.mrb[0].mxu0 %v949
    %v951 = vpop.f32.mrb[0].mxu0
    %v952 = vadd.f32 %v761, %v951
    %v953 = vpop.f32.mrb[0].mxu0
    %954 = vmatprep.mubr.f32.mxu0 0.0
    %v955 = vand.u32 %v194, 4294901760
    %v956 = vsub.f32 %v194, %v955
    %v957 = vand.u32 %v956, 4294901760
    %958 = vmatmul.mubr.f32.gmra.mrb[0].mxu0 %v957
    %v959 = vpop.f32.mrb[0].mxu0
    %v960 = vadd.f32 %v768, %v959
    %v961 = vpop.f32.mrb[0].mxu0
    %962 = vmatprep.mubr.f32.mxu0 0.0
    %v963 = vand.u32 %v197, 4294901760
    %v964 = vsub.f32 %v197, %v963
    %v965 = vand.u32 %v964, 4294901760
    %966 = vmatmul.mubr.f32.gmra.mrb[0].mxu0 %v965
    %v967 = vpop.f32.mrb[0].mxu0
    %v968 = vadd.f32 %v775, %v967
    %v969 = vpop.f32.mrb[0].mxu0
    %970 = vmatprep.mubr.f32.mxu0 0.0
    %v971 = vand.u32 %v200, 4294901760
    %v972 = vsub.f32 %v200, %v971
    %v973 = vand.u32 %v972, 4294901760
    %974 = vmatmul.mubr.f32.gmra.mrb[0].mxu0 %v973
    %v975 = vpop.f32.mrb[0].mxu0
    %v976 = vadd.f32 %v782, %v975
    %v977 = vpop.f32.mrb[0].mxu0
    %978 = vmatprep.mubr.f32.mxu0 0.0
    %v979 = vand.u32 %v203, 4294901760
    %v980 = vsub.f32 %v203, %v979
    %v981 = vand.u32 %v980, 4294901760
    %982 = vmatmul.mubr.f32.gmra.mrb[0].mxu0 %v981
    %v983 = vpop.f32.mrb[0].mxu0
    %v984 = vadd.f32 %v789, %v983
    %v985 = vpop.f32.mrb[0].mxu0
    %986 = vmatprep.mubr.f32.mxu0 0.0
    %v987 = vand.u32 %v206, 4294901760
    %v988 = vsub.f32 %v206, %v987
    %v989 = vand.u32 %v988, 4294901760
    %990 = vmatmul.mubr.f32.gmra.mrb[0].mxu0 %v989
    %v991 = vpop.f32.mrb[0].mxu0
    %v992 = vadd.f32 %v796, %v991
    %v993 = vpop.f32.mrb[0].mxu0
    %994 = vdwg.mxu0
    %995 = vmatprep.subr.mxu0 0.0
    %v996 = vand.u32 %v152, 4294901760
    %v997 = vsub.f32 %v152, %v996
    %v998 = vand.u32 %v997, 4294901760
    %999 = vmatpush1.msra.mxu0 %v998
    %1000 = vmatprep.subr.mxu0 0.0
    %v1001 = vand.u32 %v153, 4294901760
    %v1002 = vsub.f32 %v153, %v1001
    %v1003 = vand.u32 %v1002, 4294901760
    %1004 = vmatpush1.msra.mxu0 %v1003
    %1005 = vmatprep.subr.mxu0 0.0
    %v1006 = vand.u32 %v210, 4294901760
    %v1007 = vsub.f32 %v210, %v1006
    %v1008 = vand.u32 %v1007, 4294901760
    %1009 = vmatpush1.msra.mxu0 %v1008
    %1010 = vmatprep.subr.mxu0 0.0
    %1011 = vmatpush1.msra.mxu0 0.0
    %1012 = vmatprep.subr.mxu0 0.0
    %1013 = vmatpush1.msra.mxu0 0.0
    %1014 = vmatprep.subr.mxu0 0.0
    %1015 = vmatpush1.msra.mxu0 0.0
    %1016 = vmatprep.subr.mxu0 0.0
    %1017 = vmatpush1.msra.mxu0 0.0
    %1018 = vmatprep.subr.mxu0 0.0
    %1019 = vmatpush1.msra.mxu0 0.0
    %1020 = vmatprep.subr.mxu0 0.0
    %1021 = vmatpush1.msra.mxu0 0.0
    %1022 = vmatprep.subr.mxu0 0.0
    %1023 = vmatpush1.msra.mxu0 0.0
    %1024 = vmatprep.subr.mxu0 0.0
    %1025 = vmatpush1.msra.mxu0 0.0
    %1026 = vmatprep.subr.mxu0 0.0
    %1027 = vmatpush1.msra.mxu0 0.0
    %1028 = vmatprep.subr.mxu0 0.0
    %1029 = vmatpush1.msra.mxu0 0.0
    %1030 = vmatprep.subr.mxu0 0.0
    %1031 = vmatpush1.msra.mxu0 0.0
    %1032 = vmatprep.subr.mxu0 0.0
    %1033 = vmatpush1.msra.mxu0 0.0
    %1034 = vmatprep.subr.mxu0 0.0
    %1035 = vmatpush1.msra.mxu0 0.0
    %1036 = vmatprep.subr.mxu0 0.0
    %1037 = vmatpush1.msra.mxu0 0.0
    %1038 = vmatprep.subr.mxu0 0.0
    %1039 = vmatpush1.msra.mxu0 0.0
    %1040 = vmatprep.subr.mxu0 0.0
    %1041 = vmatpush1.msra.mxu0 0.0
    %1042 = vmatprep.subr.mxu0 0.0
    %1043 = vmatpush1.msra.mxu0 0.0
    %1044 = vmatprep.subr.mxu0 0.0
    %1045 = vmatpush1.msra.mxu0 0.0
    %1046 = vmatprep.subr.mxu0 0.0
    %1047 = vmatpush1.msra.mxu0 0.0
    %1048 = vmatprep.subr.mxu0 0.0
    %1049 = vmatpush1.msra.mxu0 0.0
    %1050 = vmatprep.subr.mxu0 0.0
    %1051 = vmatpush1.msra.mxu0 0.0
    %1052 = vmatprep.subr.mxu0 0.0
    %1053 = vmatpush1.msra.mxu0 0.0
    %1054 = vmatprep.subr.mxu0 0.0
    %1055 = vmatpush1.msra.mxu0 0.0
    %1056 = vmatprep.subr.mxu0 0.0
    %1057 = vmatpush1.msra.mxu0 0.0
    %1058 = vmatprep.subr.mxu0 0.0
    %1059 = vmatpush1.msra.mxu0 0.0
    %1060 = vmatprep.subr.mxu0 0.0
    %1061 = vmatpush1.msra.mxu0 0.0
    %1062 = vmatprep.subr.mxu0 0.0
    %1063 = vmatpush1.msra.mxu0 0.0
    %1064 = vmatprep.subr.mxu0 0.0
    %1065 = vmatpush1.msra.mxu0 0.0
    %1066 = vmatprep.subr.mxu0 0.0
    %1067 = vmatpush1.msra.mxu0 0.0
    %1068 = vmatprep.mubr.f32.mxu0 0.0
    %v1069 = vand.u32 %v161, 4294901760
    %1070 = vmatmul.mubr.f32.gmra.mrb[0].mxu0 %v1069
    %v1071 = vpop.f32.mrb[0].mxu0
    %v1072 = vadd.f32 %v872, %v1071
    %v1073 = vpop.f32.mrb[0].mxu0
    %1074 = vmatprep.mubr.f32.mxu0 0.0
    %v1075 = vand.u32 %v164, 4294901760
    %1076 = vmatmul.mubr.f32.gmra.mrb[0].mxu0 %v1075
    %v1077 = vpop.f32.mrb[0].mxu0
    %v1078 = vadd.f32 %v880, %v1077
    %v1079 = vpop.f32.mrb[0].mxu0
    %1080 = vmatprep.mubr.f32.mxu0 0.0
    %v1081 = vand.u32 %v167, 4294901760
    %1082 = vmatmul.mubr.f32.gmra.mrb[0].mxu0 %v1081
    %v1083 = vpop.f32.mrb[0].mxu0
    %v1084 = vadd.f32 %v888, %v1083
    %v1085 = vpop.f32.mrb[0].mxu0
    %1086 = vmatprep.mubr.f32.mxu0 0.0
    %v1087 = vand.u32 %v170, 4294901760
    %1088 = vmatmul.mubr.f32.gmra.mrb[0].mxu0 %v1087
    %v1089 = vpop.f32.mrb[0].mxu0
    %v1090 = vadd.f32 %v896, %v1089
    %v1091 = vpop.f32.mrb[0].mxu0
    %1092 = vmatprep.mubr.f32.mxu0 0.0
    %v1093 = vand.u32 %v173, 4294901760
    %1094 = vmatmul.mubr.f32.gmra.mrb[0].mxu0 %v1093
    %v1095 = vpop.f32.mrb[0].mxu0
    %v1096 = vadd.f32 %v904, %v1095
    %v1097 = vpop.f32.mrb[0].mxu0
    %1098 = vmatprep.mubr.f32.mxu0 0.0
    %v1099 = vand.u32 %v176, 4294901760
    %1100 = vmatmul.mubr.f32.gmra.mrb[0].mxu0 %v1099
    %v1101 = vpop.f32.mrb[0].mxu0
    %v1102 = vadd.f32 %v912, %v1101
    %v1103 = vpop.f32.mrb[0].mxu0
    %1104 = vmatprep.mubr.f32.mxu0 0.0
    %v1105 = vand.u32 %v179, 4294901760
    %1106 = vmatmul.mubr.f32.gmra.mrb[0].mxu0 %v1105
    %v1107 = vpop.f32.mrb[0].mxu0
    %v1108 = vadd.f32 %v920, %v1107
    %v1109 = vpop.f32.mrb[0].mxu0
    %1110 = vmatprep.mubr.f32.mxu0 0.0
    %v1111 = vand.u32 %v182, 4294901760
    %1112 = vmatmul.mubr.f32.gmra.mrb[0].mxu0 %v1111
    %v1113 = vpop.f32.mrb[0].mxu0
    %v1114 = vadd.f32 %v928, %v1113
    %v1115 = vpop.f32.mrb[0].mxu0
    %1116 = vmatprep.mubr.f32.mxu0 0.0
    %v1117 = vand.u32 %v185, 4294901760
    %1118 = vmatmul.mubr.f32.gmra.mrb[0].mxu0 %v1117
    %v1119 = vpop.f32.mrb[0].mxu0
    %v1120 = vadd.f32 %v936, %v1119
    %v1121 = vpop.f32.mrb[0].mxu0
    %1122 = vmatprep.mubr.f32.mxu0 0.0
    %v1123 = vand.u32 %v188, 4294901760
    %1124 = vmatmul.mubr.f32.gmra.mrb[0].mxu0 %v1123
    %v1125 = vpop.f32.mrb[0].mxu0
    %v1126 = vadd.f32 %v944, %v1125
    %v1127 = vpop.f32.mrb[0].mxu0
    %1128 = vmatprep.mubr.f32.mxu0 0.0
    %v1129 = vand.u32 %v191, 4294901760
    %1130 = vmatmul.mubr.f32.gmra.mrb[0].mxu0 %v1129
    %v1131 = vpop.f32.mrb[0].mxu0
    %v1132 = vadd.f32 %v952, %v1131
    %v1133 = vpop.f32.mrb[0].mxu0
    %1134 = vmatprep.mubr.f32.mxu0 0.0
    %v1135 = vand.u32 %v194, 4294901760
    %1136 = vmatmul.mubr.f32.gmra.mrb[0].mxu0 %v1135
    %v1137 = vpop.f32.mrb[0].mxu0
    %v1138 = vadd.f32 %v960, %v1137
    %v1139 = vpop.f32.mrb[0].mxu0
    %1140 = vmatprep.mubr.f32.mxu0 0.0
    %v1141 = vand.u32 %v197, 4294901760
    %1142 = vmatmul.mubr.f32.gmra.mrb[0].mxu0 %v1141
    %v1143 = vpop.f32.mrb[0].mxu0
    %v1144 = vadd.f32 %v968, %v1143
    %v1145 = vpop.f32.mrb[0].mxu0
    %1146 = vmatprep.mubr.f32.mxu0 0.0
    %v1147 = vand.u32 %v200, 4294901760
    %1148 = vmatmul.mubr.f32.gmra.mrb[0].mxu0 %v1147
    %v1149 = vpop.f32.mrb[0].mxu0
    %v1150 = vadd.f32 %v976, %v1149
    %v1151 = vpop.f32.mrb[0].mxu0
    %1152 = vmatprep.mubr.f32.mxu0 0.0
    %v1153 = vand.u32 %v203, 4294901760
    %1154 = vmatmul.mubr.f32.gmra.mrb[0].mxu0 %v1153
    %v1155 = vpop.f32.mrb[0].mxu0
    %v1156 = vadd.f32 %v984, %v1155
    %v1157 = vpop.f32.mrb[0].mxu0
    %1158 = vmatprep.mubr.f32.mxu0 0.0
    %v1159 = vand.u32 %v206, 4294901760
    %1160 = vmatmul.mubr.f32.gmra.mrb[0].mxu0 %v1159
    %v1161 = vpop.f32.mrb[0].mxu0
    %v1162 = vadd.f32 %v992, %v1161
    %v1163 = vpop.f32.mrb[0].mxu0
    %1164 = vdwg.mxu0
    %1165 = vmatprep.subr.mxu0 0.0
    %v1166 = vand.u32 %v152, 4294901760
    %1167 = vmatpush1.msra.mxu0 %v1166
    %1168 = vmatprep.subr.mxu0 0.0
    %v1169 = vand.u32 %v153, 4294901760
    %1170 = vmatpush1.msra.mxu0 %v1169
    %1171 = vmatprep.subr.mxu0 0.0
    %v1172 = vand.u32 %v210, 4294901760
    %1173 = vmatpush1.msra.mxu0 %v1172
    %1174 = vmatprep.subr.mxu0 0.0
    %1175 = vmatpush1.msra.mxu0 0.0
    %1176 = vmatprep.subr.mxu0 0.0
    %1177 = vmatpush1.msra.mxu0 0.0
    %1178 = vmatprep.subr.mxu0 0.0
    %1179 = vmatpush1.msra.mxu0 0.0
    %1180 = vmatprep.subr.mxu0 0.0
    %1181 = vmatpush1.msra.mxu0 0.0
    %1182 = vmatprep.subr.mxu0 0.0
    %1183 = vmatpush1.msra.mxu0 0.0
    %1184 = vmatprep.subr.mxu0 0.0
    %1185 = vmatpush1.msra.mxu0 0.0
    %1186 = vmatprep.subr.mxu0 0.0
    %1187 = vmatpush1.msra.mxu0 0.0
    %1188 = vmatprep.subr.mxu0 0.0
    %1189 = vmatpush1.msra.mxu0 0.0
    %1190 = vmatprep.subr.mxu0 0.0
    %1191 = vmatpush1.msra.mxu0 0.0
    %1192 = vmatprep.subr.mxu0 0.0
    %1193 = vmatpush1.msra.mxu0 0.0
    %1194 = vmatprep.subr.mxu0 0.0
    %1195 = vmatpush1.msra.mxu0 0.0
    %1196 = vmatprep.subr.mxu0 0.0
    %1197 = vmatpush1.msra.mxu0 0.0
    %1198 = vmatprep.subr.mxu0 0.0
    %1199 = vmatpush1.msra.mxu0 0.0
    %1200 = vmatprep.subr.mxu0 0.0
    %1201 = vmatpush1.msra.mxu0 0.0
    %1202 = vmatprep.subr.mxu0 0.0
    %1203 = vmatpush1.msra.mxu0 0.0
    %1204 = vmatprep.subr.mxu0 0.0
    %1205 = vmatpush1.msra.mxu0 0.0
    %1206 = vmatprep.subr.mxu0 0.0
    %1207 = vmatpush1.msra.mxu0 0.0
    %1208 = vmatprep.subr.mxu0 0.0
    %1209 = vmatpush1.msra.mxu0 0.0
    %1210 = vmatprep.subr.mxu0 0.0
    %1211 = vmatpush1.msra.mxu0 0.0
    %1212 = vmatprep.subr.mxu0 0.0
    %1213 = vmatpush1.msra.mxu0 0.0
    %1214 = vmatprep.subr.mxu0 0.0
    %1215 = vmatpush1.msra.mxu0 0.0
    %1216 = vmatprep.subr.mxu0 0.0
    %1217 = vmatpush1.msra.mxu0 0.0
    %1218 = vmatprep.subr.mxu0 0.0
    %1219 = vmatpush1.msra.mxu0 0.0
    %1220 = vmatprep.subr.mxu0 0.0
    %1221 = vmatpush1.msra.mxu0 0.0
    %1222 = vmatprep.subr.mxu0 0.0
    %1223 = vmatpush1.msra.mxu0 0.0
    %1224 = vmatprep.subr.mxu0 0.0
    %1225 = vmatpush1.msra.mxu0 0.0
    %1226 = vmatprep.subr.mxu0 0.0
    %1227 = vmatpush1.msra.mxu0 0.0
    %1228 = vmatprep.subr.mxu0 0.0
    %1229 = vmatpush1.msra.mxu0 0.0
    %1230 = vmatprep.subr.mxu0 0.0
    %1231 = vmatpush1.msra.mxu0 0.0
    %1232 = vmatprep.mubr.f32.mxu0 0.0
    %v1233 = vand.u32 %v161, 4294901760
    %1234 = vmatmul.mubr.f32.gmra.mrb[0].mxu0 %v1233
    %v1235 = vpop.f32.mrb[0].mxu0
    %v1236 = vadd.f32 %v1072, %v1235
    %v1237 = vpop.f32.mrb[0].mxu0
    %1238 = vmatprep.mubr.f32.mxu0 0.0
    %v1239 = vand.u32 %v164, 4294901760
    %1240 = vmatmul.mubr.f32.gmra.mrb[0].mxu0 %v1239
    %v1241 = vpop.f32.mrb[0].mxu0
    %v1242 = vadd.f32 %v1078, %v1241
    %v1243 = vpop.f32.mrb[0].mxu0
    %1244 = vmatprep.mubr.f32.mxu0 0.0
    %v1245 = vand.u32 %v167, 4294901760
    %1246 = vmatmul.mubr.f32.gmra.mrb[0].mxu0 %v1245
    %v1247 = vpop.f32.mrb[0].mxu0
    %v1248 = vadd.f32 %v1084, %v1247
    %v1249 = vpop.f32.mrb[0].mxu0
    %1250 = vmatprep.mubr.f32.mxu0 0.0
    %v1251 = vand.u32 %v170, 4294901760
    %1252 = vmatmul.mubr.f32.gmra.mrb[0].mxu0 %v1251
    %v1253 = vpop.f32.mrb[0].mxu0
    %v1254 = vadd.f32 %v1090, %v1253
    %v1255 = vpop.f32.mrb[0].mxu0
    %1256 = vmatprep.mubr.f32.mxu0 0.0
    %v1257 = vand.u32 %v173, 4294901760
    %1258 = vmatmul.mubr.f32.gmra.mrb[0].mxu0 %v1257
    %v1259 = vpop.f32.mrb[0].mxu0
    %v1260 = vadd.f32 %v1096, %v1259
    %v1261 = vpop.f32.mrb[0].mxu0
    %1262 = vmatprep.mubr.f32.mxu0 0.0
    %v1263 = vand.u32 %v176, 4294901760
    %1264 = vmatmul.mubr.f32.gmra.mrb[0].mxu0 %v1263
    %v1265 = vpop.f32.mrb[0].mxu0
    %v1266 = vadd.f32 %v1102, %v1265
    %v1267 = vpop.f32.mrb[0].mxu0
    %1268 = vmatprep.mubr.f32.mxu0 0.0
    %v1269 = vand.u32 %v179, 4294901760
    %1270 = vmatmul.mubr.f32.gmra.mrb[0].mxu0 %v1269
    %v1271 = vpop.f32.mrb[0].mxu0
    %v1272 = vadd.f32 %v1108, %v1271
    %v1273 = vpop.f32.mrb[0].mxu0
    %1274 = vmatprep.mubr.f32.mxu0 0.0
    %v1275 = vand.u32 %v182, 4294901760
    %1276 = vmatmul.mubr.f32.gmra.mrb[0].mxu0 %v1275
    %v1277 = vpop.f32.mrb[0].mxu0
    %v1278 = vadd.f32 %v1114, %v1277
    %v1279 = vpop.f32.mrb[0].mxu0
    %1280 = vmatprep.mubr.f32.mxu0 0.0
    %v1281 = vand.u32 %v185, 4294901760
    %1282 = vmatmul.mubr.f32.gmra.mrb[0].mxu0 %v1281
    %v1283 = vpop.f32.mrb[0].mxu0
    %v1284 = vadd.f32 %v1120, %v1283
    %v1285 = vpop.f32.mrb[0].mxu0
    %1286 = vmatprep.mubr.f32.mxu0 0.0
    %v1287 = vand.u32 %v188, 4294901760
    %1288 = vmatmul.mubr.f32.gmra.mrb[0].mxu0 %v1287
    %v1289 = vpop.f32.mrb[0].mxu0
    %v1290 = vadd.f32 %v1126, %v1289
    %v1291 = vpop.f32.mrb[0].mxu0
    %1292 = vmatprep.mubr.f32.mxu0 0.0
    %v1293 = vand.u32 %v191, 4294901760
    %1294 = vmatmul.mubr.f32.gmra.mrb[0].mxu0 %v1293
    %v1295 = vpop.f32.mrb[0].mxu0
    %v1296 = vadd.f32 %v1132, %v1295
    %v1297 = vpop.f32.mrb[0].mxu0
    %1298 = vmatprep.mubr.f32.mxu0 0.0
    %v1299 = vand.u32 %v194, 4294901760
    %1300 = vmatmul.mubr.f32.gmra.mrb[0].mxu0 %v1299
    %v1301 = vpop.f32.mrb[0].mxu0
    %v1302 = vadd.f32 %v1138, %v1301
    %v1303 = vpop.f32.mrb[0].mxu0
    %1304 = vmatprep.mubr.f32.mxu0 0.0
    %v1305 = vand.u32 %v197, 4294901760
    %1306 = vmatmul.mubr.f32.gmra.mrb[0].mxu0 %v1305
    %v1307 = vpop.f32.mrb[0].mxu0
    %v1308 = vadd.f32 %v1144, %v1307
    %v1309 = vpop.f32.mrb[0].mxu0
    %1310 = vmatprep.mubr.f32.mxu0 0.0
    %v1311 = vand.u32 %v200, 4294901760
    %1312 = vmatmul.mubr.f32.gmra.mrb[0].mxu0 %v1311
    %v1313 = vpop.f32.mrb[0].mxu0
    %v1314 = vadd.f32 %v1150, %v1313
    %v1315 = vpop.f32.mrb[0].mxu0
    %1316 = vmatprep.mubr.f32.mxu0 0.0
    %v1317 = vand.u32 %v203, 4294901760
    %1318 = vmatmul.mubr.f32.gmra.mrb[0].mxu0 %v1317
    %v1319 = vpop.f32.mrb[0].mxu0
    %v1320 = vadd.f32 %v1156, %v1319
    %v1321 = vpop.f32.mrb[0].mxu0
    %1322 = vmatprep.mubr.f32.mxu0 0.0
    %v1323 = vand.u32 %v206, 4294901760
    %1324 = vmatmul.mubr.f32.gmra.mrb[0].mxu0 %v1323
    %v1325 = vpop.f32.mrb[0].mxu0
    %v1326 = vadd.f32 %v1162, %v1325
    %v1327 = vpop.f32.mrb[0].mxu0
    %1328 = vdwg.mxu0
    %v1329 = vmax.f32 %v1236, 0.0
    %v1330 = vmax.f32 %v1242, 0.0
    %v1331 = vmax.f32 %v1248, 0.0
    %v1332 = vmax.f32 %v1254, 0.0
    %v1333 = vmax.f32 %v1260, 0.0
    %v1334 = vmax.f32 %v1266, 0.0
    %v1335 = vmax.f32 %v1272, 0.0
    %v1336 = vmax.f32 %v1278, 0.0
    %v1337 = vmax.f32 %v1284, 0.0
    %v1338 = vmax.f32 %v1290, 0.0
    %v1339 = vmax.f32 %v1296, 0.0
    %v1340 = vmax.f32 %v1302, 0.0
    %v1341 = vmax.f32 %v1308, 0.0
    %v1342 = vmax.f32 %v1314, 0.0
    %v1343 = vmax.f32 %v1320, 0.0
    %v1344 = vmax.f32 %v1326, 0.0
    %v1345 = vld [vmem:[%s3] sm:$0xff]
    %v1346 = vld [vmem:[%s3 + $0x8] sm:$0xff]
    %v1347 = vld [vmem:[%s3 + $0x10] sm:$0xff]
    %v1348 = vld [vmem:[%s3 + $0x18] sm:$0xff]
    %v1349 = vld [vmem:[%s3 + $0x20] sm:$0xff]
    %v1350 = vld [vmem:[%s3 + $0x28] sm:$0xff]
    %v1351 = vld [vmem:[%s3 + $0x30] sm:$0xff]
    %v1352 = vld [vmem:[%s3 + $0x38] sm:$0xff]
    %v1353 = vlaneseq
    %v1354 = vshrl.u32 %v1353, 7
    %v1355 = vsub.s32 1, %v1354
    %v1356 = vrot.slane %v151, %v1355
    %vm1357 = vcmask 523264
    %v1359 = vsel %vm1357, %v1329, 0
    %v1362 = vsel %vm1357, %v1330, 0
    %v1365 = vsel %vm1357, %v1331, 0
    %v1368 = vsel %vm1357, %v1332, 0
    %v1371 = vsel %vm1357, %v1333, 0
    %v1374 = vsel %vm1357, %v1334, 0
    %v1377 = vsel %vm1357, %v1335, 0
    %v1380 = vsel %vm1357, %v1336, 0
    %v1383 = vsel %vm1357, %v1337, 0
    %v1386 = vsel %vm1357, %v1338, 0
    %v1389 = vsel %vm1357, %v1339, 0
    %v1392 = vsel %vm1357, %v1340, 0
    %v1395 = vsel %vm1357, %v1341, 0
    %v1398 = vsel %vm1357, %v1342, 0
    %v1401 = vsel %vm1357, %v1343, 0
    %v1404 = vsel %vm1357, %v1344, 0
    %1406 = vmatprep.subr.mxu0 0.0
    %v1407 = vand.u32 %v1345, 4294901760
    %1408 = vmatpush1.msra.mxu0 %v1407
    %1409 = vmatprep.subr.mxu0 0.0
    %v1410 = vand.u32 %v1346, 4294901760
    %1411 = vmatpush1.msra.mxu0 %v1410
    %1412 = vmatprep.subr.mxu0 0.0
    %v1413 = vand.u32 %v1347, 4294901760
    %1414 = vmatpush1.msra.mxu0 %v1413
    %1415 = vmatprep.subr.mxu0 0.0
    %v1416 = vand.u32 %v1348, 4294901760
    %1417 = vmatpush1.msra.mxu0 %v1416
    %1418 = vmatprep.subr.mxu0 0.0
    %v1419 = vand.u32 %v1349, 4294901760
    %1420 = vmatpush1.msra.mxu0 %v1419
    %1421 = vmatprep.subr.mxu0 0.0
    %v1422 = vand.u32 %v1350, 4294901760
    %1423 = vmatpush1.msra.mxu0 %v1422
    %1424 = vmatprep.subr.mxu0 0.0
    %v1425 = vand.u32 %v1351, 4294901760
    %1426 = vmatpush1.msra.mxu0 %v1425
    %1427 = vmatprep.subr.mxu0 0.0
    %v1428 = vand.u32 %v1352, 4294901760
    %1429 = vmatpush1.msra.mxu0 %v1428
    %1430 = vmatprep.subr.mxu0 0.0
    %1431 = vmatpush1.msra.mxu0 0.0
    %1432 = vmatprep.subr.mxu0 0.0
    %1433 = vmatpush1.msra.mxu0 0.0
    %1434 = vmatprep.subr.mxu0 0.0
    %1435 = vmatpush1.msra.mxu0 0.0
    %1436 = vmatprep.subr.mxu0 0.0
    %1437 = vmatpush1.msra.mxu0 0.0
    %1438 = vmatprep.subr.mxu0 0.0
    %1439 = vmatpush1.msra.mxu0 0.0
    %1440 = vmatprep.subr.mxu0 0.0
    %1441 = vmatpush1.msra.mxu0 0.0
    %1442 = vmatprep.subr.mxu0 0.0
    %1443 = vmatpush1.msra.mxu0 0.0
    %1444 = vmatprep.subr.mxu0 0.0
    %1445 = vmatpush1.msra.mxu0 0.0
    %1446 = vmatprep.subr.mxu0 0.0
    %1447 = vmatpush1.msra.mxu0 0.0
    %1448 = vmatprep.subr.mxu0 0.0
    %1449 = vmatpush1.msra.mxu0 0.0
    %1450 = vmatprep.subr.mxu0 0.0
    %1451 = vmatpush1.msra.mxu0 0.0
    %1452 = vmatprep.subr.mxu0 0.0
    %1453 = vmatpush1.msra.mxu0 0.0
    %1454 = vmatprep.subr.mxu0 0.0
    %1455 = vmatpush1.msra.mxu0 0.0
    %1456 = vmatprep.subr.mxu0 0.0
    %1457 = vmatpush1.msra.mxu0 0.0
    %1458 = vmatprep.subr.mxu0 0.0
    %1459 = vmatpush1.msra.mxu0 0.0
    %1460 = vmatprep.subr.mxu0 0.0
    %1461 = vmatpush1.msra.mxu0 0.0
    %1462 = vmatprep.subr.mxu0 0.0
    %1463 = vmatpush1.msra.mxu0 0.0
    %1464 = vmatprep.subr.mxu0 0.0
    %1465 = vmatpush1.msra.mxu0 0.0
    %1466 = vmatprep.subr.mxu0 0.0
    %1467 = vmatpush1.msra.mxu0 0.0
    %1468 = vmatprep.subr.mxu0 0.0
    %1469 = vmatpush1.msra.mxu0 0.0
    %1470 = vmatprep.subr.mxu0 0.0
    %1471 = vmatpush1.msra.mxu0 0.0
    %1472 = vmatprep.subr.mxu0 0.0
    %1473 = vmatpush1.msra.mxu0 0.0
    %1474 = vmatprep.subr.mxu0 0.0
    %1475 = vmatpush1.msra.mxu0 0.0
    %1476 = vmatprep.subr.mxu0 0.0
    %1477 = vmatpush1.msra.mxu0 0.0
    %1478 = vmatprep.mubr.f32.mxu0 0.0
    %v1479 = vand.u32 %v1359, 4294901760
    %v1480 = vsub.f32 %v1359, %v1479
    %v1481 = vand.u32 %v1480, 4294901760
    %v1482 = vsub.f32 %v1480, %v1481
    %v1483 = vand.u32 %v1482, 4294901760
    %1484 = vmatmul.mubr.f32.gmra.mrb[0].mxu0 %v1483
    %v1485 = vpop.f32.mrb[0].mxu0
    %v1486 = vadd.f32 %v1356, %v1485
    %v1487 = vpop.f32.mrb[0].mxu0
    %1488 = vmatprep.mubr.f32.mxu0 0.0
    %v1489 = vand.u32 %v1362, 4294901760
    %v1490 = vsub.f32 %v1362, %v1489
    %v1491 = vand.u32 %v1490, 4294901760
    %v1492 = vsub.f32 %v1490, %v1491
    %v1493 = vand.u32 %v1492, 4294901760
    %1494 = vmatmul.mubr.f32.gmra.mrb[0].mxu0 %v1493
    %v1495 = vpop.f32.mrb[0].mxu0
    %v1496 = vadd.f32 %v1356, %v1495
    %v1497 = vpop.f32.mrb[0].mxu0
    %1498 = vmatprep.mubr.f32.mxu0 0.0
    %v1499 = vand.u32 %v1365, 4294901760
    %v1500 = vsub.f32 %v1365, %v1499
    %v1501 = vand.u32 %v1500, 4294901760
    %v1502 = vsub.f32 %v1500, %v1501
    %v1503 = vand.u32 %v1502, 4294901760
    %1504 = vmatmul.mubr.f32.gmra.mrb[0].mxu0 %v1503
    %v1505 = vpop.f32.mrb[0].mxu0
    %v1506 = vadd.f32 %v1356, %v1505
    %v1507 = vpop.f32.mrb[0].mxu0
    %1508 = vmatprep.mubr.f32.mxu0 0.0
    %v1509 = vand.u32 %v1368, 4294901760
    %v1510 = vsub.f32 %v1368, %v1509
    %v1511 = vand.u32 %v1510, 4294901760
    %v1512 = vsub.f32 %v1510, %v1511
    %v1513 = vand.u32 %v1512, 4294901760
    %1514 = vmatmul.mubr.f32.gmra.mrb[0].mxu0 %v1513
    %v1515 = vpop.f32.mrb[0].mxu0
    %v1516 = vadd.f32 %v1356, %v1515
    %v1517 = vpop.f32.mrb[0].mxu0
    %1518 = vmatprep.mubr.f32.mxu0 0.0
    %v1519 = vand.u32 %v1371, 4294901760
    %v1520 = vsub.f32 %v1371, %v1519
    %v1521 = vand.u32 %v1520, 4294901760
    %v1522 = vsub.f32 %v1520, %v1521
    %v1523 = vand.u32 %v1522, 4294901760
    %1524 = vmatmul.mubr.f32.gmra.mrb[0].mxu0 %v1523
    %v1525 = vpop.f32.mrb[0].mxu0
    %v1526 = vadd.f32 %v1356, %v1525
    %v1527 = vpop.f32.mrb[0].mxu0
    %1528 = vmatprep.mubr.f32.mxu0 0.0
    %v1529 = vand.u32 %v1374, 4294901760
    %v1530 = vsub.f32 %v1374, %v1529
    %v1531 = vand.u32 %v1530, 4294901760
    %v1532 = vsub.f32 %v1530, %v1531
    %v1533 = vand.u32 %v1532, 4294901760
    %1534 = vmatmul.mubr.f32.gmra.mrb[0].mxu0 %v1533
    %v1535 = vpop.f32.mrb[0].mxu0
    %v1536 = vadd.f32 %v1356, %v1535
    %v1537 = vpop.f32.mrb[0].mxu0
    %1538 = vmatprep.mubr.f32.mxu0 0.0
    %v1539 = vand.u32 %v1377, 4294901760
    %v1540 = vsub.f32 %v1377, %v1539
    %v1541 = vand.u32 %v1540, 4294901760
    %v1542 = vsub.f32 %v1540, %v1541
    %v1543 = vand.u32 %v1542, 4294901760
    %1544 = vmatmul.mubr.f32.gmra.mrb[0].mxu0 %v1543
    %v1545 = vpop.f32.mrb[0].mxu0
    %v1546 = vadd.f32 %v1356, %v1545
    %v1547 = vpop.f32.mrb[0].mxu0
    %1548 = vmatprep.mubr.f32.mxu0 0.0
    %v1549 = vand.u32 %v1380, 4294901760
    %v1550 = vsub.f32 %v1380, %v1549
    %v1551 = vand.u32 %v1550, 4294901760
    %v1552 = vsub.f32 %v1550, %v1551
    %v1553 = vand.u32 %v1552, 4294901760
    %1554 = vmatmul.mubr.f32.gmra.mrb[0].mxu0 %v1553
    %v1555 = vpop.f32.mrb[0].mxu0
    %v1556 = vadd.f32 %v1356, %v1555
    %v1557 = vpop.f32.mrb[0].mxu0
    %1558 = vmatprep.mubr.f32.mxu0 0.0
    %v1559 = vand.u32 %v1383, 4294901760
    %v1560 = vsub.f32 %v1383, %v1559
    %v1561 = vand.u32 %v1560, 4294901760
    %v1562 = vsub.f32 %v1560, %v1561
    %v1563 = vand.u32 %v1562, 4294901760
    %1564 = vmatmul.mubr.f32.gmra.mrb[0].mxu0 %v1563
    %v1565 = vpop.f32.mrb[0].mxu0
    %v1566 = vadd.f32 %v1356, %v1565
    %v1567 = vpop.f32.mrb[0].mxu0
    %1568 = vmatprep.mubr.f32.mxu0 0.0
    %v1569 = vand.u32 %v1386, 4294901760
    %v1570 = vsub.f32 %v1386, %v1569
    %v1571 = vand.u32 %v1570, 4294901760
    %v1572 = vsub.f32 %v1570, %v1571
    %v1573 = vand.u32 %v1572, 4294901760
    %1574 = vmatmul.mubr.f32.gmra.mrb[0].mxu0 %v1573
    %v1575 = vpop.f32.mrb[0].mxu0
    %v1576 = vadd.f32 %v1356, %v1575
    %v1577 = vpop.f32.mrb[0].mxu0
    %1578 = vmatprep.mubr.f32.mxu0 0.0
    %v1579 = vand.u32 %v1389, 4294901760
    %v1580 = vsub.f32 %v1389, %v1579
    %v1581 = vand.u32 %v1580, 4294901760
    %v1582 = vsub.f32 %v1580, %v1581
    %v1583 = vand.u32 %v1582, 4294901760
    %1584 = vmatmul.mubr.f32.gmra.mrb[0].mxu0 %v1583
    %v1585 = vpop.f32.mrb[0].mxu0
    %v1586 = vadd.f32 %v1356, %v1585
    %v1587 = vpop.f32.mrb[0].mxu0
    %1588 = vmatprep.mubr.f32.mxu0 0.0
    %v1589 = vand.u32 %v1392, 4294901760
    %v1590 = vsub.f32 %v1392, %v1589
    %v1591 = vand.u32 %v1590, 4294901760
    %v1592 = vsub.f32 %v1590, %v1591
    %v1593 = vand.u32 %v1592, 4294901760
    %1594 = vmatmul.mubr.f32.gmra.mrb[0].mxu0 %v1593
    %v1595 = vpop.f32.mrb[0].mxu0
    %v1596 = vadd.f32 %v1356, %v1595
    %v1597 = vpop.f32.mrb[0].mxu0
    %1598 = vmatprep.mubr.f32.mxu0 0.0
    %v1599 = vand.u32 %v1395, 4294901760
    %v1600 = vsub.f32 %v1395, %v1599
    %v1601 = vand.u32 %v1600, 4294901760
    %v1602 = vsub.f32 %v1600, %v1601
    %v1603 = vand.u32 %v1602, 4294901760
    %1604 = vmatmul.mubr.f32.gmra.mrb[0].mxu0 %v1603
    %v1605 = vpop.f32.mrb[0].mxu0
    %v1606 = vadd.f32 %v1356, %v1605
    %v1607 = vpop.f32.mrb[0].mxu0
    %1608 = vmatprep.mubr.f32.mxu0 0.0
    %v1609 = vand.u32 %v1398, 4294901760
    %v1610 = vsub.f32 %v1398, %v1609
    %v1611 = vand.u32 %v1610, 4294901760
    %v1612 = vsub.f32 %v1610, %v1611
    %v1613 = vand.u32 %v1612, 4294901760
    %1614 = vmatmul.mubr.f32.gmra.mrb[0].mxu0 %v1613
    %v1615 = vpop.f32.mrb[0].mxu0
    %v1616 = vadd.f32 %v1356, %v1615
    %v1617 = vpop.f32.mrb[0].mxu0
    %1618 = vmatprep.mubr.f32.mxu0 0.0
    %v1619 = vand.u32 %v1401, 4294901760
    %v1620 = vsub.f32 %v1401, %v1619
    %v1621 = vand.u32 %v1620, 4294901760
    %v1622 = vsub.f32 %v1620, %v1621
    %v1623 = vand.u32 %v1622, 4294901760
    %1624 = vmatmul.mubr.f32.gmra.mrb[0].mxu0 %v1623
    %v1625 = vpop.f32.mrb[0].mxu0
    %v1626 = vadd.f32 %v1356, %v1625
    %v1627 = vpop.f32.mrb[0].mxu0
    %1628 = vmatprep.mubr.f32.mxu0 0.0
    %v1629 = vand.u32 %v1404, 4294901760
    %v1630 = vsub.f32 %v1404, %v1629
    %v1631 = vand.u32 %v1630, 4294901760
    %v1632 = vsub.f32 %v1630, %v1631
    %v1633 = vand.u32 %v1632, 4294901760
    %1634 = vmatmul.mubr.f32.gmra.mrb[0].mxu0 %v1633
    %v1635 = vpop.f32.mrb[0].mxu0
    %v1636 = vadd.f32 %v1356, %v1635
    %v1637 = vpop.f32.mrb[0].mxu0
    %1638 = vdwg.mxu0
    %1639 = vmatprep.subr.mxu0 0.0
    %v1640 = vand.u32 %v1345, 4294901760
    %v1641 = vsub.f32 %v1345, %v1640
    %v1642 = vand.u32 %v1641, 4294901760
    %v1643 = vsub.f32 %v1641, %v1642
    %v1644 = vand.u32 %v1643, 4294901760
    %1645 = vmatpush1.msra.mxu0 %v1644
    %1646 = vmatprep.subr.mxu0 0.0
    %v1647 = vand.u32 %v1346, 4294901760
    %v1648 = vsub.f32 %v1346, %v1647
    %v1649 = vand.u32 %v1648, 4294901760
    %v1650 = vsub.f32 %v1648, %v1649
    %v1651 = vand.u32 %v1650, 4294901760
    %1652 = vmatpush1.msra.mxu0 %v1651
    %1653 = vmatprep.subr.mxu0 0.0
    %v1654 = vand.u32 %v1347, 4294901760
    %v1655 = vsub.f32 %v1347, %v1654
    %v1656 = vand.u32 %v1655, 4294901760
    %v1657 = vsub.f32 %v1655, %v1656
    %v1658 = vand.u32 %v1657, 4294901760
    %1659 = vmatpush1.msra.mxu0 %v1658
    %1660 = vmatprep.subr.mxu0 0.0
    %v1661 = vand.u32 %v1348, 4294901760
    %v1662 = vsub.f32 %v1348, %v1661
    %v1663 = vand.u32 %v1662, 4294901760
    %v1664 = vsub.f32 %v1662, %v1663
    %v1665 = vand.u32 %v1664, 4294901760
    %1666 = vmatpush1.msra.mxu0 %v1665
    %1667 = vmatprep.subr.mxu0 0.0
    %v1668 = vand.u32 %v1349, 4294901760
    %v1669 = vsub.f32 %v1349, %v1668
    %v1670 = vand.u32 %v1669, 4294901760
    %v1671 = vsub.f32 %v1669, %v1670
    %v1672 = vand.u32 %v1671, 4294901760
    %1673 = vmatpush1.msra.mxu0 %v1672
    %1674 = vmatprep.subr.mxu0 0.0
    %v1675 = vand.u32 %v1350, 4294901760
    %v1676 = vsub.f32 %v1350, %v1675
    %v1677 = vand.u32 %v1676, 4294901760
    %v1678 = vsub.f32 %v1676, %v1677
    %v1679 = vand.u32 %v1678, 4294901760
    %1680 = vmatpush1.msra.mxu0 %v1679
    %1681 = vmatprep.subr.mxu0 0.0
    %v1682 = vand.u32 %v1351, 4294901760
    %v1683 = vsub.f32 %v1351, %v1682
    %v1684 = vand.u32 %v1683, 4294901760
    %v1685 = vsub.f32 %v1683, %v1684
    %v1686 = vand.u32 %v1685, 4294901760
    %1687 = vmatpush1.msra.mxu0 %v1686
    %1688 = vmatprep.subr.mxu0 0.0
    %v1689 = vand.u32 %v1352, 4294901760
    %v1690 = vsub.f32 %v1352, %v1689
    %v1691 = vand.u32 %v1690, 4294901760
    %v1692 = vsub.f32 %v1690, %v1691
    %v1693 = vand.u32 %v1692, 4294901760
    %1694 = vmatpush1.msra.mxu0 %v1693
    %1695 = vmatprep.subr.mxu0 0.0
    %1696 = vmatpush1.msra.mxu0 0.0
    %1697 = vmatprep.subr.mxu0 0.0
    %1698 = vmatpush1.msra.mxu0 0.0
    %1699 = vmatprep.subr.mxu0 0.0
    %1700 = vmatpush1.msra.mxu0 0.0
    %1701 = vmatprep.subr.mxu0 0.0
    %1702 = vmatpush1.msra.mxu0 0.0
    %1703 = vmatprep.subr.mxu0 0.0
    %1704 = vmatpush1.msra.mxu0 0.0
    %1705 = vmatprep.subr.mxu0 0.0
    %1706 = vmatpush1.msra.mxu0 0.0
    %1707 = vmatprep.subr.mxu0 0.0
    %1708 = vmatpush1.msra.mxu0 0.0
    %1709 = vmatprep.subr.mxu0 0.0
    %1710 = vmatpush1.msra.mxu0 0.0
    %1711 = vmatprep.subr.mxu0 0.0
    %1712 = vmatpush1.msra.mxu0 0.0
    %1713 = vmatprep.subr.mxu0 0.0
    %1714 = vmatpush1.msra.mxu0 0.0
    %1715 = vmatprep.subr.mxu0 0.0
    %1716 = vmatpush1.msra.mxu0 0.0
    %1717 = vmatprep.subr.mxu0 0.0
    %1718 = vmatpush1.msra.mxu0 0.0
    %1719 = vmatprep.subr.mxu0 0.0
    %1720 = vmatpush1.msra.mxu0 0.0
    %1721 = vmatprep.subr.mxu0 0.0
    %1722 = vmatpush1.msra.mxu0 0.0
    %1723 = vmatprep.subr.mxu0 0.0
    %1724 = vmatpush1.msra.mxu0 0.0
    %1725 = vmatprep.subr.mxu0 0.0
    %1726 = vmatpush1.msra.mxu0 0.0
    %1727 = vmatprep.subr.mxu0 0.0
    %1728 = vmatpush1.msra.mxu0 0.0
    %1729 = vmatprep.subr.mxu0 0.0
    %1730 = vmatpush1.msra.mxu0 0.0
    %1731 = vmatprep.subr.mxu0 0.0
    %1732 = vmatpush1.msra.mxu0 0.0
    %1733 = vmatprep.subr.mxu0 0.0
    %1734 = vmatpush1.msra.mxu0 0.0
    %1735 = vmatprep.subr.mxu0 0.0
    %1736 = vmatpush1.msra.mxu0 0.0
    %1737 = vmatprep.subr.mxu0 0.0
    %1738 = vmatpush1.msra.mxu0 0.0
    %1739 = vmatprep.subr.mxu0 0.0
    %1740 = vmatpush1.msra.mxu0 0.0
    %1741 = vmatprep.subr.mxu0 0.0
    %1742 = vmatpush1.msra.mxu0 0.0
    %1743 = vmatprep.mubr.f32.mxu0 0.0
    %v1744 = vand.u32 %v1359, 4294901760
    %1745 = vmatmul.mubr.f32.gmra.mrb[0].mxu0 %v1744
    %v1746 = vpop.f32.mrb[0].mxu0
    %v1747 = vadd.f32 %v1486, %v1746
    %v1748 = vpop.f32.mrb[0].mxu0
    %1749 = vmatprep.mubr.f32.mxu0 0.0
    %v1750 = vand.u32 %v1362, 4294901760
    %1751 = vmatmul.mubr.f32.gmra.mrb[0].mxu0 %v1750
    %v1752 = vpop.f32.mrb[0].mxu0
    %v1753 = vadd.f32 %v1496, %v1752
    %v1754 = vpop.f32.mrb[0].mxu0
    %1755 = vmatprep.mubr.f32.mxu0 0.0
    %v1756 = vand.u32 %v1365, 4294901760
    %1757 = vmatmul.mubr.f32.gmra.mrb[0].mxu0 %v1756
    %v1758 = vpop.f32.mrb[0].mxu0
    %v1759 = vadd.f32 %v1506, %v1758
    %v1760 = vpop.f32.mrb[0].mxu0
    %1761 = vmatprep.mubr.f32.mxu0 0.0
    %v1762 = vand.u32 %v1368, 4294901760
    %1763 = vmatmul.mubr.f32.gmra.mrb[0].mxu0 %v1762
    %v1764 = vpop.f32.mrb[0].mxu0
    %v1765 = vadd.f32 %v1516, %v1764
    %v1766 = vpop.f32.mrb[0].mxu0
    %1767 = vmatprep.mubr.f32.mxu0 0.0
    %v1768 = vand.u32 %v1371, 4294901760
    %1769 = vmatmul.mubr.f32.gmra.mrb[0].mxu0 %v1768
    %v1770 = vpop.f32.mrb[0].mxu0
    %v1771 = vadd.f32 %v1526, %v1770
    %v1772 = vpop.f32.mrb[0].mxu0
    %1773 = vmatprep.mubr.f32.mxu0 0.0
    %v1774 = vand.u32 %v1374, 4294901760
    %1775 = vmatmul.mubr.f32.gmra.mrb[0].mxu0 %v1774
    %v1776 = vpop.f32.mrb[0].mxu0
    %v1777 = vadd.f32 %v1536, %v1776
    %v1778 = vpop.f32.mrb[0].mxu0
    %1779 = vmatprep.mubr.f32.mxu0 0.0
    %v1780 = vand.u32 %v1377, 4294901760
    %1781 = vmatmul.mubr.f32.gmra.mrb[0].mxu0 %v1780
    %v1782 = vpop.f32.mrb[0].mxu0
    %v1783 = vadd.f32 %v1546, %v1782
    %v1784 = vpop.f32.mrb[0].mxu0
    %1785 = vmatprep.mubr.f32.mxu0 0.0
    %v1786 = vand.u32 %v1380, 4294901760
    %1787 = vmatmul.mubr.f32.gmra.mrb[0].mxu0 %v1786
    %v1788 = vpop.f32.mrb[0].mxu0
    %v1789 = vadd.f32 %v1556, %v1788
    %v1790 = vpop.f32.mrb[0].mxu0
    %1791 = vmatprep.mubr.f32.mxu0 0.0
    %v1792 = vand.u32 %v1383, 4294901760
    %1793 = vmatmul.mubr.f32.gmra.mrb[0].mxu0 %v1792
    %v1794 = vpop.f32.mrb[0].mxu0
    %v1795 = vadd.f32 %v1566, %v1794
    %v1796 = vpop.f32.mrb[0].mxu0
    %1797 = vmatprep.mubr.f32.mxu0 0.0
    %v1798 = vand.u32 %v1386, 4294901760
    %1799 = vmatmul.mubr.f32.gmra.mrb[0].mxu0 %v1798
    %v1800 = vpop.f32.mrb[0].mxu0
    %v1801 = vadd.f32 %v1576, %v1800
    %v1802 = vpop.f32.mrb[0].mxu0
    %1803 = vmatprep.mubr.f32.mxu0 0.0
    %v1804 = vand.u32 %v1389, 4294901760
    %1805 = vmatmul.mubr.f32.gmra.mrb[0].mxu0 %v1804
    %v1806 = vpop.f32.mrb[0].mxu0
    %v1807 = vadd.f32 %v1586, %v1806
    %v1808 = vpop.f32.mrb[0].mxu0
    %1809 = vmatprep.mubr.f32.mxu0 0.0
    %v1810 = vand.u32 %v1392, 4294901760
    %1811 = vmatmul.mubr.f32.gmra.mrb[0].mxu0 %v1810
    %v1812 = vpop.f32.mrb[0].mxu0
    %v1813 = vadd.f32 %v1596, %v1812
    %v1814 = vpop.f32.mrb[0].mxu0
    %1815 = vmatprep.mubr.f32.mxu0 0.0
    %v1816 = vand.u32 %v1395, 4294901760
    %1817 = vmatmul.mubr.f32.gmra.mrb[0].mxu0 %v1816
    %v1818 = vpop.f32.mrb[0].mxu0
    %v1819 = vadd.f32 %v1606, %v1818
    %v1820 = vpop.f32.mrb[0].mxu0
    %1821 = vmatprep.mubr.f32.mxu0 0.0
    %v1822 = vand.u32 %v1398, 4294901760
    %1823 = vmatmul.mubr.f32.gmra.mrb[0].mxu0 %v1822
    %v1824 = vpop.f32.mrb[0].mxu0
    %v1825 = vadd.f32 %v1616, %v1824
    %v1826 = vpop.f32.mrb[0].mxu0
    %1827 = vmatprep.mubr.f32.mxu0 0.0
    %v1828 = vand.u32 %v1401, 4294901760
    %1829 = vmatmul.mubr.f32.gmra.mrb[0].mxu0 %v1828
    %v1830 = vpop.f32.mrb[0].mxu0
    %v1831 = vadd.f32 %v1626, %v1830
    %v1832 = vpop.f32.mrb[0].mxu0
    %1833 = vmatprep.mubr.f32.mxu0 0.0
    %v1834 = vand.u32 %v1404, 4294901760
    %1835 = vmatmul.mubr.f32.gmra.mrb[0].mxu0 %v1834
    %v1836 = vpop.f32.mrb[0].mxu0
    %v1837 = vadd.f32 %v1636, %v1836
    %v1838 = vpop.f32.mrb[0].mxu0
    %1839 = vdwg.mxu0
    %1840 = vmatprep.subr.mxu0 0.0
    %v1841 = vand.u32 %v1345, 4294901760
    %v1842 = vsub.f32 %v1345, %v1841
    %1843 = vmatpush1.msra.mxu0 %v1842
    %1844 = vmatprep.subr.mxu0 0.0
    %v1845 = vand.u32 %v1346, 4294901760
    %v1846 = vsub.f32 %v1346, %v1845
    %1847 = vmatpush1.msra.mxu0 %v1846
    %1848 = vmatprep.subr.mxu0 0.0
    %v1849 = vand.u32 %v1347, 4294901760
    %v1850 = vsub.f32 %v1347, %v1849
    %1851 = vmatpush1.msra.mxu0 %v1850
    %1852 = vmatprep.subr.mxu0 0.0
    %v1853 = vand.u32 %v1348, 4294901760
    %v1854 = vsub.f32 %v1348, %v1853
    %1855 = vmatpush1.msra.mxu0 %v1854
    %1856 = vmatprep.subr.mxu0 0.0
    %v1857 = vand.u32 %v1349, 4294901760
    %v1858 = vsub.f32 %v1349, %v1857
    %1859 = vmatpush1.msra.mxu0 %v1858
    %1860 = vmatprep.subr.mxu0 0.0
    %v1861 = vand.u32 %v1350, 4294901760
    %v1862 = vsub.f32 %v1350, %v1861
    %1863 = vmatpush1.msra.mxu0 %v1862
    %1864 = vmatprep.subr.mxu0 0.0
    %v1865 = vand.u32 %v1351, 4294901760
    %v1866 = vsub.f32 %v1351, %v1865
    %1867 = vmatpush1.msra.mxu0 %v1866
    %1868 = vmatprep.subr.mxu0 0.0
    %v1869 = vand.u32 %v1352, 4294901760
    %v1870 = vsub.f32 %v1352, %v1869
    %1871 = vmatpush1.msra.mxu0 %v1870
    %1872 = vmatprep.subr.mxu0 0.0
    %1873 = vmatpush1.msra.mxu0 0.0
    %1874 = vmatprep.subr.mxu0 0.0
    %1875 = vmatpush1.msra.mxu0 0.0
    %1876 = vmatprep.subr.mxu0 0.0
    %1877 = vmatpush1.msra.mxu0 0.0
    %1878 = vmatprep.subr.mxu0 0.0
    %1879 = vmatpush1.msra.mxu0 0.0
    %1880 = vmatprep.subr.mxu0 0.0
    %1881 = vmatpush1.msra.mxu0 0.0
    %1882 = vmatprep.subr.mxu0 0.0
    %1883 = vmatpush1.msra.mxu0 0.0
    %1884 = vmatprep.subr.mxu0 0.0
    %1885 = vmatpush1.msra.mxu0 0.0
    %1886 = vmatprep.subr.mxu0 0.0
    %1887 = vmatpush1.msra.mxu0 0.0
    %1888 = vmatprep.subr.mxu0 0.0
    %1889 = vmatpush1.msra.mxu0 0.0
    %1890 = vmatprep.subr.mxu0 0.0
    %1891 = vmatpush1.msra.mxu0 0.0
    %1892 = vmatprep.subr.mxu0 0.0
    %1893 = vmatpush1.msra.mxu0 0.0
    %1894 = vmatprep.subr.mxu0 0.0
    %1895 = vmatpush1.msra.mxu0 0.0
    %1896 = vmatprep.subr.mxu0 0.0
    %1897 = vmatpush1.msra.mxu0 0.0
    %1898 = vmatprep.subr.mxu0 0.0
    %1899 = vmatpush1.msra.mxu0 0.0
    %1900 = vmatprep.subr.mxu0 0.0
    %1901 = vmatpush1.msra.mxu0 0.0
    %1902 = vmatprep.subr.mxu0 0.0
    %1903 = vmatpush1.msra.mxu0 0.0
    %1904 = vmatprep.subr.mxu0 0.0
    %1905 = vmatpush1.msra.mxu0 0.0
    %1906 = vmatprep.subr.mxu0 0.0
    %1907 = vmatpush1.msra.mxu0 0.0
    %1908 = vmatprep.subr.mxu0 0.0
    %1909 = vmatpush1.msra.mxu0 0.0
    %1910 = vmatprep.subr.mxu0 0.0
    %1911 = vmatpush1.msra.mxu0 0.0
    %1912 = vmatprep.subr.mxu0 0.0
    %1913 = vmatpush1.msra.mxu0 0.0
    %1914 = vmatprep.subr.mxu0 0.0
    %1915 = vmatpush1.msra.mxu0 0.0
    %1916 = vmatprep.subr.mxu0 0.0
    %1917 = vmatpush1.msra.mxu0 0.0
    %1918 = vmatprep.subr.mxu0 0.0
    %1919 = vmatpush1.msra.mxu0 0.0
    %1920 = vmatprep.mubr.f32.mxu0 0.0
    %v1921 = vand.u32 %v1359, 4294901760
    %v1922 = vsub.f32 %v1359, %v1921
    %1923 = vmatmul.mubr.f32.gmra.mrb[0].mxu0 %v1922
    %v1924 = vpop.f32.mrb[0].mxu0
    %v1925 = vadd.f32 %v1747, %v1924
    %v1926 = vpop.f32.mrb[0].mxu0
    %1927 = vmatprep.mubr.f32.mxu0 0.0
    %v1928 = vand.u32 %v1362, 4294901760
    %v1929 = vsub.f32 %v1362, %v1928
    %1930 = vmatmul.mubr.f32.gmra.mrb[0].mxu0 %v1929
    %v1931 = vpop.f32.mrb[0].mxu0
    %v1932 = vadd.f32 %v1753, %v1931
    %v1933 = vpop.f32.mrb[0].mxu0
    %1934 = vmatprep.mubr.f32.mxu0 0.0
    %v1935 = vand.u32 %v1365, 4294901760
    %v1936 = vsub.f32 %v1365, %v1935
    %1937 = vmatmul.mubr.f32.gmra.mrb[0].mxu0 %v1936
    %v1938 = vpop.f32.mrb[0].mxu0
    %v1939 = vadd.f32 %v1759, %v1938
    %v1940 = vpop.f32.mrb[0].mxu0
    %1941 = vmatprep.mubr.f32.mxu0 0.0
    %v1942 = vand.u32 %v1368, 4294901760
    %v1943 = vsub.f32 %v1368, %v1942
    %1944 = vmatmul.mubr.f32.gmra.mrb[0].mxu0 %v1943
    %v1945 = vpop.f32.mrb[0].mxu0
    %v1946 = vadd.f32 %v1765, %v1945
    %v1947 = vpop.f32.mrb[0].mxu0
    %1948 = vmatprep.mubr.f32.mxu0 0.0
    %v1949 = vand.u32 %v1371, 4294901760
    %v1950 = vsub.f32 %v1371, %v1949
    %1951 = vmatmul.mubr.f32.gmra.mrb[0].mxu0 %v1950
    %v1952 = vpop.f32.mrb[0].mxu0
    %v1953 = vadd.f32 %v1771, %v1952
    %v1954 = vpop.f32.mrb[0].mxu0
    %1955 = vmatprep.mubr.f32.mxu0 0.0
    %v1956 = vand.u32 %v1374, 4294901760
    %v1957 = vsub.f32 %v1374, %v1956
    %1958 = vmatmul.mubr.f32.gmra.mrb[0].mxu0 %v1957
    %v1959 = vpop.f32.mrb[0].mxu0
    %v1960 = vadd.f32 %v1777, %v1959
    %v1961 = vpop.f32.mrb[0].mxu0
    %1962 = vmatprep.mubr.f32.mxu0 0.0
    %v1963 = vand.u32 %v1377, 4294901760
    %v1964 = vsub.f32 %v1377, %v1963
    %1965 = vmatmul.mubr.f32.gmra.mrb[0].mxu0 %v1964
    %v1966 = vpop.f32.mrb[0].mxu0
    %v1967 = vadd.f32 %v1783, %v1966
    %v1968 = vpop.f32.mrb[0].mxu0
    %1969 = vmatprep.mubr.f32.mxu0 0.0
    %v1970 = vand.u32 %v1380, 4294901760
    %v1971 = vsub.f32 %v1380, %v1970
    %1972 = vmatmul.mubr.f32.gmra.mrb[0].mxu0 %v1971
    %v1973 = vpop.f32.mrb[0].mxu0
    %v1974 = vadd.f32 %v1789, %v1973
    %v1975 = vpop.f32.mrb[0].mxu0
    %1976 = vmatprep.mubr.f32.mxu0 0.0
    %v1977 = vand.u32 %v1383, 4294901760
    %v1978 = vsub.f32 %v1383, %v1977
    %1979 = vmatmul.mubr.f32.gmra.mrb[0].mxu0 %v1978
    %v1980 = vpop.f32.mrb[0].mxu0
    %v1981 = vadd.f32 %v1795, %v1980
    %v1982 = vpop.f32.mrb[0].mxu0
    %1983 = vmatprep.mubr.f32.mxu0 0.0
    %v1984 = vand.u32 %v1386, 4294901760
    %v1985 = vsub.f32 %v1386, %v1984
    %1986 = vmatmul.mubr.f32.gmra.mrb[0].mxu0 %v1985
    %v1987 = vpop.f32.mrb[0].mxu0
    %v1988 = vadd.f32 %v1801, %v1987
    %v1989 = vpop.f32.mrb[0].mxu0
    %1990 = vmatprep.mubr.f32.mxu0 0.0
    %v1991 = vand.u32 %v1389, 4294901760
    %v1992 = vsub.f32 %v1389, %v1991
    %1993 = vmatmul.mubr.f32.gmra.mrb[0].mxu0 %v1992
    %v1994 = vpop.f32.mrb[0].mxu0
    %v1995 = vadd.f32 %v1807, %v1994
    %v1996 = vpop.f32.mrb[0].mxu0
    %1997 = vmatprep.mubr.f32.mxu0 0.0
    %v1998 = vand.u32 %v1392, 4294901760
    %v1999 = vsub.f32 %v1392, %v1998
    %2000 = vmatmul.mubr.f32.gmra.mrb[0].mxu0 %v1999
    %v2001 = vpop.f32.mrb[0].mxu0
    %v2002 = vadd.f32 %v1813, %v2001
    %v2003 = vpop.f32.mrb[0].mxu0
    %2004 = vmatprep.mubr.f32.mxu0 0.0
    %v2005 = vand.u32 %v1395, 4294901760
    %v2006 = vsub.f32 %v1395, %v2005
    %2007 = vmatmul.mubr.f32.gmra.mrb[0].mxu0 %v2006
    %v2008 = vpop.f32.mrb[0].mxu0
    %v2009 = vadd.f32 %v1819, %v2008
    %v2010 = vpop.f32.mrb[0].mxu0
    %2011 = vmatprep.mubr.f32.mxu0 0.0
    %v2012 = vand.u32 %v1398, 4294901760
    %v2013 = vsub.f32 %v1398, %v2012
    %2014 = vmatmul.mubr.f32.gmra.mrb[0].mxu0 %v2013
    %v2015 = vpop.f32.mrb[0].mxu0
    %v2016 = vadd.f32 %v1825, %v2015
    %v2017 = vpop.f32.mrb[0].mxu0
    %2018 = vmatprep.mubr.f32.mxu0 0.0
    %v2019 = vand.u32 %v1401, 4294901760
    %v2020 = vsub.f32 %v1401, %v2019
    %2021 = vmatmul.mubr.f32.gmra.mrb[0].mxu0 %v2020
    %v2022 = vpop.f32.mrb[0].mxu0
    %v2023 = vadd.f32 %v1831, %v2022
    %v2024 = vpop.f32.mrb[0].mxu0
    %2025 = vmatprep.mubr.f32.mxu0 0.0
    %v2026 = vand.u32 %v1404, 4294901760
    %v2027 = vsub.f32 %v1404, %v2026
    %2028 = vmatmul.mubr.f32.gmra.mrb[0].mxu0 %v2027
    %v2029 = vpop.f32.mrb[0].mxu0
    %v2030 = vadd.f32 %v1837, %v2029
    %v2031 = vpop.f32.mrb[0].mxu0
    %2032 = vdwg.mxu0
    %2033 = vmatprep.subr.mxu0 0.0
    %v2034 = vand.u32 %v1345, 4294901760
    %2035 = vmatpush1.msra.mxu0 %v2034
    %2036 = vmatprep.subr.mxu0 0.0
    %v2037 = vand.u32 %v1346, 4294901760
    %2038 = vmatpush1.msra.mxu0 %v2037
    %2039 = vmatprep.subr.mxu0 0.0
    %v2040 = vand.u32 %v1347, 4294901760
    %2041 = vmatpush1.msra.mxu0 %v2040
    %2042 = vmatprep.subr.mxu0 0.0
    %v2043 = vand.u32 %v1348, 4294901760
    %2044 = vmatpush1.msra.mxu0 %v2043
    %2045 = vmatprep.subr.mxu0 0.0
    %v2046 = vand.u32 %v1349, 4294901760
    %2047 = vmatpush1.msra.mxu0 %v2046
    %2048 = vmatprep.subr.mxu0 0.0
    %v2049 = vand.u32 %v1350, 4294901760
    %2050 = vmatpush1.msra.mxu0 %v2049
    %2051 = vmatprep.subr.mxu0 0.0
    %v2052 = vand.u32 %v1351, 4294901760
    %2053 = vmatpush1.msra.mxu0 %v2052
    %2054 = vmatprep.subr.mxu0 0.0
    %v2055 = vand.u32 %v1352, 4294901760
    %2056 = vmatpush1.msra.mxu0 %v2055
    %2057 = vmatprep.subr.mxu0 0.0
    %2058 = vmatpush1.msra.mxu0 0.0
    %2059 = vmatprep.subr.mxu0 0.0
    %2060 = vmatpush1.msra.mxu0 0.0
    %2061 = vmatprep.subr.mxu0 0.0
    %2062 = vmatpush1.msra.mxu0 0.0
    %2063 = vmatprep.subr.mxu0 0.0
    %2064 = vmatpush1.msra.mxu0 0.0
    %2065 = vmatprep.subr.mxu0 0.0
    %2066 = vmatpush1.msra.mxu0 0.0
    %2067 = vmatprep.subr.mxu0 0.0
    %2068 = vmatpush1.msra.mxu0 0.0
    %2069 = vmatprep.subr.mxu0 0.0
    %2070 = vmatpush1.msra.mxu0 0.0
    %2071 = vmatprep.subr.mxu0 0.0
    %2072 = vmatpush1.msra.mxu0 0.0
    %2073 = vmatprep.subr.mxu0 0.0
    %2074 = vmatpush1.msra.mxu0 0.0
    %2075 = vmatprep.subr.mxu0 0.0
    %2076 = vmatpush1.msra.mxu0 0.0
    %2077 = vmatprep.subr.mxu0 0.0
    %2078 = vmatpush1.msra.mxu0 0.0
    %2079 = vmatprep.subr.mxu0 0.0
    %2080 = vmatpush1.msra.mxu0 0.0
    %2081 = vmatprep.subr.mxu0 0.0
    %2082 = vmatpush1.msra.mxu0 0.0
    %2083 = vmatprep.subr.mxu0 0.0
    %2084 = vmatpush1.msra.mxu0 0.0
    %2085 = vmatprep.subr.mxu0 0.0
    %2086 = vmatpush1.msra.mxu0 0.0
    %2087 = vmatprep.subr.mxu0 0.0
    %2088 = vmatpush1.msra.mxu0 0.0
    %2089 = vmatprep.subr.mxu0 0.0
    %2090 = vmatpush1.msra.mxu0 0.0
    %2091 = vmatprep.subr.mxu0 0.0
    %2092 = vmatpush1.msra.mxu0 0.0
    %2093 = vmatprep.subr.mxu0 0.0
    %2094 = vmatpush1.msra.mxu0 0.0
    %2095 = vmatprep.subr.mxu0 0.0
    %2096 = vmatpush1.msra.mxu0 0.0
    %2097 = vmatprep.subr.mxu0 0.0
    %2098 = vmatpush1.msra.mxu0 0.0
    %2099 = vmatprep.subr.mxu0 0.0
    %2100 = vmatpush1.msra.mxu0 0.0
    %2101 = vmatprep.subr.mxu0 0.0
    %2102 = vmatpush1.msra.mxu0 0.0
    %2103 = vmatprep.subr.mxu0 0.0
    %2104 = vmatpush1.msra.mxu0 0.0
    %2105 = vmatprep.mubr.f32.mxu0 0.0
    %v2106 = vand.u32 %v1359, 4294901760
    %v2107 = vsub.f32 %v1359, %v2106
    %v2108 = vand.u32 %v2107, 4294901760
    %2109 = vmatmul.mubr.f32.gmra.mrb[0].mxu0 %v2108
    %v2110 = vpop.f32.mrb[0].mxu0
    %v2111 = vadd.f32 %v1925, %v2110
    %v2112 = vpop.f32.mrb[0].mxu0
    %2113 = vmatprep.mubr.f32.mxu0 0.0
    %v2114 = vand.u32 %v1362, 4294901760
    %v2115 = vsub.f32 %v1362, %v2114
    %v2116 = vand.u32 %v2115, 4294901760
    %2117 = vmatmul.mubr.f32.gmra.mrb[0].mxu0 %v2116
    %v2118 = vpop.f32.mrb[0].mxu0
    %v2119 = vadd.f32 %v1932, %v2118
    %v2120 = vpop.f32.mrb[0].mxu0
    %2121 = vmatprep.mubr.f32.mxu0 0.0
    %v2122 = vand.u32 %v1365, 4294901760
    %v2123 = vsub.f32 %v1365, %v2122
    %v2124 = vand.u32 %v2123, 4294901760
    %2125 = vmatmul.mubr.f32.gmra.mrb[0].mxu0 %v2124
    %v2126 = vpop.f32.mrb[0].mxu0
    %v2127 = vadd.f32 %v1939, %v2126
    %v2128 = vpop.f32.mrb[0].mxu0
    %2129 = vmatprep.mubr.f32.mxu0 0.0
    %v2130 = vand.u32 %v1368, 4294901760
    %v2131 = vsub.f32 %v1368, %v2130
    %v2132 = vand.u32 %v2131, 4294901760
    %2133 = vmatmul.mubr.f32.gmra.mrb[0].mxu0 %v2132
    %v2134 = vpop.f32.mrb[0].mxu0
    %v2135 = vadd.f32 %v1946, %v2134
    %v2136 = vpop.f32.mrb[0].mxu0
    %2137 = vmatprep.mubr.f32.mxu0 0.0
    %v2138 = vand.u32 %v1371, 4294901760
    %v2139 = vsub.f32 %v1371, %v2138
    %v2140 = vand.u32 %v2139, 4294901760
    %2141 = vmatmul.mubr.f32.gmra.mrb[0].mxu0 %v2140
    %v2142 = vpop.f32.mrb[0].mxu0
    %v2143 = vadd.f32 %v1953, %v2142
    %v2144 = vpop.f32.mrb[0].mxu0
    %2145 = vmatprep.mubr.f32.mxu0 0.0
    %v2146 = vand.u32 %v1374, 4294901760
    %v2147 = vsub.f32 %v1374, %v2146
    %v2148 = vand.u32 %v2147, 4294901760
    %2149 = vmatmul.mubr.f32.gmra.mrb[0].mxu0 %v2148
    %v2150 = vpop.f32.mrb[0].mxu0
    %v2151 = vadd.f32 %v1960, %v2150
    %v2152 = vpop.f32.mrb[0].mxu0
    %2153 = vmatprep.mubr.f32.mxu0 0.0
    %v2154 = vand.u32 %v1377, 4294901760
    %v2155 = vsub.f32 %v1377, %v2154
    %v2156 = vand.u32 %v2155, 4294901760
    %2157 = vmatmul.mubr.f32.gmra.mrb[0].mxu0 %v2156
    %v2158 = vpop.f32.mrb[0].mxu0
    %v2159 = vadd.f32 %v1967, %v2158
    %v2160 = vpop.f32.mrb[0].mxu0
    %2161 = vmatprep.mubr.f32.mxu0 0.0
    %v2162 = vand.u32 %v1380, 4294901760
    %v2163 = vsub.f32 %v1380, %v2162
    %v2164 = vand.u32 %v2163, 4294901760
    %2165 = vmatmul.mubr.f32.gmra.mrb[0].mxu0 %v2164
    %v2166 = vpop.f32.mrb[0].mxu0
    %v2167 = vadd.f32 %v1974, %v2166
    %v2168 = vpop.f32.mrb[0].mxu0
    %2169 = vmatprep.mubr.f32.mxu0 0.0
    %v2170 = vand.u32 %v1383, 4294901760
    %v2171 = vsub.f32 %v1383, %v2170
    %v2172 = vand.u32 %v2171, 4294901760
    %2173 = vmatmul.mubr.f32.gmra.mrb[0].mxu0 %v2172
    %v2174 = vpop.f32.mrb[0].mxu0
    %v2175 = vadd.f32 %v1981, %v2174
    %v2176 = vpop.f32.mrb[0].mxu0
    %2177 = vmatprep.mubr.f32.mxu0 0.0
    %v2178 = vand.u32 %v1386, 4294901760
    %v2179 = vsub.f32 %v1386, %v2178
    %v2180 = vand.u32 %v2179, 4294901760
    %2181 = vmatmul.mubr.f32.gmra.mrb[0].mxu0 %v2180
    %v2182 = vpop.f32.mrb[0].mxu0
    %v2183 = vadd.f32 %v1988, %v2182
    %v2184 = vpop.f32.mrb[0].mxu0
    %2185 = vmatprep.mubr.f32.mxu0 0.0
    %v2186 = vand.u32 %v1389, 4294901760
    %v2187 = vsub.f32 %v1389, %v2186
    %v2188 = vand.u32 %v2187, 4294901760
    %2189 = vmatmul.mubr.f32.gmra.mrb[0].mxu0 %v2188
    %v2190 = vpop.f32.mrb[0].mxu0
    %v2191 = vadd.f32 %v1995, %v2190
    %v2192 = vpop.f32.mrb[0].mxu0
    %2193 = vmatprep.mubr.f32.mxu0 0.0
    %v2194 = vand.u32 %v1392, 4294901760
    %v2195 = vsub.f32 %v1392, %v2194
    %v2196 = vand.u32 %v2195, 4294901760
    %2197 = vmatmul.mubr.f32.gmra.mrb[0].mxu0 %v2196
    %v2198 = vpop.f32.mrb[0].mxu0
    %v2199 = vadd.f32 %v2002, %v2198
    %v2200 = vpop.f32.mrb[0].mxu0
    %2201 = vmatprep.mubr.f32.mxu0 0.0
    %v2202 = vand.u32 %v1395, 4294901760
    %v2203 = vsub.f32 %v1395, %v2202
    %v2204 = vand.u32 %v2203, 4294901760
    %2205 = vmatmul.mubr.f32.gmra.mrb[0].mxu0 %v2204
    %v2206 = vpop.f32.mrb[0].mxu0
    %v2207 = vadd.f32 %v2009, %v2206
    %v2208 = vpop.f32.mrb[0].mxu0
    %2209 = vmatprep.mubr.f32.mxu0 0.0
    %v2210 = vand.u32 %v1398, 4294901760
    %v2211 = vsub.f32 %v1398, %v2210
    %v2212 = vand.u32 %v2211, 4294901760
    %2213 = vmatmul.mubr.f32.gmra.mrb[0].mxu0 %v2212
    %v2214 = vpop.f32.mrb[0].mxu0
    %v2215 = vadd.f32 %v2016, %v2214
    %v2216 = vpop.f32.mrb[0].mxu0
    %2217 = vmatprep.mubr.f32.mxu0 0.0
    %v2218 = vand.u32 %v1401, 4294901760
    %v2219 = vsub.f32 %v1401, %v2218
    %v2220 = vand.u32 %v2219, 4294901760
    %2221 = vmatmul.mubr.f32.gmra.mrb[0].mxu0 %v2220
    %v2222 = vpop.f32.mrb[0].mxu0
    %v2223 = vadd.f32 %v2023, %v2222
    %v2224 = vpop.f32.mrb[0].mxu0
    %2225 = vmatprep.mubr.f32.mxu0 0.0
    %v2226 = vand.u32 %v1404, 4294901760
    %v2227 = vsub.f32 %v1404, %v2226
    %v2228 = vand.u32 %v2227, 4294901760
    %2229 = vmatmul.mubr.f32.gmra.mrb[0].mxu0 %v2228
    %v2230 = vpop.f32.mrb[0].mxu0
    %v2231 = vadd.f32 %v2030, %v2230
    %v2232 = vpop.f32.mrb[0].mxu0
    %2233 = vdwg.mxu0
    %2234 = vmatprep.subr.mxu0 0.0
    %v2235 = vand.u32 %v1345, 4294901760
    %v2236 = vsub.f32 %v1345, %v2235
    %v2237 = vand.u32 %v2236, 4294901760
    %2238 = vmatpush1.msra.mxu0 %v2237
    %2239 = vmatprep.subr.mxu0 0.0
    %v2240 = vand.u32 %v1346, 4294901760
    %v2241 = vsub.f32 %v1346, %v2240
    %v2242 = vand.u32 %v2241, 4294901760
    %2243 = vmatpush1.msra.mxu0 %v2242
    %2244 = vmatprep.subr.mxu0 0.0
    %v2245 = vand.u32 %v1347, 4294901760
    %v2246 = vsub.f32 %v1347, %v2245
    %v2247 = vand.u32 %v2246, 4294901760
    %2248 = vmatpush1.msra.mxu0 %v2247
    %2249 = vmatprep.subr.mxu0 0.0
    %v2250 = vand.u32 %v1348, 4294901760
    %v2251 = vsub.f32 %v1348, %v2250
    %v2252 = vand.u32 %v2251, 4294901760
    %2253 = vmatpush1.msra.mxu0 %v2252
    %2254 = vmatprep.subr.mxu0 0.0
    %v2255 = vand.u32 %v1349, 4294901760
    %v2256 = vsub.f32 %v1349, %v2255
    %v2257 = vand.u32 %v2256, 4294901760
    %2258 = vmatpush1.msra.mxu0 %v2257
    %2259 = vmatprep.subr.mxu0 0.0
    %v2260 = vand.u32 %v1350, 4294901760
    %v2261 = vsub.f32 %v1350, %v2260
    %v2262 = vand.u32 %v2261, 4294901760
    %2263 = vmatpush1.msra.mxu0 %v2262
    %2264 = vmatprep.subr.mxu0 0.0
    %v2265 = vand.u32 %v1351, 4294901760
    %v2266 = vsub.f32 %v1351, %v2265
    %v2267 = vand.u32 %v2266, 4294901760
    %2268 = vmatpush1.msra.mxu0 %v2267
    %2269 = vmatprep.subr.mxu0 0.0
    %v2270 = vand.u32 %v1352, 4294901760
    %v2271 = vsub.f32 %v1352, %v2270
    %v2272 = vand.u32 %v2271, 4294901760
    %2273 = vmatpush1.msra.mxu0 %v2272
    %2274 = vmatprep.subr.mxu0 0.0
    %2275 = vmatpush1.msra.mxu0 0.0
    %2276 = vmatprep.subr.mxu0 0.0
    %2277 = vmatpush1.msra.mxu0 0.0
    %2278 = vmatprep.subr.mxu0 0.0
    %2279 = vmatpush1.msra.mxu0 0.0
    %2280 = vmatprep.subr.mxu0 0.0
    %2281 = vmatpush1.msra.mxu0 0.0
    %2282 = vmatprep.subr.mxu0 0.0
    %2283 = vmatpush1.msra.mxu0 0.0
    %2284 = vmatprep.subr.mxu0 0.0
    %2285 = vmatpush1.msra.mxu0 0.0
    %2286 = vmatprep.subr.mxu0 0.0
    %2287 = vmatpush1.msra.mxu0 0.0
    %2288 = vmatprep.subr.mxu0 0.0
    %2289 = vmatpush1.msra.mxu0 0.0
    %2290 = vmatprep.subr.mxu0 0.0
    %2291 = vmatpush1.msra.mxu0 0.0
    %2292 = vmatprep.subr.mxu0 0.0
    %2293 = vmatpush1.msra.mxu0 0.0
    %2294 = vmatprep.subr.mxu0 0.0
    %2295 = vmatpush1.msra.mxu0 0.0
    %2296 = vmatprep.subr.mxu0 0.0
    %2297 = vmatpush1.msra.mxu0 0.0
    %2298 = vmatprep.subr.mxu0 0.0
    %2299 = vmatpush1.msra.mxu0 0.0
    %2300 = vmatprep.subr.mxu0 0.0
    %2301 = vmatpush1.msra.mxu0 0.0
    %2302 = vmatprep.subr.mxu0 0.0
    %2303 = vmatpush1.msra.mxu0 0.0
    %2304 = vmatprep.subr.mxu0 0.0
    %2305 = vmatpush1.msra.mxu0 0.0
    %2306 = vmatprep.subr.mxu0 0.0
    %2307 = vmatpush1.msra.mxu0 0.0
    %2308 = vmatprep.subr.mxu0 0.0
    %2309 = vmatpush1.msra.mxu0 0.0
    %2310 = vmatprep.subr.mxu0 0.0
    %2311 = vmatpush1.msra.mxu0 0.0
    %2312 = vmatprep.subr.mxu0 0.0
    %2313 = vmatpush1.msra.mxu0 0.0
    %2314 = vmatprep.subr.mxu0 0.0
    %2315 = vmatpush1.msra.mxu0 0.0
    %2316 = vmatprep.subr.mxu0 0.0
    %2317 = vmatpush1.msra.mxu0 0.0
    %2318 = vmatprep.subr.mxu0 0.0
    %2319 = vmatpush1.msra.mxu0 0.0
    %2320 = vmatprep.subr.mxu0 0.0
    %2321 = vmatpush1.msra.mxu0 0.0
    %2322 = vmatprep.mubr.f32.mxu0 0.0
    %v2323 = vand.u32 %v1359, 4294901760
    %2324 = vmatmul.mubr.f32.gmra.mrb[0].mxu0 %v2323
    %v2325 = vpop.f32.mrb[0].mxu0
    %v2326 = vadd.f32 %v2111, %v2325
    %v2327 = vpop.f32.mrb[0].mxu0
    %2328 = vmatprep.mubr.f32.mxu0 0.0
    %v2329 = vand.u32 %v1362, 4294901760
    %2330 = vmatmul.mubr.f32.gmra.mrb[0].mxu0 %v2329
    %v2331 = vpop.f32.mrb[0].mxu0
    %v2332 = vadd.f32 %v2119, %v2331
    %v2333 = vpop.f32.mrb[0].mxu0
    %2334 = vmatprep.mubr.f32.mxu0 0.0
    %v2335 = vand.u32 %v1365, 4294901760
    %2336 = vmatmul.mubr.f32.gmra.mrb[0].mxu0 %v2335
    %v2337 = vpop.f32.mrb[0].mxu0
    %v2338 = vadd.f32 %v2127, %v2337
    %v2339 = vpop.f32.mrb[0].mxu0
    %2340 = vmatprep.mubr.f32.mxu0 0.0
    %v2341 = vand.u32 %v1368, 4294901760
    %2342 = vmatmul.mubr.f32.gmra.mrb[0].mxu0 %v2341
    %v2343 = vpop.f32.mrb[0].mxu0
    %v2344 = vadd.f32 %v2135, %v2343
    %v2345 = vpop.f32.mrb[0].mxu0
    %2346 = vmatprep.mubr.f32.mxu0 0.0
    %v2347 = vand.u32 %v1371, 4294901760
    %2348 = vmatmul.mubr.f32.gmra.mrb[0].mxu0 %v2347
    %v2349 = vpop.f32.mrb[0].mxu0
    %v2350 = vadd.f32 %v2143, %v2349
    %v2351 = vpop.f32.mrb[0].mxu0
    %2352 = vmatprep.mubr.f32.mxu0 0.0
    %v2353 = vand.u32 %v1374, 4294901760
    %2354 = vmatmul.mubr.f32.gmra.mrb[0].mxu0 %v2353
    %v2355 = vpop.f32.mrb[0].mxu0
    %v2356 = vadd.f32 %v2151, %v2355
    %v2357 = vpop.f32.mrb[0].mxu0
    %2358 = vmatprep.mubr.f32.mxu0 0.0
    %v2359 = vand.u32 %v1377, 4294901760
    %2360 = vmatmul.mubr.f32.gmra.mrb[0].mxu0 %v2359
    %v2361 = vpop.f32.mrb[0].mxu0
    %v2362 = vadd.f32 %v2159, %v2361
    %v2363 = vpop.f32.mrb[0].mxu0
    %2364 = vmatprep.mubr.f32.mxu0 0.0
    %v2365 = vand.u32 %v1380, 4294901760
    %2366 = vmatmul.mubr.f32.gmra.mrb[0].mxu0 %v2365
    %v2367 = vpop.f32.mrb[0].mxu0
    %v2368 = vadd.f32 %v2167, %v2367
    %v2369 = vpop.f32.mrb[0].mxu0
    %2370 = vmatprep.mubr.f32.mxu0 0.0
    %v2371 = vand.u32 %v1383, 4294901760
    %2372 = vmatmul.mubr.f32.gmra.mrb[0].mxu0 %v2371
    %v2373 = vpop.f32.mrb[0].mxu0
    %v2374 = vadd.f32 %v2175, %v2373
    %v2375 = vpop.f32.mrb[0].mxu0
    %2376 = vmatprep.mubr.f32.mxu0 0.0
    %v2377 = vand.u32 %v1386, 4294901760
    %2378 = vmatmul.mubr.f32.gmra.mrb[0].mxu0 %v2377
    %v2379 = vpop.f32.mrb[0].mxu0
    %v2380 = vadd.f32 %v2183, %v2379
    %v2381 = vpop.f32.mrb[0].mxu0
    %2382 = vmatprep.mubr.f32.mxu0 0.0
    %v2383 = vand.u32 %v1389, 4294901760
    %2384 = vmatmul.mubr.f32.gmra.mrb[0].mxu0 %v2383
    %v2385 = vpop.f32.mrb[0].mxu0
    %v2386 = vadd.f32 %v2191, %v2385
    %v2387 = vpop.f32.mrb[0].mxu0
    %2388 = vmatprep.mubr.f32.mxu0 0.0
    %v2389 = vand.u32 %v1392, 4294901760
    %2390 = vmatmul.mubr.f32.gmra.mrb[0].mxu0 %v2389
    %v2391 = vpop.f32.mrb[0].mxu0
    %v2392 = vadd.f32 %v2199, %v2391
    %v2393 = vpop.f32.mrb[0].mxu0
    %2394 = vmatprep.mubr.f32.mxu0 0.0
    %v2395 = vand.u32 %v1395, 4294901760
    %2396 = vmatmul.mubr.f32.gmra.mrb[0].mxu0 %v2395
    %v2397 = vpop.f32.mrb[0].mxu0
    %v2398 = vadd.f32 %v2207, %v2397
    %v2399 = vpop.f32.mrb[0].mxu0
    %2400 = vmatprep.mubr.f32.mxu0 0.0
    %v2401 = vand.u32 %v1398, 4294901760
    %2402 = vmatmul.mubr.f32.gmra.mrb[0].mxu0 %v2401
    %v2403 = vpop.f32.mrb[0].mxu0
    %v2404 = vadd.f32 %v2215, %v2403
    %v2405 = vpop.f32.mrb[0].mxu0
    %2406 = vmatprep.mubr.f32.mxu0 0.0
    %v2407 = vand.u32 %v1401, 4294901760
    %2408 = vmatmul.mubr.f32.gmra.mrb[0].mxu0 %v2407
    %v2409 = vpop.f32.mrb[0].mxu0
    %v2410 = vadd.f32 %v2223, %v2409
    %v2411 = vpop.f32.mrb[0].mxu0
    %2412 = vmatprep.mubr.f32.mxu0 0.0
    %v2413 = vand.u32 %v1404, 4294901760
    %2414 = vmatmul.mubr.f32.gmra.mrb[0].mxu0 %v2413
    %v2415 = vpop.f32.mrb[0].mxu0
    %v2416 = vadd.f32 %v2231, %v2415
    %v2417 = vpop.f32.mrb[0].mxu0
    %2418 = vdwg.mxu0
    %2419 = vmatprep.subr.mxu0 0.0
    %v2420 = vand.u32 %v1345, 4294901760
    %2421 = vmatpush1.msra.mxu0 %v2420
    %2422 = vmatprep.subr.mxu0 0.0
    %v2423 = vand.u32 %v1346, 4294901760
    %2424 = vmatpush1.msra.mxu0 %v2423
    %2425 = vmatprep.subr.mxu0 0.0
    %v2426 = vand.u32 %v1347, 4294901760
    %2427 = vmatpush1.msra.mxu0 %v2426
    %2428 = vmatprep.subr.mxu0 0.0
    %v2429 = vand.u32 %v1348, 4294901760
    %2430 = vmatpush1.msra.mxu0 %v2429
    %2431 = vmatprep.subr.mxu0 0.0
    %v2432 = vand.u32 %v1349, 4294901760
    %2433 = vmatpush1.msra.mxu0 %v2432
    %2434 = vmatprep.subr.mxu0 0.0
    %v2435 = vand.u32 %v1350, 4294901760
    %2436 = vmatpush1.msra.mxu0 %v2435
    %2437 = vmatprep.subr.mxu0 0.0
    %v2438 = vand.u32 %v1351, 4294901760
    %2439 = vmatpush1.msra.mxu0 %v2438
    %2440 = vmatprep.subr.mxu0 0.0
    %v2441 = vand.u32 %v1352, 4294901760
    %2442 = vmatpush1.msra.mxu0 %v2441
    %2443 = vmatprep.subr.mxu0 0.0
    %2444 = vmatpush1.msra.mxu0 0.0
    %2445 = vmatprep.subr.mxu0 0.0
    %2446 = vmatpush1.msra.mxu0 0.0
    %2447 = vmatprep.subr.mxu0 0.0
    %2448 = vmatpush1.msra.mxu0 0.0
    %2449 = vmatprep.subr.mxu0 0.0
    %2450 = vmatpush1.msra.mxu0 0.0
    %2451 = vmatprep.subr.mxu0 0.0
    %2452 = vmatpush1.msra.mxu0 0.0
    %2453 = vmatprep.subr.mxu0 0.0
    %2454 = vmatpush1.msra.mxu0 0.0
    %2455 = vmatprep.subr.mxu0 0.0
    %2456 = vmatpush1.msra.mxu0 0.0
    %2457 = vmatprep.subr.mxu0 0.0
    %2458 = vmatpush1.msra.mxu0 0.0
    %2459 = vmatprep.subr.mxu0 0.0
    %2460 = vmatpush1.msra.mxu0 0.0
    %2461 = vmatprep.subr.mxu0 0.0
    %2462 = vmatpush1.msra.mxu0 0.0
    %2463 = vmatprep.subr.mxu0 0.0
    %2464 = vmatpush1.msra.mxu0 0.0
    %2465 = vmatprep.subr.mxu0 0.0
    %2466 = vmatpush1.msra.mxu0 0.0
    %2467 = vmatprep.subr.mxu0 0.0
    %2468 = vmatpush1.msra.mxu0 0.0
    %2469 = vmatprep.subr.mxu0 0.0
    %2470 = vmatpush1.msra.mxu0 0.0
    %2471 = vmatprep.subr.mxu0 0.0
    %2472 = vmatpush1.msra.mxu0 0.0
    %2473 = vmatprep.subr.mxu0 0.0
    %2474 = vmatpush1.msra.mxu0 0.0
    %2475 = vmatprep.subr.mxu0 0.0
    %2476 = vmatpush1.msra.mxu0 0.0
    %2477 = vmatprep.subr.mxu0 0.0
    %2478 = vmatpush1.msra.mxu0 0.0
    %2479 = vmatprep.subr.mxu0 0.0
    %2480 = vmatpush1.msra.mxu0 0.0
    %2481 = vmatprep.subr.mxu0 0.0
    %2482 = vmatpush1.msra.mxu0 0.0
    %2483 = vmatprep.subr.mxu0 0.0
    %2484 = vmatpush1.msra.mxu0 0.0
    %2485 = vmatprep.subr.mxu0 0.0
    %2486 = vmatpush1.msra.mxu0 0.0
    %2487 = vmatprep.subr.mxu0 0.0
    %2488 = vmatpush1.msra.mxu0 0.0
    %2489 = vmatprep.subr.mxu0 0.0
    %2490 = vmatpush1.msra.mxu0 0.0
    %2491 = vmatprep.mubr.f32.mxu0 0.0
    %v2492 = vand.u32 %v1359, 4294901760
    %2493 = vmatmul.mubr.f32.gmra.mrb[0].mxu0 %v2492
    %v2494 = vpop.f32.mrb[0].mxu0
    %v2495 = vadd.f32 %v2326, %v2494
    %v2496 = vpop.f32.mrb[0].mxu0
    %2497 = vmatprep.mubr.f32.mxu0 0.0
    %v2498 = vand.u32 %v1362, 4294901760
    %2499 = vmatmul.mubr.f32.gmra.mrb[0].mxu0 %v2498
    %v2500 = vpop.f32.mrb[0].mxu0
    %v2501 = vadd.f32 %v2332, %v2500
    %v2502 = vpop.f32.mrb[0].mxu0
    %2503 = vmatprep.mubr.f32.mxu0 0.0
    %v2504 = vand.u32 %v1365, 4294901760
    %2505 = vmatmul.mubr.f32.gmra.mrb[0].mxu0 %v2504
    %v2506 = vpop.f32.mrb[0].mxu0
    %v2507 = vadd.f32 %v2338, %v2506
    %v2508 = vpop.f32.mrb[0].mxu0
    %2509 = vmatprep.mubr.f32.mxu0 0.0
    %v2510 = vand.u32 %v1368, 4294901760
    %2511 = vmatmul.mubr.f32.gmra.mrb[0].mxu0 %v2510
    %v2512 = vpop.f32.mrb[0].mxu0
    %v2513 = vadd.f32 %v2344, %v2512
    %v2514 = vpop.f32.mrb[0].mxu0
    %2515 = vmatprep.mubr.f32.mxu0 0.0
    %v2516 = vand.u32 %v1371, 4294901760
    %2517 = vmatmul.mubr.f32.gmra.mrb[0].mxu0 %v2516
    %v2518 = vpop.f32.mrb[0].mxu0
    %v2519 = vadd.f32 %v2350, %v2518
    %v2520 = vpop.f32.mrb[0].mxu0
    %2521 = vmatprep.mubr.f32.mxu0 0.0
    %v2522 = vand.u32 %v1374, 4294901760
    %2523 = vmatmul.mubr.f32.gmra.mrb[0].mxu0 %v2522
    %v2524 = vpop.f32.mrb[0].mxu0
    %v2525 = vadd.f32 %v2356, %v2524
    %v2526 = vpop.f32.mrb[0].mxu0
    %2527 = vmatprep.mubr.f32.mxu0 0.0
    %v2528 = vand.u32 %v1377, 4294901760
    %2529 = vmatmul.mubr.f32.gmra.mrb[0].mxu0 %v2528
    %v2530 = vpop.f32.mrb[0].mxu0
    %v2531 = vadd.f32 %v2362, %v2530
    %v2532 = vpop.f32.mrb[0].mxu0
    %2533 = vmatprep.mubr.f32.mxu0 0.0
    %v2534 = vand.u32 %v1380, 4294901760
    %2535 = vmatmul.mubr.f32.gmra.mrb[0].mxu0 %v2534
    %v2536 = vpop.f32.mrb[0].mxu0
    %v2537 = vadd.f32 %v2368, %v2536
    %v2538 = vpop.f32.mrb[0].mxu0
    %2539 = vmatprep.mubr.f32.mxu0 0.0
    %v2540 = vand.u32 %v1383, 4294901760
    %2541 = vmatmul.mubr.f32.gmra.mrb[0].mxu0 %v2540
    %v2542 = vpop.f32.mrb[0].mxu0
    %v2543 = vadd.f32 %v2374, %v2542
    %v2544 = vpop.f32.mrb[0].mxu0
    %2545 = vmatprep.mubr.f32.mxu0 0.0
    %v2546 = vand.u32 %v1386, 4294901760
    %2547 = vmatmul.mubr.f32.gmra.mrb[0].mxu0 %v2546
    %v2548 = vpop.f32.mrb[0].mxu0
    %v2549 = vadd.f32 %v2380, %v2548
    %v2550 = vpop.f32.mrb[0].mxu0
    %2551 = vmatprep.mubr.f32.mxu0 0.0
    %v2552 = vand.u32 %v1389, 4294901760
    %2553 = vmatmul.mubr.f32.gmra.mrb[0].mxu0 %v2552
    %v2554 = vpop.f32.mrb[0].mxu0
    %v2555 = vadd.f32 %v2386, %v2554
    %v2556 = vpop.f32.mrb[0].mxu0
    %2557 = vmatprep.mubr.f32.mxu0 0.0
    %v2558 = vand.u32 %v1392, 4294901760
    %2559 = vmatmul.mubr.f32.gmra.mrb[0].mxu0 %v2558
    %v2560 = vpop.f32.mrb[0].mxu0
    %v2561 = vadd.f32 %v2392, %v2560
    %v2562 = vpop.f32.mrb[0].mxu0
    %2563 = vmatprep.mubr.f32.mxu0 0.0
    %v2564 = vand.u32 %v1395, 4294901760
    %2565 = vmatmul.mubr.f32.gmra.mrb[0].mxu0 %v2564
    %v2566 = vpop.f32.mrb[0].mxu0
    %v2567 = vadd.f32 %v2398, %v2566
    %v2568 = vpop.f32.mrb[0].mxu0
    %2569 = vmatprep.mubr.f32.mxu0 0.0
    %v2570 = vand.u32 %v1398, 4294901760
    %2571 = vmatmul.mubr.f32.gmra.mrb[0].mxu0 %v2570
    %v2572 = vpop.f32.mrb[0].mxu0
    %v2573 = vadd.f32 %v2404, %v2572
    %v2574 = vpop.f32.mrb[0].mxu0
    %2575 = vmatprep.mubr.f32.mxu0 0.0
    %v2576 = vand.u32 %v1401, 4294901760
    %2577 = vmatmul.mubr.f32.gmra.mrb[0].mxu0 %v2576
    %v2578 = vpop.f32.mrb[0].mxu0
    %v2579 = vadd.f32 %v2410, %v2578
    %v2580 = vpop.f32.mrb[0].mxu0
    %2581 = vmatprep.mubr.f32.mxu0 0.0
    %v2582 = vand.u32 %v1404, 4294901760
    %2583 = vmatmul.mubr.f32.gmra.mrb[0].mxu0 %v2582
    %v2584 = vpop.f32.mrb[0].mxu0
    %v2585 = vadd.f32 %v2416, %v2584
    %v2586 = vpop.f32.mrb[0].mxu0
    %2587 = vdwg.mxu0
    %v2588 = vmax.f32 %v2495, 0.0
    %v2589 = vmax.f32 %v2501, 0.0
    %v2590 = vmax.f32 %v2507, 0.0
    %v2591 = vmax.f32 %v2513, 0.0
    %v2592 = vmax.f32 %v2519, 0.0
    %v2593 = vmax.f32 %v2525, 0.0
    %v2594 = vmax.f32 %v2531, 0.0
    %v2595 = vmax.f32 %v2537, 0.0
    %v2596 = vmax.f32 %v2543, 0.0
    %v2597 = vmax.f32 %v2549, 0.0
    %v2598 = vmax.f32 %v2555, 0.0
    %v2599 = vmax.f32 %v2561, 0.0
    %v2600 = vmax.f32 %v2567, 0.0
    %v2601 = vmax.f32 %v2573, 0.0
    %v2602 = vmax.f32 %v2579, 0.0
    %v2603 = vmax.f32 %v2585, 0.0
    %v2604 = vld [vmem:[%s4] sm:$0xff]
    %v2605 = vld [vmem:[%s4 + $0x8] sm:$0xff]
    %v2606 = vld [vmem:[%s4 + $0x10] sm:$0xff]
    %v2607 = vld [vmem:[%s4 + $0x18] sm:$0xff]
    %v2608 = vld [vmem:[%s4 + $0x20] sm:$0xff]
    %v2609 = vld [vmem:[%s4 + $0x28] sm:$0xff]
    %v2610 = vld [vmem:[%s4 + $0x30] sm:$0xff]
    %v2611 = vld [vmem:[%s4 + $0x38] sm:$0xff]
    %v2612 = vlaneseq
    %v2613 = vshrl.u32 %v2612, 7
    %v2614 = vsub.s32 2, %v2613
    %v2615 = vrot.slane %v151, %v2614
    %v2617 = vsel %vm1357, %v2588, 0
    %v2620 = vsel %vm1357, %v2589, 0
    %v2623 = vsel %vm1357, %v2590, 0
    %v2626 = vsel %vm1357, %v2591, 0
    %v2629 = vsel %vm1357, %v2592, 0
    %v2632 = vsel %vm1357, %v2593, 0
    %v2635 = vsel %vm1357, %v2594, 0
    %v2638 = vsel %vm1357, %v2595, 0
    %v2641 = vsel %vm1357, %v2596, 0
    %v2644 = vsel %vm1357, %v2597, 0
    %v2647 = vsel %vm1357, %v2598, 0
    %v2650 = vsel %vm1357, %v2599, 0
    %v2653 = vsel %vm1357, %v2600, 0
    %v2656 = vsel %vm1357, %v2601, 0
    %v2659 = vsel %vm1357, %v2602, 0
    %v2662 = vsel %vm1357, %v2603, 0
    %2664 = vmatprep.subr.mxu0 0.0
    %v2665 = vand.u32 %v2604, 4294901760
    %2666 = vmatpush1.msra.mxu0 %v2665
    %2667 = vmatprep.subr.mxu0 0.0
    %v2668 = vand.u32 %v2605, 4294901760
    %2669 = vmatpush1.msra.mxu0 %v2668
    %2670 = vmatprep.subr.mxu0 0.0
    %v2671 = vand.u32 %v2606, 4294901760
    %2672 = vmatpush1.msra.mxu0 %v2671
    %2673 = vmatprep.subr.mxu0 0.0
    %v2674 = vand.u32 %v2607, 4294901760
    %2675 = vmatpush1.msra.mxu0 %v2674
    %2676 = vmatprep.subr.mxu0 0.0
    %v2677 = vand.u32 %v2608, 4294901760
    %2678 = vmatpush1.msra.mxu0 %v2677
    %2679 = vmatprep.subr.mxu0 0.0
    %v2680 = vand.u32 %v2609, 4294901760
    %2681 = vmatpush1.msra.mxu0 %v2680
    %2682 = vmatprep.subr.mxu0 0.0
    %v2683 = vand.u32 %v2610, 4294901760
    %2684 = vmatpush1.msra.mxu0 %v2683
    %2685 = vmatprep.subr.mxu0 0.0
    %v2686 = vand.u32 %v2611, 4294901760
    %2687 = vmatpush1.msra.mxu0 %v2686
    %2688 = vmatprep.subr.mxu0 0.0
    %2689 = vmatpush1.msra.mxu0 0.0
    %2690 = vmatprep.subr.mxu0 0.0
    %2691 = vmatpush1.msra.mxu0 0.0
    %2692 = vmatprep.subr.mxu0 0.0
    %2693 = vmatpush1.msra.mxu0 0.0
    %2694 = vmatprep.subr.mxu0 0.0
    %2695 = vmatpush1.msra.mxu0 0.0
    %2696 = vmatprep.subr.mxu0 0.0
    %2697 = vmatpush1.msra.mxu0 0.0
    %2698 = vmatprep.subr.mxu0 0.0
    %2699 = vmatpush1.msra.mxu0 0.0
    %2700 = vmatprep.subr.mxu0 0.0
    %2701 = vmatpush1.msra.mxu0 0.0
    %2702 = vmatprep.subr.mxu0 0.0
    %2703 = vmatpush1.msra.mxu0 0.0
    %2704 = vmatprep.subr.mxu0 0.0
    %2705 = vmatpush1.msra.mxu0 0.0
    %2706 = vmatprep.subr.mxu0 0.0
    %2707 = vmatpush1.msra.mxu0 0.0
    %2708 = vmatprep.subr.mxu0 0.0
    %2709 = vmatpush1.msra.mxu0 0.0
    %2710 = vmatprep.subr.mxu0 0.0
    %2711 = vmatpush1.msra.mxu0 0.0
    %2712 = vmatprep.subr.mxu0 0.0
    %2713 = vmatpush1.msra.mxu0 0.0
    %2714 = vmatprep.subr.mxu0 0.0
    %2715 = vmatpush1.msra.mxu0 0.0
    %2716 = vmatprep.subr.mxu0 0.0
    %2717 = vmatpush1.msra.mxu0 0.0
    %2718 = vmatprep.subr.mxu0 0.0
    %2719 = vmatpush1.msra.mxu0 0.0
    %2720 = vmatprep.subr.mxu0 0.0
    %2721 = vmatpush1.msra.mxu0 0.0
    %2722 = vmatprep.subr.mxu0 0.0
    %2723 = vmatpush1.msra.mxu0 0.0
    %2724 = vmatprep.subr.mxu0 0.0
    %2725 = vmatpush1.msra.mxu0 0.0
    %2726 = vmatprep.subr.mxu0 0.0
    %2727 = vmatpush1.msra.mxu0 0.0
    %2728 = vmatprep.subr.mxu0 0.0
    %2729 = vmatpush1.msra.mxu0 0.0
    %2730 = vmatprep.subr.mxu0 0.0
    %2731 = vmatpush1.msra.mxu0 0.0
    %2732 = vmatprep.subr.mxu0 0.0
    %2733 = vmatpush1.msra.mxu0 0.0
    %2734 = vmatprep.subr.mxu0 0.0
    %2735 = vmatpush1.msra.mxu0 0.0
    %2736 = vmatprep.mubr.f32.mxu0 0.0
    %v2737 = vand.u32 %v2617, 4294901760
    %v2738 = vsub.f32 %v2617, %v2737
    %v2739 = vand.u32 %v2738, 4294901760
    %v2740 = vsub.f32 %v2738, %v2739
    %v2741 = vand.u32 %v2740, 4294901760
    %2742 = vmatmul.mubr.f32.gmra.mrb[0].mxu0 %v2741
    %v2743 = vpop.f32.mrb[0].mxu0
    %v2744 = vadd.f32 %v2615, %v2743
    %v2745 = vpop.f32.mrb[0].mxu0
    %2746 = vmatprep.mubr.f32.mxu0 0.0
    %v2747 = vand.u32 %v2620, 4294901760
    %v2748 = vsub.f32 %v2620, %v2747
    %v2749 = vand.u32 %v2748, 4294901760
    %v2750 = vsub.f32 %v2748, %v2749
    %v2751 = vand.u32 %v2750, 4294901760
    %2752 = vmatmul.mubr.f32.gmra.mrb[0].mxu0 %v2751
    %v2753 = vpop.f32.mrb[0].mxu0
    %v2754 = vadd.f32 %v2615, %v2753
    %v2755 = vpop.f32.mrb[0].mxu0
    %2756 = vmatprep.mubr.f32.mxu0 0.0
    %v2757 = vand.u32 %v2623, 4294901760
    %v2758 = vsub.f32 %v2623, %v2757
    %v2759 = vand.u32 %v2758, 4294901760
    %v2760 = vsub.f32 %v2758, %v2759
    %v2761 = vand.u32 %v2760, 4294901760
    %2762 = vmatmul.mubr.f32.gmra.mrb[0].mxu0 %v2761
    %v2763 = vpop.f32.mrb[0].mxu0
    %v2764 = vadd.f32 %v2615, %v2763
    %v2765 = vpop.f32.mrb[0].mxu0
    %2766 = vmatprep.mubr.f32.mxu0 0.0
    %v2767 = vand.u32 %v2626, 4294901760
    %v2768 = vsub.f32 %v2626, %v2767
    %v2769 = vand.u32 %v2768, 4294901760
    %v2770 = vsub.f32 %v2768, %v2769
    %v2771 = vand.u32 %v2770, 4294901760
    %2772 = vmatmul.mubr.f32.gmra.mrb[0].mxu0 %v2771
    %v2773 = vpop.f32.mrb[0].mxu0
    %v2774 = vadd.f32 %v2615, %v2773
    %v2775 = vpop.f32.mrb[0].mxu0
    %2776 = vmatprep.mubr.f32.mxu0 0.0
    %v2777 = vand.u32 %v2629, 4294901760
    %v2778 = vsub.f32 %v2629, %v2777
    %v2779 = vand.u32 %v2778, 4294901760
    %v2780 = vsub.f32 %v2778, %v2779
    %v2781 = vand.u32 %v2780, 4294901760
    %2782 = vmatmul.mubr.f32.gmra.mrb[0].mxu0 %v2781
    %v2783 = vpop.f32.mrb[0].mxu0
    %v2784 = vadd.f32 %v2615, %v2783
    %v2785 = vpop.f32.mrb[0].mxu0
    %2786 = vmatprep.mubr.f32.mxu0 0.0
    %v2787 = vand.u32 %v2632, 4294901760
    %v2788 = vsub.f32 %v2632, %v2787
    %v2789 = vand.u32 %v2788, 4294901760
    %v2790 = vsub.f32 %v2788, %v2789
    %v2791 = vand.u32 %v2790, 4294901760
    %2792 = vmatmul.mubr.f32.gmra.mrb[0].mxu0 %v2791
    %v2793 = vpop.f32.mrb[0].mxu0
    %v2794 = vadd.f32 %v2615, %v2793
    %v2795 = vpop.f32.mrb[0].mxu0
    %2796 = vmatprep.mubr.f32.mxu0 0.0
    %v2797 = vand.u32 %v2635, 4294901760
    %v2798 = vsub.f32 %v2635, %v2797
    %v2799 = vand.u32 %v2798, 4294901760
    %v2800 = vsub.f32 %v2798, %v2799
    %v2801 = vand.u32 %v2800, 4294901760
    %2802 = vmatmul.mubr.f32.gmra.mrb[0].mxu0 %v2801
    %v2803 = vpop.f32.mrb[0].mxu0
    %v2804 = vadd.f32 %v2615, %v2803
    %v2805 = vpop.f32.mrb[0].mxu0
    %2806 = vmatprep.mubr.f32.mxu0 0.0
    %v2807 = vand.u32 %v2638, 4294901760
    %v2808 = vsub.f32 %v2638, %v2807
    %v2809 = vand.u32 %v2808, 4294901760
    %v2810 = vsub.f32 %v2808, %v2809
    %v2811 = vand.u32 %v2810, 4294901760
    %2812 = vmatmul.mubr.f32.gmra.mrb[0].mxu0 %v2811
    %v2813 = vpop.f32.mrb[0].mxu0
    %v2814 = vadd.f32 %v2615, %v2813
    %v2815 = vpop.f32.mrb[0].mxu0
    %2816 = vmatprep.mubr.f32.mxu0 0.0
    %v2817 = vand.u32 %v2641, 4294901760
    %v2818 = vsub.f32 %v2641, %v2817
    %v2819 = vand.u32 %v2818, 4294901760
    %v2820 = vsub.f32 %v2818, %v2819
    %v2821 = vand.u32 %v2820, 4294901760
    %2822 = vmatmul.mubr.f32.gmra.mrb[0].mxu0 %v2821
    %v2823 = vpop.f32.mrb[0].mxu0
    %v2824 = vadd.f32 %v2615, %v2823
    %v2825 = vpop.f32.mrb[0].mxu0
    %2826 = vmatprep.mubr.f32.mxu0 0.0
    %v2827 = vand.u32 %v2644, 4294901760
    %v2828 = vsub.f32 %v2644, %v2827
    %v2829 = vand.u32 %v2828, 4294901760
    %v2830 = vsub.f32 %v2828, %v2829
    %v2831 = vand.u32 %v2830, 4294901760
    %2832 = vmatmul.mubr.f32.gmra.mrb[0].mxu0 %v2831
    %v2833 = vpop.f32.mrb[0].mxu0
    %v2834 = vadd.f32 %v2615, %v2833
    %v2835 = vpop.f32.mrb[0].mxu0
    %2836 = vmatprep.mubr.f32.mxu0 0.0
    %v2837 = vand.u32 %v2647, 4294901760
    %v2838 = vsub.f32 %v2647, %v2837
    %v2839 = vand.u32 %v2838, 4294901760
    %v2840 = vsub.f32 %v2838, %v2839
    %v2841 = vand.u32 %v2840, 4294901760
    %2842 = vmatmul.mubr.f32.gmra.mrb[0].mxu0 %v2841
    %v2843 = vpop.f32.mrb[0].mxu0
    %v2844 = vadd.f32 %v2615, %v2843
    %v2845 = vpop.f32.mrb[0].mxu0
    %2846 = vmatprep.mubr.f32.mxu0 0.0
    %v2847 = vand.u32 %v2650, 4294901760
    %v2848 = vsub.f32 %v2650, %v2847
    %v2849 = vand.u32 %v2848, 4294901760
    %v2850 = vsub.f32 %v2848, %v2849
    %v2851 = vand.u32 %v2850, 4294901760
    %2852 = vmatmul.mubr.f32.gmra.mrb[0].mxu0 %v2851
    %v2853 = vpop.f32.mrb[0].mxu0
    %v2854 = vadd.f32 %v2615, %v2853
    %v2855 = vpop.f32.mrb[0].mxu0
    %2856 = vmatprep.mubr.f32.mxu0 0.0
    %v2857 = vand.u32 %v2653, 4294901760
    %v2858 = vsub.f32 %v2653, %v2857
    %v2859 = vand.u32 %v2858, 4294901760
    %v2860 = vsub.f32 %v2858, %v2859
    %v2861 = vand.u32 %v2860, 4294901760
    %2862 = vmatmul.mubr.f32.gmra.mrb[0].mxu0 %v2861
    %v2863 = vpop.f32.mrb[0].mxu0
    %v2864 = vadd.f32 %v2615, %v2863
    %v2865 = vpop.f32.mrb[0].mxu0
    %2866 = vmatprep.mubr.f32.mxu0 0.0
    %v2867 = vand.u32 %v2656, 4294901760
    %v2868 = vsub.f32 %v2656, %v2867
    %v2869 = vand.u32 %v2868, 4294901760
    %v2870 = vsub.f32 %v2868, %v2869
    %v2871 = vand.u32 %v2870, 4294901760
    %2872 = vmatmul.mubr.f32.gmra.mrb[0].mxu0 %v2871
    %v2873 = vpop.f32.mrb[0].mxu0
    %v2874 = vadd.f32 %v2615, %v2873
    %v2875 = vpop.f32.mrb[0].mxu0
    %2876 = vmatprep.mubr.f32.mxu0 0.0
    %v2877 = vand.u32 %v2659, 4294901760
    %v2878 = vsub.f32 %v2659, %v2877
    %v2879 = vand.u32 %v2878, 4294901760
    %v2880 = vsub.f32 %v2878, %v2879
    %v2881 = vand.u32 %v2880, 4294901760
    %2882 = vmatmul.mubr.f32.gmra.mrb[0].mxu0 %v2881
    %v2883 = vpop.f32.mrb[0].mxu0
    %v2884 = vadd.f32 %v2615, %v2883
    %v2885 = vpop.f32.mrb[0].mxu0
    %2886 = vmatprep.mubr.f32.mxu0 0.0
    %v2887 = vand.u32 %v2662, 4294901760
    %v2888 = vsub.f32 %v2662, %v2887
    %v2889 = vand.u32 %v2888, 4294901760
    %v2890 = vsub.f32 %v2888, %v2889
    %v2891 = vand.u32 %v2890, 4294901760
    %2892 = vmatmul.mubr.f32.gmra.mrb[0].mxu0 %v2891
    %v2893 = vpop.f32.mrb[0].mxu0
    %v2894 = vadd.f32 %v2615, %v2893
    %v2895 = vpop.f32.mrb[0].mxu0
    %2896 = vdwg.mxu0
    %2897 = vmatprep.subr.mxu0 0.0
    %v2898 = vand.u32 %v2604, 4294901760
    %v2899 = vsub.f32 %v2604, %v2898
    %v2900 = vand.u32 %v2899, 4294901760
    %v2901 = vsub.f32 %v2899, %v2900
    %v2902 = vand.u32 %v2901, 4294901760
    %2903 = vmatpush1.msra.mxu0 %v2902
    %2904 = vmatprep.subr.mxu0 0.0
    %v2905 = vand.u32 %v2605, 4294901760
    %v2906 = vsub.f32 %v2605, %v2905
    %v2907 = vand.u32 %v2906, 4294901760
    %v2908 = vsub.f32 %v2906, %v2907
    %v2909 = vand.u32 %v2908, 4294901760
    %2910 = vmatpush1.msra.mxu0 %v2909
    %2911 = vmatprep.subr.mxu0 0.0
    %v2912 = vand.u32 %v2606, 4294901760
    %v2913 = vsub.f32 %v2606, %v2912
    %v2914 = vand.u32 %v2913, 4294901760
    %v2915 = vsub.f32 %v2913, %v2914
    %v2916 = vand.u32 %v2915, 4294901760
    %2917 = vmatpush1.msra.mxu0 %v2916
    %2918 = vmatprep.subr.mxu0 0.0
    %v2919 = vand.u32 %v2607, 4294901760
    %v2920 = vsub.f32 %v2607, %v2919
    %v2921 = vand.u32 %v2920, 4294901760
    %v2922 = vsub.f32 %v2920, %v2921
    %v2923 = vand.u32 %v2922, 4294901760
    %2924 = vmatpush1.msra.mxu0 %v2923
    %2925 = vmatprep.subr.mxu0 0.0
    %v2926 = vand.u32 %v2608, 4294901760
    %v2927 = vsub.f32 %v2608, %v2926
    %v2928 = vand.u32 %v2927, 4294901760
    %v2929 = vsub.f32 %v2927, %v2928
    %v2930 = vand.u32 %v2929, 4294901760
    %2931 = vmatpush1.msra.mxu0 %v2930
    %2932 = vmatprep.subr.mxu0 0.0
    %v2933 = vand.u32 %v2609, 4294901760
    %v2934 = vsub.f32 %v2609, %v2933
    %v2935 = vand.u32 %v2934, 4294901760
    %v2936 = vsub.f32 %v2934, %v2935
    %v2937 = vand.u32 %v2936, 4294901760
    %2938 = vmatpush1.msra.mxu0 %v2937
    %2939 = vmatprep.subr.mxu0 0.0
    %v2940 = vand.u32 %v2610, 4294901760
    %v2941 = vsub.f32 %v2610, %v2940
    %v2942 = vand.u32 %v2941, 4294901760
    %v2943 = vsub.f32 %v2941, %v2942
    %v2944 = vand.u32 %v2943, 4294901760
    %2945 = vmatpush1.msra.mxu0 %v2944
    %2946 = vmatprep.subr.mxu0 0.0
    %v2947 = vand.u32 %v2611, 4294901760
    %v2948 = vsub.f32 %v2611, %v2947
    %v2949 = vand.u32 %v2948, 4294901760
    %v2950 = vsub.f32 %v2948, %v2949
    %v2951 = vand.u32 %v2950, 4294901760
    %2952 = vmatpush1.msra.mxu0 %v2951
    %2953 = vmatprep.subr.mxu0 0.0
    %2954 = vmatpush1.msra.mxu0 0.0
    %2955 = vmatprep.subr.mxu0 0.0
    %2956 = vmatpush1.msra.mxu0 0.0
    %2957 = vmatprep.subr.mxu0 0.0
    %2958 = vmatpush1.msra.mxu0 0.0
    %2959 = vmatprep.subr.mxu0 0.0
    %2960 = vmatpush1.msra.mxu0 0.0
    %2961 = vmatprep.subr.mxu0 0.0
    %2962 = vmatpush1.msra.mxu0 0.0
    %2963 = vmatprep.subr.mxu0 0.0
    %2964 = vmatpush1.msra.mxu0 0.0
    %2965 = vmatprep.subr.mxu0 0.0
    %2966 = vmatpush1.msra.mxu0 0.0
    %2967 = vmatprep.subr.mxu0 0.0
    %2968 = vmatpush1.msra.mxu0 0.0
    %2969 = vmatprep.subr.mxu0 0.0
    %2970 = vmatpush1.msra.mxu0 0.0
    %2971 = vmatprep.subr.mxu0 0.0
    %2972 = vmatpush1.msra.mxu0 0.0
    %2973 = vmatprep.subr.mxu0 0.0
    %2974 = vmatpush1.msra.mxu0 0.0
    %2975 = vmatprep.subr.mxu0 0.0
    %2976 = vmatpush1.msra.mxu0 0.0
    %2977 = vmatprep.subr.mxu0 0.0
    %2978 = vmatpush1.msra.mxu0 0.0
    %2979 = vmatprep.subr.mxu0 0.0
    %2980 = vmatpush1.msra.mxu0 0.0
    %2981 = vmatprep.subr.mxu0 0.0
    %2982 = vmatpush1.msra.mxu0 0.0
    %2983 = vmatprep.subr.mxu0 0.0
    %2984 = vmatpush1.msra.mxu0 0.0
    %2985 = vmatprep.subr.mxu0 0.0
    %2986 = vmatpush1.msra.mxu0 0.0
    %2987 = vmatprep.subr.mxu0 0.0
    %2988 = vmatpush1.msra.mxu0 0.0
    %2989 = vmatprep.subr.mxu0 0.0
    %2990 = vmatpush1.msra.mxu0 0.0
    %2991 = vmatprep.subr.mxu0 0.0
    %2992 = vmatpush1.msra.mxu0 0.0
    %2993 = vmatprep.subr.mxu0 0.0
    %2994 = vmatpush1.msra.mxu0 0.0
    %2995 = vmatprep.subr.mxu0 0.0
    %2996 = vmatpush1.msra.mxu0 0.0
    %2997 = vmatprep.subr.mxu0 0.0
    %2998 = vmatpush1.msra.mxu0 0.0
    %2999 = vmatprep.subr.mxu0 0.0
    %3000 = vmatpush1.msra.mxu0 0.0
    %3001 = vmatprep.mubr.f32.mxu0 0.0
    %v3002 = vand.u32 %v2617, 4294901760
    %3003 = vmatmul.mubr.f32.gmra.mrb[0].mxu0 %v3002
    %v3004 = vpop.f32.mrb[0].mxu0
    %v3005 = vadd.f32 %v2744, %v3004
    %v3006 = vpop.f32.mrb[0].mxu0
    %3007 = vmatprep.mubr.f32.mxu0 0.0
    %v3008 = vand.u32 %v2620, 4294901760
    %3009 = vmatmul.mubr.f32.gmra.mrb[0].mxu0 %v3008
    %v3010 = vpop.f32.mrb[0].mxu0
    %v3011 = vadd.f32 %v2754, %v3010
    %v3012 = vpop.f32.mrb[0].mxu0
    %3013 = vmatprep.mubr.f32.mxu0 0.0
    %v3014 = vand.u32 %v2623, 4294901760
    %3015 = vmatmul.mubr.f32.gmra.mrb[0].mxu0 %v3014
    %v3016 = vpop.f32.mrb[0].mxu0
    %v3017 = vadd.f32 %v2764, %v3016
    %v3018 = vpop.f32.mrb[0].mxu0
    %3019 = vmatprep.mubr.f32.mxu0 0.0
    %v3020 = vand.u32 %v2626, 4294901760
    %3021 = vmatmul.mubr.f32.gmra.mrb[0].mxu0 %v3020
    %v3022 = vpop.f32.mrb[0].mxu0
    %v3023 = vadd.f32 %v2774, %v3022
    %v3024 = vpop.f32.mrb[0].mxu0
    %3025 = vmatprep.mubr.f32.mxu0 0.0
    %v3026 = vand.u32 %v2629, 4294901760
    %3027 = vmatmul.mubr.f32.gmra.mrb[0].mxu0 %v3026
    %v3028 = vpop.f32.mrb[0].mxu0
    %v3029 = vadd.f32 %v2784, %v3028
    %v3030 = vpop.f32.mrb[0].mxu0
    %3031 = vmatprep.mubr.f32.mxu0 0.0
    %v3032 = vand.u32 %v2632, 4294901760
    %3033 = vmatmul.mubr.f32.gmra.mrb[0].mxu0 %v3032
    %v3034 = vpop.f32.mrb[0].mxu0
    %v3035 = vadd.f32 %v2794, %v3034
    %v3036 = vpop.f32.mrb[0].mxu0
    %3037 = vmatprep.mubr.f32.mxu0 0.0
    %v3038 = vand.u32 %v2635, 4294901760
    %3039 = vmatmul.mubr.f32.gmra.mrb[0].mxu0 %v3038
    %v3040 = vpop.f32.mrb[0].mxu0
    %v3041 = vadd.f32 %v2804, %v3040
    %v3042 = vpop.f32.mrb[0].mxu0
    %3043 = vmatprep.mubr.f32.mxu0 0.0
    %v3044 = vand.u32 %v2638, 4294901760
    %3045 = vmatmul.mubr.f32.gmra.mrb[0].mxu0 %v3044
    %v3046 = vpop.f32.mrb[0].mxu0
    %v3047 = vadd.f32 %v2814, %v3046
    %v3048 = vpop.f32.mrb[0].mxu0
    %3049 = vmatprep.mubr.f32.mxu0 0.0
    %v3050 = vand.u32 %v2641, 4294901760
    %3051 = vmatmul.mubr.f32.gmra.mrb[0].mxu0 %v3050
    %v3052 = vpop.f32.mrb[0].mxu0
    %v3053 = vadd.f32 %v2824, %v3052
    %v3054 = vpop.f32.mrb[0].mxu0
    %3055 = vmatprep.mubr.f32.mxu0 0.0
    %v3056 = vand.u32 %v2644, 4294901760
    %3057 = vmatmul.mubr.f32.gmra.mrb[0].mxu0 %v3056
    %v3058 = vpop.f32.mrb[0].mxu0
    %v3059 = vadd.f32 %v2834, %v3058
    %v3060 = vpop.f32.mrb[0].mxu0
    %3061 = vmatprep.mubr.f32.mxu0 0.0
    %v3062 = vand.u32 %v2647, 4294901760
    %3063 = vmatmul.mubr.f32.gmra.mrb[0].mxu0 %v3062
    %v3064 = vpop.f32.mrb[0].mxu0
    %v3065 = vadd.f32 %v2844, %v3064
    %v3066 = vpop.f32.mrb[0].mxu0
    %3067 = vmatprep.mubr.f32.mxu0 0.0
    %v3068 = vand.u32 %v2650, 4294901760
    %3069 = vmatmul.mubr.f32.gmra.mrb[0].mxu0 %v3068
    %v3070 = vpop.f32.mrb[0].mxu0
    %v3071 = vadd.f32 %v2854, %v3070
    %v3072 = vpop.f32.mrb[0].mxu0
    %3073 = vmatprep.mubr.f32.mxu0 0.0
    %v3074 = vand.u32 %v2653, 4294901760
    %3075 = vmatmul.mubr.f32.gmra.mrb[0].mxu0 %v3074
    %v3076 = vpop.f32.mrb[0].mxu0
    %v3077 = vadd.f32 %v2864, %v3076
    %v3078 = vpop.f32.mrb[0].mxu0
    %3079 = vmatprep.mubr.f32.mxu0 0.0
    %v3080 = vand.u32 %v2656, 4294901760
    %3081 = vmatmul.mubr.f32.gmra.mrb[0].mxu0 %v3080
    %v3082 = vpop.f32.mrb[0].mxu0
    %v3083 = vadd.f32 %v2874, %v3082
    %v3084 = vpop.f32.mrb[0].mxu0
    %3085 = vmatprep.mubr.f32.mxu0 0.0
    %v3086 = vand.u32 %v2659, 4294901760
    %3087 = vmatmul.mubr.f32.gmra.mrb[0].mxu0 %v3086
    %v3088 = vpop.f32.mrb[0].mxu0
    %v3089 = vadd.f32 %v2884, %v3088
    %v3090 = vpop.f32.mrb[0].mxu0
    %3091 = vmatprep.mubr.f32.mxu0 0.0
    %v3092 = vand.u32 %v2662, 4294901760
    %3093 = vmatmul.mubr.f32.gmra.mrb[0].mxu0 %v3092
    %v3094 = vpop.f32.mrb[0].mxu0
    %v3095 = vadd.f32 %v2894, %v3094
    %v3096 = vpop.f32.mrb[0].mxu0
    %3097 = vdwg.mxu0
    %3098 = vmatprep.subr.mxu0 0.0
    %v3099 = vand.u32 %v2604, 4294901760
    %v3100 = vsub.f32 %v2604, %v3099
    %3101 = vmatpush1.msra.mxu0 %v3100
    %3102 = vmatprep.subr.mxu0 0.0
    %v3103 = vand.u32 %v2605, 4294901760
    %v3104 = vsub.f32 %v2605, %v3103
    %3105 = vmatpush1.msra.mxu0 %v3104
    %3106 = vmatprep.subr.mxu0 0.0
    %v3107 = vand.u32 %v2606, 4294901760
    %v3108 = vsub.f32 %v2606, %v3107
    %3109 = vmatpush1.msra.mxu0 %v3108
    %3110 = vmatprep.subr.mxu0 0.0
    %v3111 = vand.u32 %v2607, 4294901760
    %v3112 = vsub.f32 %v2607, %v3111
    %3113 = vmatpush1.msra.mxu0 %v3112
    %3114 = vmatprep.subr.mxu0 0.0
    %v3115 = vand.u32 %v2608, 4294901760
    %v3116 = vsub.f32 %v2608, %v3115
    %3117 = vmatpush1.msra.mxu0 %v3116
    %3118 = vmatprep.subr.mxu0 0.0
    %v3119 = vand.u32 %v2609, 4294901760
    %v3120 = vsub.f32 %v2609, %v3119
    %3121 = vmatpush1.msra.mxu0 %v3120
    %3122 = vmatprep.subr.mxu0 0.0
    %v3123 = vand.u32 %v2610, 4294901760
    %v3124 = vsub.f32 %v2610, %v3123
    %3125 = vmatpush1.msra.mxu0 %v3124
    %3126 = vmatprep.subr.mxu0 0.0
    %v3127 = vand.u32 %v2611, 4294901760
    %v3128 = vsub.f32 %v2611, %v3127
    %3129 = vmatpush1.msra.mxu0 %v3128
    %3130 = vmatprep.subr.mxu0 0.0
    %3131 = vmatpush1.msra.mxu0 0.0
    %3132 = vmatprep.subr.mxu0 0.0
    %3133 = vmatpush1.msra.mxu0 0.0
    %3134 = vmatprep.subr.mxu0 0.0
    %3135 = vmatpush1.msra.mxu0 0.0
    %3136 = vmatprep.subr.mxu0 0.0
    %3137 = vmatpush1.msra.mxu0 0.0
    %3138 = vmatprep.subr.mxu0 0.0
    %3139 = vmatpush1.msra.mxu0 0.0
    %3140 = vmatprep.subr.mxu0 0.0
    %3141 = vmatpush1.msra.mxu0 0.0
    %3142 = vmatprep.subr.mxu0 0.0
    %3143 = vmatpush1.msra.mxu0 0.0
    %3144 = vmatprep.subr.mxu0 0.0
    %3145 = vmatpush1.msra.mxu0 0.0
    %3146 = vmatprep.subr.mxu0 0.0
    %3147 = vmatpush1.msra.mxu0 0.0
    %3148 = vmatprep.subr.mxu0 0.0
    %3149 = vmatpush1.msra.mxu0 0.0
    %3150 = vmatprep.subr.mxu0 0.0
    %3151 = vmatpush1.msra.mxu0 0.0
    %3152 = vmatprep.subr.mxu0 0.0
    %3153 = vmatpush1.msra.mxu0 0.0
    %3154 = vmatprep.subr.mxu0 0.0
    %3155 = vmatpush1.msra.mxu0 0.0
    %3156 = vmatprep.subr.mxu0 0.0
    %3157 = vmatpush1.msra.mxu0 0.0
    %3158 = vmatprep.subr.mxu0 0.0
    %3159 = vmatpush1.msra.mxu0 0.0
    %3160 = vmatprep.subr.mxu0 0.0
    %3161 = vmatpush1.msra.mxu0 0.0
    %3162 = vmatprep.subr.mxu0 0.0
    %3163 = vmatpush1.msra.mxu0 0.0
    %3164 = vmatprep.subr.mxu0 0.0
    %3165 = vmatpush1.msra.mxu0 0.0
    %3166 = vmatprep.subr.mxu0 0.0
    %3167 = vmatpush1.msra.mxu0 0.0
    %3168 = vmatprep.subr.mxu0 0.0
    %3169 = vmatpush1.msra.mxu0 0.0
    %3170 = vmatprep.subr.mxu0 0.0
    %3171 = vmatpush1.msra.mxu0 0.0
    %3172 = vmatprep.subr.mxu0 0.0
    %3173 = vmatpush1.msra.mxu0 0.0
    %3174 = vmatprep.subr.mxu0 0.0
    %3175 = vmatpush1.msra.mxu0 0.0
    %3176 = vmatprep.subr.mxu0 0.0
    %3177 = vmatpush1.msra.mxu0 0.0
    %3178 = vmatprep.mubr.f32.mxu0 0.0
    %v3179 = vand.u32 %v2617, 4294901760
    %v3180 = vsub.f32 %v2617, %v3179
    %3181 = vmatmul.mubr.f32.gmra.mrb[0].mxu0 %v3180
    %v3182 = vpop.f32.mrb[0].mxu0
    %v3183 = vadd.f32 %v3005, %v3182
    %v3184 = vpop.f32.mrb[0].mxu0
    %3185 = vmatprep.mubr.f32.mxu0 0.0
    %v3186 = vand.u32 %v2620, 4294901760
    %v3187 = vsub.f32 %v2620, %v3186
    %3188 = vmatmul.mubr.f32.gmra.mrb[0].mxu0 %v3187
    %v3189 = vpop.f32.mrb[0].mxu0
    %v3190 = vadd.f32 %v3011, %v3189
    %v3191 = vpop.f32.mrb[0].mxu0
    %3192 = vmatprep.mubr.f32.mxu0 0.0
    %v3193 = vand.u32 %v2623, 4294901760
    %v3194 = vsub.f32 %v2623, %v3193
    %3195 = vmatmul.mubr.f32.gmra.mrb[0].mxu0 %v3194
    %v3196 = vpop.f32.mrb[0].mxu0
    %v3197 = vadd.f32 %v3017, %v3196
    %v3198 = vpop.f32.mrb[0].mxu0
    %3199 = vmatprep.mubr.f32.mxu0 0.0
    %v3200 = vand.u32 %v2626, 4294901760
    %v3201 = vsub.f32 %v2626, %v3200
    %3202 = vmatmul.mubr.f32.gmra.mrb[0].mxu0 %v3201
    %v3203 = vpop.f32.mrb[0].mxu0
    %v3204 = vadd.f32 %v3023, %v3203
    %v3205 = vpop.f32.mrb[0].mxu0
    %3206 = vmatprep.mubr.f32.mxu0 0.0
    %v3207 = vand.u32 %v2629, 4294901760
    %v3208 = vsub.f32 %v2629, %v3207
    %3209 = vmatmul.mubr.f32.gmra.mrb[0].mxu0 %v3208
    %v3210 = vpop.f32.mrb[0].mxu0
    %v3211 = vadd.f32 %v3029, %v3210
    %v3212 = vpop.f32.mrb[0].mxu0
    %3213 = vmatprep.mubr.f32.mxu0 0.0
    %v3214 = vand.u32 %v2632, 4294901760
    %v3215 = vsub.f32 %v2632, %v3214
    %3216 = vmatmul.mubr.f32.gmra.mrb[0].mxu0 %v3215
    %v3217 = vpop.f32.mrb[0].mxu0
    %v3218 = vadd.f32 %v3035, %v3217
    %v3219 = vpop.f32.mrb[0].mxu0
    %3220 = vmatprep.mubr.f32.mxu0 0.0
    %v3221 = vand.u32 %v2635, 4294901760
    %v3222 = vsub.f32 %v2635, %v3221
    %3223 = vmatmul.mubr.f32.gmra.mrb[0].mxu0 %v3222
    %v3224 = vpop.f32.mrb[0].mxu0
    %v3225 = vadd.f32 %v3041, %v3224
    %v3226 = vpop.f32.mrb[0].mxu0
    %3227 = vmatprep.mubr.f32.mxu0 0.0
    %v3228 = vand.u32 %v2638, 4294901760
    %v3229 = vsub.f32 %v2638, %v3228
    %3230 = vmatmul.mubr.f32.gmra.mrb[0].mxu0 %v3229
    %v3231 = vpop.f32.mrb[0].mxu0
    %v3232 = vadd.f32 %v3047, %v3231
    %v3233 = vpop.f32.mrb[0].mxu0
    %3234 = vmatprep.mubr.f32.mxu0 0.0
    %v3235 = vand.u32 %v2641, 4294901760
    %v3236 = vsub.f32 %v2641, %v3235
    %3237 = vmatmul.mubr.f32.gmra.mrb[0].mxu0 %v3236
    %v3238 = vpop.f32.mrb[0].mxu0
    %v3239 = vadd.f32 %v3053, %v3238
    %v3240 = vpop.f32.mrb[0].mxu0
    %3241 = vmatprep.mubr.f32.mxu0 0.0
    %v3242 = vand.u32 %v2644, 4294901760
    %v3243 = vsub.f32 %v2644, %v3242
    %3244 = vmatmul.mubr.f32.gmra.mrb[0].mxu0 %v3243
    %v3245 = vpop.f32.mrb[0].mxu0
    %v3246 = vadd.f32 %v3059, %v3245
    %v3247 = vpop.f32.mrb[0].mxu0
    %3248 = vmatprep.mubr.f32.mxu0 0.0
    %v3249 = vand.u32 %v2647, 4294901760
    %v3250 = vsub.f32 %v2647, %v3249
    %3251 = vmatmul.mubr.f32.gmra.mrb[0].mxu0 %v3250
    %v3252 = vpop.f32.mrb[0].mxu0
    %v3253 = vadd.f32 %v3065, %v3252
    %v3254 = vpop.f32.mrb[0].mxu0
    %3255 = vmatprep.mubr.f32.mxu0 0.0
    %v3256 = vand.u32 %v2650, 4294901760
    %v3257 = vsub.f32 %v2650, %v3256
    %3258 = vmatmul.mubr.f32.gmra.mrb[0].mxu0 %v3257
    %v3259 = vpop.f32.mrb[0].mxu0
    %v3260 = vadd.f32 %v3071, %v3259
    %v3261 = vpop.f32.mrb[0].mxu0
    %3262 = vmatprep.mubr.f32.mxu0 0.0
    %v3263 = vand.u32 %v2653, 4294901760
    %v3264 = vsub.f32 %v2653, %v3263
    %3265 = vmatmul.mubr.f32.gmra.mrb[0].mxu0 %v3264
    %v3266 = vpop.f32.mrb[0].mxu0
    %v3267 = vadd.f32 %v3077, %v3266
    %v3268 = vpop.f32.mrb[0].mxu0
    %3269 = vmatprep.mubr.f32.mxu0 0.0
    %v3270 = vand.u32 %v2656, 4294901760
    %v3271 = vsub.f32 %v2656, %v3270
    %3272 = vmatmul.mubr.f32.gmra.mrb[0].mxu0 %v3271
    %v3273 = vpop.f32.mrb[0].mxu0
    %v3274 = vadd.f32 %v3083, %v3273
    %v3275 = vpop.f32.mrb[0].mxu0
    %3276 = vmatprep.mubr.f32.mxu0 0.0
    %v3277 = vand.u32 %v2659, 4294901760
    %v3278 = vsub.f32 %v2659, %v3277
    %3279 = vmatmul.mubr.f32.gmra.mrb[0].mxu0 %v3278
    %v3280 = vpop.f32.mrb[0].mxu0
    %v3281 = vadd.f32 %v3089, %v3280
    %v3282 = vpop.f32.mrb[0].mxu0
    %3283 = vmatprep.mubr.f32.mxu0 0.0
    %v3284 = vand.u32 %v2662, 4294901760
    %v3285 = vsub.f32 %v2662, %v3284
    %3286 = vmatmul.mubr.f32.gmra.mrb[0].mxu0 %v3285
    %v3287 = vpop.f32.mrb[0].mxu0
    %v3288 = vadd.f32 %v3095, %v3287
    %v3289 = vpop.f32.mrb[0].mxu0
    %3290 = vdwg.mxu0
    %3291 = vmatprep.subr.mxu0 0.0
    %v3292 = vand.u32 %v2604, 4294901760
    %3293 = vmatpush1.msra.mxu0 %v3292
    %3294 = vmatprep.subr.mxu0 0.0
    %v3295 = vand.u32 %v2605, 4294901760
    %3296 = vmatpush1.msra.mxu0 %v3295
    %3297 = vmatprep.subr.mxu0 0.0
    %v3298 = vand.u32 %v2606, 4294901760
    %3299 = vmatpush1.msra.mxu0 %v3298
    %3300 = vmatprep.subr.mxu0 0.0
    %v3301 = vand.u32 %v2607, 4294901760
    %3302 = vmatpush1.msra.mxu0 %v3301
    %3303 = vmatprep.subr.mxu0 0.0
    %v3304 = vand.u32 %v2608, 4294901760
    %3305 = vmatpush1.msra.mxu0 %v3304
    %3306 = vmatprep.subr.mxu0 0.0
    %v3307 = vand.u32 %v2609, 4294901760
    %3308 = vmatpush1.msra.mxu0 %v3307
    %3309 = vmatprep.subr.mxu0 0.0
    %v3310 = vand.u32 %v2610, 4294901760
    %3311 = vmatpush1.msra.mxu0 %v3310
    %3312 = vmatprep.subr.mxu0 0.0
    %v3313 = vand.u32 %v2611, 4294901760
    %3314 = vmatpush1.msra.mxu0 %v3313
    %3315 = vmatprep.subr.mxu0 0.0
    %3316 = vmatpush1.msra.mxu0 0.0
    %3317 = vmatprep.subr.mxu0 0.0
    %3318 = vmatpush1.msra.mxu0 0.0
    %3319 = vmatprep.subr.mxu0 0.0
    %3320 = vmatpush1.msra.mxu0 0.0
    %3321 = vmatprep.subr.mxu0 0.0
    %3322 = vmatpush1.msra.mxu0 0.0
    %3323 = vmatprep.subr.mxu0 0.0
    %3324 = vmatpush1.msra.mxu0 0.0
    %3325 = vmatprep.subr.mxu0 0.0
    %3326 = vmatpush1.msra.mxu0 0.0
    %3327 = vmatprep.subr.mxu0 0.0
    %3328 = vmatpush1.msra.mxu0 0.0
    %3329 = vmatprep.subr.mxu0 0.0
    %3330 = vmatpush1.msra.mxu0 0.0
    %3331 = vmatprep.subr.mxu0 0.0
    %3332 = vmatpush1.msra.mxu0 0.0
    %3333 = vmatprep.subr.mxu0 0.0
    %3334 = vmatpush1.msra.mxu0 0.0
    %3335 = vmatprep.subr.mxu0 0.0
    %3336 = vmatpush1.msra.mxu0 0.0
    %3337 = vmatprep.subr.mxu0 0.0
    %3338 = vmatpush1.msra.mxu0 0.0
    %3339 = vmatprep.subr.mxu0 0.0
    %3340 = vmatpush1.msra.mxu0 0.0
    %3341 = vmatprep.subr.mxu0 0.0
    %3342 = vmatpush1.msra.mxu0 0.0
    %3343 = vmatprep.subr.mxu0 0.0
    %3344 = vmatpush1.msra.mxu0 0.0
    %3345 = vmatprep.subr.mxu0 0.0
    %3346 = vmatpush1.msra.mxu0 0.0
    %3347 = vmatprep.subr.mxu0 0.0
    %3348 = vmatpush1.msra.mxu0 0.0
    %3349 = vmatprep.subr.mxu0 0.0
    %3350 = vmatpush1.msra.mxu0 0.0
    %3351 = vmatprep.subr.mxu0 0.0
    %3352 = vmatpush1.msra.mxu0 0.0
    %3353 = vmatprep.subr.mxu0 0.0
    %3354 = vmatpush1.msra.mxu0 0.0
    %3355 = vmatprep.subr.mxu0 0.0
    %3356 = vmatpush1.msra.mxu0 0.0
    %3357 = vmatprep.subr.mxu0 0.0
    %3358 = vmatpush1.msra.mxu0 0.0
    %3359 = vmatprep.subr.mxu0 0.0
    %3360 = vmatpush1.msra.mxu0 0.0
    %3361 = vmatprep.subr.mxu0 0.0
    %3362 = vmatpush1.msra.mxu0 0.0
    %3363 = vmatprep.mubr.f32.mxu0 0.0
    %v3364 = vand.u32 %v2617, 4294901760
    %v3365 = vsub.f32 %v2617, %v3364
    %v3366 = vand.u32 %v3365, 4294901760
    %3367 = vmatmul.mubr.f32.gmra.mrb[0].mxu0 %v3366
    %v3368 = vpop.f32.mrb[0].mxu0
    %v3369 = vadd.f32 %v3183, %v3368
    %v3370 = vpop.f32.mrb[0].mxu0
    %3371 = vmatprep.mubr.f32.mxu0 0.0
    %v3372 = vand.u32 %v2620, 4294901760
    %v3373 = vsub.f32 %v2620, %v3372
    %v3374 = vand.u32 %v3373, 4294901760
    %3375 = vmatmul.mubr.f32.gmra.mrb[0].mxu0 %v3374
    %v3376 = vpop.f32.mrb[0].mxu0
    %v3377 = vadd.f32 %v3190, %v3376
    %v3378 = vpop.f32.mrb[0].mxu0
    %3379 = vmatprep.mubr.f32.mxu0 0.0
    %v3380 = vand.u32 %v2623, 4294901760
    %v3381 = vsub.f32 %v2623, %v3380
    %v3382 = vand.u32 %v3381, 4294901760
    %3383 = vmatmul.mubr.f32.gmra.mrb[0].mxu0 %v3382
    %v3384 = vpop.f32.mrb[0].mxu0
    %v3385 = vadd.f32 %v3197, %v3384
    %v3386 = vpop.f32.mrb[0].mxu0
    %3387 = vmatprep.mubr.f32.mxu0 0.0
    %v3388 = vand.u32 %v2626, 4294901760
    %v3389 = vsub.f32 %v2626, %v3388
    %v3390 = vand.u32 %v3389, 4294901760
    %3391 = vmatmul.mubr.f32.gmra.mrb[0].mxu0 %v3390
    %v3392 = vpop.f32.mrb[0].mxu0
    %v3393 = vadd.f32 %v3204, %v3392
    %v3394 = vpop.f32.mrb[0].mxu0
    %3395 = vmatprep.mubr.f32.mxu0 0.0
    %v3396 = vand.u32 %v2629, 4294901760
    %v3397 = vsub.f32 %v2629, %v3396
    %v3398 = vand.u32 %v3397, 4294901760
    %3399 = vmatmul.mubr.f32.gmra.mrb[0].mxu0 %v3398
    %v3400 = vpop.f32.mrb[0].mxu0
    %v3401 = vadd.f32 %v3211, %v3400
    %v3402 = vpop.f32.mrb[0].mxu0
    %3403 = vmatprep.mubr.f32.mxu0 0.0
    %v3404 = vand.u32 %v2632, 4294901760
    %v3405 = vsub.f32 %v2632, %v3404
    %v3406 = vand.u32 %v3405, 4294901760
    %3407 = vmatmul.mubr.f32.gmra.mrb[0].mxu0 %v3406
    %v3408 = vpop.f32.mrb[0].mxu0
    %v3409 = vadd.f32 %v3218, %v3408
    %v3410 = vpop.f32.mrb[0].mxu0
    %3411 = vmatprep.mubr.f32.mxu0 0.0
    %v3412 = vand.u32 %v2635, 4294901760
    %v3413 = vsub.f32 %v2635, %v3412
    %v3414 = vand.u32 %v3413, 4294901760
    %3415 = vmatmul.mubr.f32.gmra.mrb[0].mxu0 %v3414
    %v3416 = vpop.f32.mrb[0].mxu0
    %v3417 = vadd.f32 %v3225, %v3416
    %v3418 = vpop.f32.mrb[0].mxu0
    %3419 = vmatprep.mubr.f32.mxu0 0.0
    %v3420 = vand.u32 %v2638, 4294901760
    %v3421 = vsub.f32 %v2638, %v3420
    %v3422 = vand.u32 %v3421, 4294901760
    %3423 = vmatmul.mubr.f32.gmra.mrb[0].mxu0 %v3422
    %v3424 = vpop.f32.mrb[0].mxu0
    %v3425 = vadd.f32 %v3232, %v3424
    %v3426 = vpop.f32.mrb[0].mxu0
    %3427 = vmatprep.mubr.f32.mxu0 0.0
    %v3428 = vand.u32 %v2641, 4294901760
    %v3429 = vsub.f32 %v2641, %v3428
    %v3430 = vand.u32 %v3429, 4294901760
    %3431 = vmatmul.mubr.f32.gmra.mrb[0].mxu0 %v3430
    %v3432 = vpop.f32.mrb[0].mxu0
    %v3433 = vadd.f32 %v3239, %v3432
    %v3434 = vpop.f32.mrb[0].mxu0
    %3435 = vmatprep.mubr.f32.mxu0 0.0
    %v3436 = vand.u32 %v2644, 4294901760
    %v3437 = vsub.f32 %v2644, %v3436
    %v3438 = vand.u32 %v3437, 4294901760
    %3439 = vmatmul.mubr.f32.gmra.mrb[0].mxu0 %v3438
    %v3440 = vpop.f32.mrb[0].mxu0
    %v3441 = vadd.f32 %v3246, %v3440
    %v3442 = vpop.f32.mrb[0].mxu0
    %3443 = vmatprep.mubr.f32.mxu0 0.0
    %v3444 = vand.u32 %v2647, 4294901760
    %v3445 = vsub.f32 %v2647, %v3444
    %v3446 = vand.u32 %v3445, 4294901760
    %3447 = vmatmul.mubr.f32.gmra.mrb[0].mxu0 %v3446
    %v3448 = vpop.f32.mrb[0].mxu0
    %v3449 = vadd.f32 %v3253, %v3448
    %v3450 = vpop.f32.mrb[0].mxu0
    %3451 = vmatprep.mubr.f32.mxu0 0.0
    %v3452 = vand.u32 %v2650, 4294901760
    %v3453 = vsub.f32 %v2650, %v3452
    %v3454 = vand.u32 %v3453, 4294901760
    %3455 = vmatmul.mubr.f32.gmra.mrb[0].mxu0 %v3454
    %v3456 = vpop.f32.mrb[0].mxu0
    %v3457 = vadd.f32 %v3260, %v3456
    %v3458 = vpop.f32.mrb[0].mxu0
    %3459 = vmatprep.mubr.f32.mxu0 0.0
    %v3460 = vand.u32 %v2653, 4294901760
    %v3461 = vsub.f32 %v2653, %v3460
    %v3462 = vand.u32 %v3461, 4294901760
    %3463 = vmatmul.mubr.f32.gmra.mrb[0].mxu0 %v3462
    %v3464 = vpop.f32.mrb[0].mxu0
    %v3465 = vadd.f32 %v3267, %v3464
    %v3466 = vpop.f32.mrb[0].mxu0
    %3467 = vmatprep.mubr.f32.mxu0 0.0
    %v3468 = vand.u32 %v2656, 4294901760
    %v3469 = vsub.f32 %v2656, %v3468
    %v3470 = vand.u32 %v3469, 4294901760
    %3471 = vmatmul.mubr.f32.gmra.mrb[0].mxu0 %v3470
    %v3472 = vpop.f32.mrb[0].mxu0
    %v3473 = vadd.f32 %v3274, %v3472
    %v3474 = vpop.f32.mrb[0].mxu0
    %3475 = vmatprep.mubr.f32.mxu0 0.0
    %v3476 = vand.u32 %v2659, 4294901760
    %v3477 = vsub.f32 %v2659, %v3476
    %v3478 = vand.u32 %v3477, 4294901760
    %3479 = vmatmul.mubr.f32.gmra.mrb[0].mxu0 %v3478
    %v3480 = vpop.f32.mrb[0].mxu0
    %v3481 = vadd.f32 %v3281, %v3480
    %v3482 = vpop.f32.mrb[0].mxu0
    %3483 = vmatprep.mubr.f32.mxu0 0.0
    %v3484 = vand.u32 %v2662, 4294901760
    %v3485 = vsub.f32 %v2662, %v3484
    %v3486 = vand.u32 %v3485, 4294901760
    %3487 = vmatmul.mubr.f32.gmra.mrb[0].mxu0 %v3486
    %v3488 = vpop.f32.mrb[0].mxu0
    %v3489 = vadd.f32 %v3288, %v3488
    %v3490 = vpop.f32.mrb[0].mxu0
    %3491 = vdwg.mxu0
    %3492 = vmatprep.subr.mxu0 0.0
    %v3493 = vand.u32 %v2604, 4294901760
    %v3494 = vsub.f32 %v2604, %v3493
    %v3495 = vand.u32 %v3494, 4294901760
    %3496 = vmatpush1.msra.mxu0 %v3495
    %3497 = vmatprep.subr.mxu0 0.0
    %v3498 = vand.u32 %v2605, 4294901760
    %v3499 = vsub.f32 %v2605, %v3498
    %v3500 = vand.u32 %v3499, 4294901760
    %3501 = vmatpush1.msra.mxu0 %v3500
    %3502 = vmatprep.subr.mxu0 0.0
    %v3503 = vand.u32 %v2606, 4294901760
    %v3504 = vsub.f32 %v2606, %v3503
    %v3505 = vand.u32 %v3504, 4294901760
    %3506 = vmatpush1.msra.mxu0 %v3505
    %3507 = vmatprep.subr.mxu0 0.0
    %v3508 = vand.u32 %v2607, 4294901760
    %v3509 = vsub.f32 %v2607, %v3508
    %v3510 = vand.u32 %v3509, 4294901760
    %3511 = vmatpush1.msra.mxu0 %v3510
    %3512 = vmatprep.subr.mxu0 0.0
    %v3513 = vand.u32 %v2608, 4294901760
    %v3514 = vsub.f32 %v2608, %v3513
    %v3515 = vand.u32 %v3514, 4294901760
    %3516 = vmatpush1.msra.mxu0 %v3515
    %3517 = vmatprep.subr.mxu0 0.0
    %v3518 = vand.u32 %v2609, 4294901760
    %v3519 = vsub.f32 %v2609, %v3518
    %v3520 = vand.u32 %v3519, 4294901760
    %3521 = vmatpush1.msra.mxu0 %v3520
    %3522 = vmatprep.subr.mxu0 0.0
    %v3523 = vand.u32 %v2610, 4294901760
    %v3524 = vsub.f32 %v2610, %v3523
    %v3525 = vand.u32 %v3524, 4294901760
    %3526 = vmatpush1.msra.mxu0 %v3525
    %3527 = vmatprep.subr.mxu0 0.0
    %v3528 = vand.u32 %v2611, 4294901760
    %v3529 = vsub.f32 %v2611, %v3528
    %v3530 = vand.u32 %v3529, 4294901760
    %3531 = vmatpush1.msra.mxu0 %v3530
    %3532 = vmatprep.subr.mxu0 0.0
    %3533 = vmatpush1.msra.mxu0 0.0
    %3534 = vmatprep.subr.mxu0 0.0
    %3535 = vmatpush1.msra.mxu0 0.0
    %3536 = vmatprep.subr.mxu0 0.0
    %3537 = vmatpush1.msra.mxu0 0.0
    %3538 = vmatprep.subr.mxu0 0.0
    %3539 = vmatpush1.msra.mxu0 0.0
    %3540 = vmatprep.subr.mxu0 0.0
    %3541 = vmatpush1.msra.mxu0 0.0
    %3542 = vmatprep.subr.mxu0 0.0
    %3543 = vmatpush1.msra.mxu0 0.0
    %3544 = vmatprep.subr.mxu0 0.0
    %3545 = vmatpush1.msra.mxu0 0.0
    %3546 = vmatprep.subr.mxu0 0.0
    %3547 = vmatpush1.msra.mxu0 0.0
    %3548 = vmatprep.subr.mxu0 0.0
    %3549 = vmatpush1.msra.mxu0 0.0
    %3550 = vmatprep.subr.mxu0 0.0
    %3551 = vmatpush1.msra.mxu0 0.0
    %3552 = vmatprep.subr.mxu0 0.0
    %3553 = vmatpush1.msra.mxu0 0.0
    %3554 = vmatprep.subr.mxu0 0.0
    %3555 = vmatpush1.msra.mxu0 0.0
    %3556 = vmatprep.subr.mxu0 0.0
    %3557 = vmatpush1.msra.mxu0 0.0
    %3558 = vmatprep.subr.mxu0 0.0
    %3559 = vmatpush1.msra.mxu0 0.0
    %3560 = vmatprep.subr.mxu0 0.0
    %3561 = vmatpush1.msra.mxu0 0.0
    %3562 = vmatprep.subr.mxu0 0.0
    %3563 = vmatpush1.msra.mxu0 0.0
    %3564 = vmatprep.subr.mxu0 0.0
    %3565 = vmatpush1.msra.mxu0 0.0
    %3566 = vmatprep.subr.mxu0 0.0
    %3567 = vmatpush1.msra.mxu0 0.0
    %3568 = vmatprep.subr.mxu0 0.0
    %3569 = vmatpush1.msra.mxu0 0.0
    %3570 = vmatprep.subr.mxu0 0.0
    %3571 = vmatpush1.msra.mxu0 0.0
    %3572 = vmatprep.subr.mxu0 0.0
    %3573 = vmatpush1.msra.mxu0 0.0
    %3574 = vmatprep.subr.mxu0 0.0
    %3575 = vmatpush1.msra.mxu0 0.0
    %3576 = vmatprep.subr.mxu0 0.0
    %3577 = vmatpush1.msra.mxu0 0.0
    %3578 = vmatprep.subr.mxu0 0.0
    %3579 = vmatpush1.msra.mxu0 0.0
    %3580 = vmatprep.mubr.f32.mxu0 0.0
    %v3581 = vand.u32 %v2617, 4294901760
    %3582 = vmatmul.mubr.f32.gmra.mrb[0].mxu0 %v3581
    %v3583 = vpop.f32.mrb[0].mxu0
    %v3584 = vadd.f32 %v3369, %v3583
    %v3585 = vpop.f32.mrb[0].mxu0
    %3586 = vmatprep.mubr.f32.mxu0 0.0
    %v3587 = vand.u32 %v2620, 4294901760
    %3588 = vmatmul.mubr.f32.gmra.mrb[0].mxu0 %v3587
    %v3589 = vpop.f32.mrb[0].mxu0
    %v3590 = vadd.f32 %v3377, %v3589
    %v3591 = vpop.f32.mrb[0].mxu0
    %3592 = vmatprep.mubr.f32.mxu0 0.0
    %v3593 = vand.u32 %v2623, 4294901760
    %3594 = vmatmul.mubr.f32.gmra.mrb[0].mxu0 %v3593
    %v3595 = vpop.f32.mrb[0].mxu0
    %v3596 = vadd.f32 %v3385, %v3595
    %v3597 = vpop.f32.mrb[0].mxu0
    %3598 = vmatprep.mubr.f32.mxu0 0.0
    %v3599 = vand.u32 %v2626, 4294901760
    %3600 = vmatmul.mubr.f32.gmra.mrb[0].mxu0 %v3599
    %v3601 = vpop.f32.mrb[0].mxu0
    %v3602 = vadd.f32 %v3393, %v3601
    %v3603 = vpop.f32.mrb[0].mxu0
    %3604 = vmatprep.mubr.f32.mxu0 0.0
    %v3605 = vand.u32 %v2629, 4294901760
    %3606 = vmatmul.mubr.f32.gmra.mrb[0].mxu0 %v3605
    %v3607 = vpop.f32.mrb[0].mxu0
    %v3608 = vadd.f32 %v3401, %v3607
    %v3609 = vpop.f32.mrb[0].mxu0
    %3610 = vmatprep.mubr.f32.mxu0 0.0
    %v3611 = vand.u32 %v2632, 4294901760
    %3612 = vmatmul.mubr.f32.gmra.mrb[0].mxu0 %v3611
    %v3613 = vpop.f32.mrb[0].mxu0
    %v3614 = vadd.f32 %v3409, %v3613
    %v3615 = vpop.f32.mrb[0].mxu0
    %3616 = vmatprep.mubr.f32.mxu0 0.0
    %v3617 = vand.u32 %v2635, 4294901760
    %3618 = vmatmul.mubr.f32.gmra.mrb[0].mxu0 %v3617
    %v3619 = vpop.f32.mrb[0].mxu0
    %v3620 = vadd.f32 %v3417, %v3619
    %v3621 = vpop.f32.mrb[0].mxu0
    %3622 = vmatprep.mubr.f32.mxu0 0.0
    %v3623 = vand.u32 %v2638, 4294901760
    %3624 = vmatmul.mubr.f32.gmra.mrb[0].mxu0 %v3623
    %v3625 = vpop.f32.mrb[0].mxu0
    %v3626 = vadd.f32 %v3425, %v3625
    %v3627 = vpop.f32.mrb[0].mxu0
    %3628 = vmatprep.mubr.f32.mxu0 0.0
    %v3629 = vand.u32 %v2641, 4294901760
    %3630 = vmatmul.mubr.f32.gmra.mrb[0].mxu0 %v3629
    %v3631 = vpop.f32.mrb[0].mxu0
    %v3632 = vadd.f32 %v3433, %v3631
    %v3633 = vpop.f32.mrb[0].mxu0
    %3634 = vmatprep.mubr.f32.mxu0 0.0
    %v3635 = vand.u32 %v2644, 4294901760
    %3636 = vmatmul.mubr.f32.gmra.mrb[0].mxu0 %v3635
    %v3637 = vpop.f32.mrb[0].mxu0
    %v3638 = vadd.f32 %v3441, %v3637
    %v3639 = vpop.f32.mrb[0].mxu0
    %3640 = vmatprep.mubr.f32.mxu0 0.0
    %v3641 = vand.u32 %v2647, 4294901760
    %3642 = vmatmul.mubr.f32.gmra.mrb[0].mxu0 %v3641
    %v3643 = vpop.f32.mrb[0].mxu0
    %v3644 = vadd.f32 %v3449, %v3643
    %v3645 = vpop.f32.mrb[0].mxu0
    %3646 = vmatprep.mubr.f32.mxu0 0.0
    %v3647 = vand.u32 %v2650, 4294901760
    %3648 = vmatmul.mubr.f32.gmra.mrb[0].mxu0 %v3647
    %v3649 = vpop.f32.mrb[0].mxu0
    %v3650 = vadd.f32 %v3457, %v3649
    %v3651 = vpop.f32.mrb[0].mxu0
    %3652 = vmatprep.mubr.f32.mxu0 0.0
    %v3653 = vand.u32 %v2653, 4294901760
    %3654 = vmatmul.mubr.f32.gmra.mrb[0].mxu0 %v3653
    %v3655 = vpop.f32.mrb[0].mxu0
    %v3656 = vadd.f32 %v3465, %v3655
    %v3657 = vpop.f32.mrb[0].mxu0
    %3658 = vmatprep.mubr.f32.mxu0 0.0
    %v3659 = vand.u32 %v2656, 4294901760
    %3660 = vmatmul.mubr.f32.gmra.mrb[0].mxu0 %v3659
    %v3661 = vpop.f32.mrb[0].mxu0
    %v3662 = vadd.f32 %v3473, %v3661
    %v3663 = vpop.f32.mrb[0].mxu0
    %3664 = vmatprep.mubr.f32.mxu0 0.0
    %v3665 = vand.u32 %v2659, 4294901760
    %3666 = vmatmul.mubr.f32.gmra.mrb[0].mxu0 %v3665
    %v3667 = vpop.f32.mrb[0].mxu0
    %v3668 = vadd.f32 %v3481, %v3667
    %v3669 = vpop.f32.mrb[0].mxu0
    %3670 = vmatprep.mubr.f32.mxu0 0.0
    %v3671 = vand.u32 %v2662, 4294901760
    %3672 = vmatmul.mubr.f32.gmra.mrb[0].mxu0 %v3671
    %v3673 = vpop.f32.mrb[0].mxu0
    %v3674 = vadd.f32 %v3489, %v3673
    %v3675 = vpop.f32.mrb[0].mxu0
    %3676 = vdwg.mxu0
    %3677 = vmatprep.subr.mxu0 0.0
    %v3678 = vand.u32 %v2604, 4294901760
    %3679 = vmatpush1.msra.mxu0 %v3678
    %3680 = vmatprep.subr.mxu0 0.0
    %v3681 = vand.u32 %v2605, 4294901760
    %3682 = vmatpush1.msra.mxu0 %v3681
    %3683 = vmatprep.subr.mxu0 0.0
    %v3684 = vand.u32 %v2606, 4294901760
    %3685 = vmatpush1.msra.mxu0 %v3684
    %3686 = vmatprep.subr.mxu0 0.0
    %v3687 = vand.u32 %v2607, 4294901760
    %3688 = vmatpush1.msra.mxu0 %v3687
    %3689 = vmatprep.subr.mxu0 0.0
    %v3690 = vand.u32 %v2608, 4294901760
    %3691 = vmatpush1.msra.mxu0 %v3690
    %3692 = vmatprep.subr.mxu0 0.0
    %v3693 = vand.u32 %v2609, 4294901760
    %3694 = vmatpush1.msra.mxu0 %v3693
    %3695 = vmatprep.subr.mxu0 0.0
    %v3696 = vand.u32 %v2610, 4294901760
    %3697 = vmatpush1.msra.mxu0 %v3696
    %3698 = vmatprep.subr.mxu0 0.0
    %v3699 = vand.u32 %v2611, 4294901760
    %3700 = vmatpush1.msra.mxu0 %v3699
    %3701 = vmatprep.subr.mxu0 0.0
    %3702 = vmatpush1.msra.mxu0 0.0
    %3703 = vmatprep.subr.mxu0 0.0
    %3704 = vmatpush1.msra.mxu0 0.0
    %3705 = vmatprep.subr.mxu0 0.0
    %3706 = vmatpush1.msra.mxu0 0.0
    %3707 = vmatprep.subr.mxu0 0.0
    %3708 = vmatpush1.msra.mxu0 0.0
    %3709 = vmatprep.subr.mxu0 0.0
    %3710 = vmatpush1.msra.mxu0 0.0
    %3711 = vmatprep.subr.mxu0 0.0
    %3712 = vmatpush1.msra.mxu0 0.0
    %3713 = vmatprep.subr.mxu0 0.0
    %3714 = vmatpush1.msra.mxu0 0.0
    %3715 = vmatprep.subr.mxu0 0.0
    %3716 = vmatpush1.msra.mxu0 0.0
    %3717 = vmatprep.subr.mxu0 0.0
    %3718 = vmatpush1.msra.mxu0 0.0
    %3719 = vmatprep.subr.mxu0 0.0
    %3720 = vmatpush1.msra.mxu0 0.0
    %3721 = vmatprep.subr.mxu0 0.0
    %3722 = vmatpush1.msra.mxu0 0.0
    %3723 = vmatprep.subr.mxu0 0.0
    %3724 = vmatpush1.msra.mxu0 0.0
    %3725 = vmatprep.subr.mxu0 0.0
    %3726 = vmatpush1.msra.mxu0 0.0
    %3727 = vmatprep.subr.mxu0 0.0
    %3728 = vmatpush1.msra.mxu0 0.0
    %3729 = vmatprep.subr.mxu0 0.0
    %3730 = vmatpush1.msra.mxu0 0.0
    %3731 = vmatprep.subr.mxu0 0.0
    %3732 = vmatpush1.msra.mxu0 0.0
    %3733 = vmatprep.subr.mxu0 0.0
    %3734 = vmatpush1.msra.mxu0 0.0
    %3735 = vmatprep.subr.mxu0 0.0
    %3736 = vmatpush1.msra.mxu0 0.0
    %3737 = vmatprep.subr.mxu0 0.0
    %3738 = vmatpush1.msra.mxu0 0.0
    %3739 = vmatprep.subr.mxu0 0.0
    %3740 = vmatpush1.msra.mxu0 0.0
    %3741 = vmatprep.subr.mxu0 0.0
    %3742 = vmatpush1.msra.mxu0 0.0
    %3743 = vmatprep.subr.mxu0 0.0
    %3744 = vmatpush1.msra.mxu0 0.0
    %3745 = vmatprep.subr.mxu0 0.0
    %3746 = vmatpush1.msra.mxu0 0.0
    %3747 = vmatprep.subr.mxu0 0.0
    %3748 = vmatpush1.msra.mxu0 0.0
    %3749 = vmatprep.mubr.f32.mxu0 0.0
    %v3750 = vand.u32 %v2617, 4294901760
    %3751 = vmatmul.mubr.f32.gmra.mrb[0].mxu0 %v3750
    %v3752 = vpop.f32.mrb[0].mxu0
    %v3753 = vadd.f32 %v3584, %v3752
    %v3754 = vpop.f32.mrb[0].mxu0
    %3755 = vmatprep.mubr.f32.mxu0 0.0
    %v3756 = vand.u32 %v2620, 4294901760
    %3757 = vmatmul.mubr.f32.gmra.mrb[0].mxu0 %v3756
    %v3758 = vpop.f32.mrb[0].mxu0
    %v3759 = vadd.f32 %v3590, %v3758
    %v3760 = vpop.f32.mrb[0].mxu0
    %3761 = vmatprep.mubr.f32.mxu0 0.0
    %v3762 = vand.u32 %v2623, 4294901760
    %3763 = vmatmul.mubr.f32.gmra.mrb[0].mxu0 %v3762
    %v3764 = vpop.f32.mrb[0].mxu0
    %v3765 = vadd.f32 %v3596, %v3764
    %v3766 = vpop.f32.mrb[0].mxu0
    %3767 = vmatprep.mubr.f32.mxu0 0.0
    %v3768 = vand.u32 %v2626, 4294901760
    %3769 = vmatmul.mubr.f32.gmra.mrb[0].mxu0 %v3768
    %v3770 = vpop.f32.mrb[0].mxu0
    %v3771 = vadd.f32 %v3602, %v3770
    %v3772 = vpop.f32.mrb[0].mxu0
    %3773 = vmatprep.mubr.f32.mxu0 0.0
    %v3774 = vand.u32 %v2629, 4294901760
    %3775 = vmatmul.mubr.f32.gmra.mrb[0].mxu0 %v3774
    %v3776 = vpop.f32.mrb[0].mxu0
    %v3777 = vadd.f32 %v3608, %v3776
    %v3778 = vpop.f32.mrb[0].mxu0
    %3779 = vmatprep.mubr.f32.mxu0 0.0
    %v3780 = vand.u32 %v2632, 4294901760
    %3781 = vmatmul.mubr.f32.gmra.mrb[0].mxu0 %v3780
    %v3782 = vpop.f32.mrb[0].mxu0
    %v3783 = vadd.f32 %v3614, %v3782
    %v3784 = vpop.f32.mrb[0].mxu0
    %3785 = vmatprep.mubr.f32.mxu0 0.0
    %v3786 = vand.u32 %v2635, 4294901760
    %3787 = vmatmul.mubr.f32.gmra.mrb[0].mxu0 %v3786
    %v3788 = vpop.f32.mrb[0].mxu0
    %v3789 = vadd.f32 %v3620, %v3788
    %v3790 = vpop.f32.mrb[0].mxu0
    %3791 = vmatprep.mubr.f32.mxu0 0.0
    %v3792 = vand.u32 %v2638, 4294901760
    %3793 = vmatmul.mubr.f32.gmra.mrb[0].mxu0 %v3792
    %v3794 = vpop.f32.mrb[0].mxu0
    %v3795 = vadd.f32 %v3626, %v3794
    %v3796 = vpop.f32.mrb[0].mxu0
    %3797 = vmatprep.mubr.f32.mxu0 0.0
    %v3798 = vand.u32 %v2641, 4294901760
    %3799 = vmatmul.mubr.f32.gmra.mrb[0].mxu0 %v3798
    %v3800 = vpop.f32.mrb[0].mxu0
    %v3801 = vadd.f32 %v3632, %v3800
    %v3802 = vpop.f32.mrb[0].mxu0
    %3803 = vmatprep.mubr.f32.mxu0 0.0
    %v3804 = vand.u32 %v2644, 4294901760
    %3805 = vmatmul.mubr.f32.gmra.mrb[0].mxu0 %v3804
    %v3806 = vpop.f32.mrb[0].mxu0
    %v3807 = vadd.f32 %v3638, %v3806
    %v3808 = vpop.f32.mrb[0].mxu0
    %3809 = vmatprep.mubr.f32.mxu0 0.0
    %v3810 = vand.u32 %v2647, 4294901760
    %3811 = vmatmul.mubr.f32.gmra.mrb[0].mxu0 %v3810
    %v3812 = vpop.f32.mrb[0].mxu0
    %v3813 = vadd.f32 %v3644, %v3812
    %v3814 = vpop.f32.mrb[0].mxu0
    %3815 = vmatprep.mubr.f32.mxu0 0.0
    %v3816 = vand.u32 %v2650, 4294901760
    %3817 = vmatmul.mubr.f32.gmra.mrb[0].mxu0 %v3816
    %v3818 = vpop.f32.mrb[0].mxu0
    %v3819 = vadd.f32 %v3650, %v3818
    %v3820 = vpop.f32.mrb[0].mxu0
    %3821 = vmatprep.mubr.f32.mxu0 0.0
    %v3822 = vand.u32 %v2653, 4294901760
    %3823 = vmatmul.mubr.f32.gmra.mrb[0].mxu0 %v3822
    %v3824 = vpop.f32.mrb[0].mxu0
    %v3825 = vadd.f32 %v3656, %v3824
    %v3826 = vpop.f32.mrb[0].mxu0
    %3827 = vmatprep.mubr.f32.mxu0 0.0
    %v3828 = vand.u32 %v2656, 4294901760
    %3829 = vmatmul.mubr.f32.gmra.mrb[0].mxu0 %v3828
    %v3830 = vpop.f32.mrb[0].mxu0
    %v3831 = vadd.f32 %v3662, %v3830
    %v3832 = vpop.f32.mrb[0].mxu0
    %3833 = vmatprep.mubr.f32.mxu0 0.0
    %v3834 = vand.u32 %v2659, 4294901760
    %3835 = vmatmul.mubr.f32.gmra.mrb[0].mxu0 %v3834
    %v3836 = vpop.f32.mrb[0].mxu0
    %v3837 = vadd.f32 %v3668, %v3836
    %v3838 = vpop.f32.mrb[0].mxu0
    %3839 = vmatprep.mubr.f32.mxu0 0.0
    %v3840 = vand.u32 %v2662, 4294901760
    %3841 = vmatmul.mubr.f32.gmra.mrb[0].mxu0 %v3840
    %v3842 = vpop.f32.mrb[0].mxu0
    %v3843 = vadd.f32 %v3674, %v3842
    %v3844 = vpop.f32.mrb[0].mxu0
    %3845 = vdwg.mxu0
    %3846 = vxpose.xlu0.b32.start [1/16] %v3753, 128
    %3847 = vxpose.xlu0.b32.cont [2/16] %v3759, 128
    %3848 = vxpose.xlu0.b32.cont [3/16] %v3765, 128
    %3849 = vxpose.xlu0.b32.cont [4/16] %v3771, 128
    %3850 = vxpose.xlu0.b32.cont [5/16] %v3777, 128
    %3851 = vxpose.xlu0.b32.cont [6/16] %v3783, 128
    %3852 = vxpose.xlu0.b32.cont [7/16] %v3789, 128
    %3853 = vxpose.xlu0.b32.cont [8/16] %v3795, 128
    %3854 = vxpose.xlu0.b32.cont [9/16] %v3801, 128
    %3855 = vxpose.xlu0.b32.cont [10/16] %v3807, 128
    %3856 = vxpose.xlu0.b32.cont [11/16] %v3813, 128
    %3857 = vxpose.xlu0.b32.cont [12/16] %v3819, 128
    %3858 = vxpose.xlu0.b32.cont [13/16] %v3825, 128
    %3859 = vxpose.xlu0.b32.cont [14/16] %v3831, 128
    %3860 = vxpose.xlu0.b32.cont [15/16] %v3837, 128
    %3861 = vxpose.xlu0.b32.end [16/16] %v3843, 128
    %v3862 = vpop.trf.xlu0
    %v3863 = vpop.trf.xlu0
    %v3864 = vpop.trf.xlu0
    %v3865 = vpop.trf.xlu0
    %v3866 = vpop.trf.xlu0
    %v3867 = vpop.trf.xlu0
    %v3868 = vpop.trf.xlu0
    %v3869 = vpop.trf.xlu0
    %v3870 = vpop.trf.xlu0
    %v3871 = vpop.trf.xlu0
    %v3872 = vpop.trf.xlu0
    %v3873 = vpop.trf.xlu0
    %v3874 = vpop.trf.xlu0
    %v3875 = vpop.trf.xlu0
    %v3876 = vpop.trf.xlu0
    %v3877 = vpop.trf.xlu0
    %3878 = vst [vmem:[#allocation5] sm:$0x3] %v3862
    // Predicated region
    $region30: #{tpu_custom_call.1} parent=1 // pred_check
      _
    $region31: #{tpu_custom_call.1} parent=1 // pred_check_branch
      %3880 = sbr.rel (0) target = $region33
    $region32: #{tpu_custom_call.1} parent=1 // pred_region
      %s3882 = ssub.s32 32, 32
      %3883 = vsyncadd [#allocation4], %s3882
      %s3885 = sshll.u32 [#allocation5], 4
      %s3886 = int_to_ptr.vmem [resolvable:$true] %s3885
      %3888 = dma.vmem_to_hbm [thread:$0]  %s3886, 32, %s6, [#allocation4]
    $region33: #{tpu_custom_call.1} parent=1 // pred_fallthru
      _
    // Predicated region
    $region34: #{tpu_custom_call.1} parent=1 // pred_check
      _
    $region35: #{tpu_custom_call.1} parent=1 // pred_check_branch
      %3890 = sbr.rel (0) target = $region37
    $region36: #{tpu_custom_call.1} parent=1 // pred_region
      %3891 = dma.done [#allocation4], 32
    $region37: #{tpu_custom_call.1} parent=1 // pred_fallthru
      _
    %3892 = vsyncpa [#allocation3], 1
    %3893 = vsyncpa [#allocation4], 1

</llo_original>
